<compile_context>
chip_gen: v7x
topology: tpu7x:2x2x1
jax: 0.10.0
libtpu: 0.0.40
codegen_flags: <defaults>
</compile_context>

<pallas_src>
import functools

import jax
import jax.numpy as jnp
from jax import lax
from jax.experimental import pallas as pl
from jax.experimental.pallas import tpu as pltpu


# ----------------------------- Pallas kernel --------------------------------


def bilstm_kernel(lens_ref, x_ref, *refs, num_layers, hidden, T, B):
    """Fused BiLSTM forward: all layers + both directions + BN + FC.

    lens_ref: (B, 1)    int32  sequence lengths
    x_ref:    (T*B, E)  bf16   time-major flattened embedded input (rows = (t, b))
    per layer l (4 refs):
        w_ih:           (D_in, 8H) bf16   [:, :4H] fwd gates, [:, 4H:] bwd gates
        w_hh_f, w_hh_b: (H, 4H)    bf16
        b:              (1, 8H)    f32    b_ih + b_hh, both directions
    then: bn_scale (1, 2H) f32, bn_shift (1, 2H) f32,
          w_fc (2H, OP) bf16, b_fc (1, OP) f32
    out_ref:  (T*B, OP) f32
    seq_scr:  (T*B, 2H) f32 VMEM scratch (current layer's output sequence)
    """
    H = hidden
    lw = refs[: 4 * num_layers]
    (bn_scale_ref, bn_shift_ref, w_fc_ref, b_fc_ref,
     out_ref, seq_scr) = refs[4 * num_layers:]

    # Hoisted once: lengths broadcast to (B, H); per-step valid masks computed
    # once and shared by every layer and both directions.
    lens_bh = jnp.broadcast_to(lens_ref[...], (B, H))           # int32
    masks = [t < lens_bh for t in range(T)]                     # list of (B, H) bool

    def cell(g, h, c, m):
        # g: (B, 4H) pre-activations; PyTorch gate order i, f, g, o.
        i_g = jax.nn.sigmoid(g[:, 0:H])
        f_g = jax.nn.sigmoid(g[:, H:2 * H])
        g_g = jnp.tanh(g[:, 2 * H:3 * H])
        o_g = jax.nn.sigmoid(g[:, 3 * H:4 * H])
        c_new = f_g * c + i_g * g_g
        h_new = o_g * jnp.tanh(c_new)
        # pack/pad semantics: freeze state, emit zeros at padded steps.
        return (jnp.where(m, h_new, h),
                jnp.where(m, c_new, c),
                jnp.where(m, h_new, 0.0))

    layer_in = x_ref[...]                                       # (T*B, D_in) bf16
    seq_flat = None

    for l in range(num_layers):
        w_ih_ref, w_hh_f_ref, w_hh_b_ref, b_ref = lw[4 * l: 4 * l + 4]

        # Hoisted input projection: whole sequence, both directions, one big
        # bf16 MXU matmul with f32 accumulation (bias folded in here once).
        xg = (jnp.dot(layer_in, w_ih_ref[...],
                      preferred_element_type=jnp.float32)
              + b_ref[...])                                     # (T*B, 8H) f32

        w_hh_f = w_hh_f_ref[...]
        w_hh_b = w_hh_b_ref[...]

        h_f = jnp.zeros((B, H), jnp.float32)
        c_f = jnp.zeros((B, H), jnp.float32)
        h_b = jnp.zeros((B, H), jnp.float32)
        c_b = jnp.zeros((B, H), jnp.float32)

        # Static (fully unrolled) time loop; forward and backward directions are
        # interleaved in the same loop.  Only h @ W_hh sits on the serial chain.
        for i in range(T):
            tf = i
            tb = T - 1 - i

            g_f = (xg[tf * B:(tf + 1) * B, 0:4 * H]
                   + jnp.dot(h_f.astype(w_hh_f.dtype), w_hh_f,
                             preferred_element_type=jnp.float32))
            h_f, c_f, y_f = cell(g_f, h_f, c_f, masks[tf])
            seq_scr[pl.ds(tf * B, B), pl.ds(0, H)] = y_f

            g_b = (xg[tb * B:(tb + 1) * B, 4 * H:8 * H]
                   + jnp.dot(h_b.astype(w_hh_b.dtype), w_hh_b,
                             preferred_element_type=jnp.float32))
            h_b, c_b, y_b = cell(g_b, h_b, c_b, masks[tb])
            seq_scr[pl.ds(tb * B, B), pl.ds(H, H)] = y_b

        seq_flat = seq_scr[...]                                 # (T*B, 2H) f32
        if l + 1 < num_layers:
            # nn.LSTM inter-layer dropout is identity in eval mode.
            layer_in = seq_flat.astype(jnp.bfloat16)

    # Fused epilogue: eval-mode BatchNorm1d (prefused scale/shift) + Linear.
    # Dropout is identity in eval mode.  Output is 128-lane padded -> unmasked store.
    xn = seq_flat * bn_scale_ref[...] + bn_shift_ref[...]
    out_ref[...] = (jnp.dot(xn.astype(jnp.bfloat16), w_fc_ref[...],
                            preferred_element_type=jnp.float32)
                    + b_fc_ref[...])


# ------------------------------- wrapper -------------------------------------


def bilstm_forward(x_ids, lengths, params, *, num_layers, hidden):
    # Frozen embedding lookup: plain gather, left to XLA (glue, not a hot path).
    emb = params["embedding"][x_ids]                            # (B, T, E) f32
    B, T, _ = emb.shape
    H = hidden

    # Time-major flattened rows (t, b); bf16 operand for the MXU projection.
    x_flat = jnp.transpose(emb, (1, 0, 2)).reshape(T * B, -1).astype(jnp.bfloat16)
    lens = lengths.astype(jnp.int32).reshape(B, 1)

    # Pre-fuse BatchNorm1d (eval) into a single scale/shift pair.
    bn = params["bn"]
    bn_scale = bn["gamma"] * lax.rsqrt(bn["var"] + 1e-5)
    bn_shift = bn["beta"] - bn["mean"] * bn_scale

    # Pad the FC output dim up to 128 lanes -> lane-dense final store.
    O = params["fc"]["w"].shape[1]
    OP = ((O + 127) // 128) * 128
    w_fc = jnp.zeros((2 * H, OP), jnp.float32).at[:, :O].set(params["fc"]["w"])
    b_fc = jnp.zeros((1, OP), jnp.float32).at[:, :O].set(params["fc"]["b"])

    weight_args = []
    for l in range(num_layers):
        p = params[f"lstm_l{l}"]
        weight_args += [p["w_ih"].astype(jnp.bfloat16),
                        p["w_hh_f"].astype(jnp.bfloat16),
                        p["w_hh_b"].astype(jnp.bfloat16),
                        p["b"]]

    n_in = 2 + len(weight_args) + 4
    vmem = pl.BlockSpec(memory_space=pltpu.MemorySpace.VMEM)

    out = pl.pallas_call(
        functools.partial(bilstm_kernel, num_layers=num_layers, hidden=H,
                          T=T, B=B),
        out_shape=jax.ShapeDtypeStruct((T * B, OP), jnp.float32),
        in_specs=[vmem] * n_in,
        out_specs=vmem,
        scratch_shapes=[pltpu.VMEM((T * B, 2 * H), jnp.float32)],
    )(lens, x_flat, *weight_args, bn_scale, bn_shift,
      w_fc.astype(jnp.bfloat16), b_fc)

    # (T*B, OP) -> (B, T, O)
    return out.reshape(T, B, OP).transpose(1, 0, 2)[:, :, :O]


# --------------------------- parameter creation ------------------------------


def make_params(key, *, vocab_size, embedding_dim, hidden_dim, output_size,
                num_layers):
    params = {}
    keys = iter(jax.random.split(key, 3 + 4 * num_layers))
    H = hidden_dim

    params["embedding"] = 0.1 * jax.random.normal(
        next(keys), (vocab_size, embedding_dim), jnp.float32)

    for l in range(num_layers):
        d_in = embedding_dim if l == 0 else 2 * H
        params[f"lstm_l{l}"] = {
            # columns [0:4H] = forward, [4H:8H] = backward; gate order i, f, g, o
            # (== PyTorch weight_ih_l{l}{,_reverse}.T concatenated).
            "w_ih": 0.1 * jax.random.normal(next(keys), (d_in, 8 * H), jnp.float32),
            "w_hh_f": 0.1 * jax.random.normal(next(keys), (H, 4 * H), jnp.float32),
            "w_hh_b": 0.1 * jax.random.normal(next(keys), (H, 4 * H), jnp.float32),
            "b": 0.1 * jax.random.normal(next(keys), (1, 8 * H), jnp.float32),
        }

    two_h = 2 * H
    params["bn"] = {
        "gamma": jnp.ones((1, two_h), jnp.float32),
        "beta": jnp.zeros((1, two_h), jnp.float32),
        "mean": jnp.zeros((1, two_h), jnp.float32),
        "var": jnp.ones((1, two_h), jnp.float32),
    }
    params["fc"] = {
        "w": 0.1 * jax.random.normal(next(keys), (two_h, output_size), jnp.float32),
        "b": 0.1 * jax.random.normal(next(keys), (1, output_size), jnp.float32),
    }
    return params


# ---------------------------------- main -------------------------------------


if __name__ == "__main__":
    B, T = 2, 8
    vocab_size = 50
    embedding_dim = 16
    hidden_dim = 32
    output_size = 3
    num_layers = 2

    key = jax.random.PRNGKey(0)
    k_params, k_ids = jax.random.split(key)

    params = make_params(k_params,
                         vocab_size=vocab_size,
                         embedding_dim=embedding_dim,
                         hidden_dim=hidden_dim,
                         output_size=output_size,
                         num_layers=num_layers)

    x_ids = jax.random.randint(k_ids, (B, T), 0, vocab_size, dtype=jnp.int32)
    # max(lengths) must equal T (the PyTorch forward's view(x.size(1)) assumes this).
    lengths = jnp.array([T, 5], dtype=jnp.int32)

    fwd = jax.jit(functools.partial(bilstm_forward, num_layers=num_layers,
                                    hidden=hidden_dim))
    out = jax.block_until_ready(fwd(x_ids, lengths, params))

    assert out.shape == (B, T, output_size)
    assert bool(jnp.all(jnp.isfinite(out)))
    print("KERNEL_OK")
</pallas_src>

<mosaic_0001>
module attributes {stable_mosaic.version = 11 : i64} {
  func.func @bilstm_kernel(%arg0: memref<2x1xi32, #tpu.memory_space<vmem>>, %arg1: memref<16x16xbf16, #tpu.memory_space<vmem>>, %arg2: memref<16x256xbf16, #tpu.memory_space<vmem>>, %arg3: memref<32x128xbf16, #tpu.memory_space<vmem>>, %arg4: memref<32x128xbf16, #tpu.memory_space<vmem>>, %arg5: memref<1x256xf32, #tpu.memory_space<vmem>>, %arg6: memref<64x256xbf16, #tpu.memory_space<vmem>>, %arg7: memref<32x128xbf16, #tpu.memory_space<vmem>>, %arg8: memref<32x128xbf16, #tpu.memory_space<vmem>>, %arg9: memref<1x256xf32, #tpu.memory_space<vmem>>, %arg10: memref<1x64xf32, #tpu.memory_space<vmem>>, %arg11: memref<1x64xf32, #tpu.memory_space<vmem>>, %arg12: memref<64x128xbf16, #tpu.memory_space<vmem>>, %arg13: memref<1x128xf32, #tpu.memory_space<vmem>>, %arg14: memref<16x128xf32, #tpu.memory_space<vmem>>, %arg15: memref<16x64xf32, #tpu.memory_space<vmem>>) attributes {dimension_semantics = [], scalar_prefetch = 0 : i64, scratch_operands = 1 : i64, tpu.core_type = #tpu.core_type<tc>} {
    %c0 = arith.constant 0 : index
    %c0_0 = arith.constant 0 : index
    %0 = vector.load %arg0[%c0, %c0_0] : memref<2x1xi32, #tpu.memory_space<vmem>>, vector<2x1xi32>
    %1 = vector.shape_cast %0 : vector<2x1xi32> to vector<2x1xi32>
    %2 = vector.broadcast %1 : vector<2x1xi32> to vector<2x32xi32>
    %c0_i32 = arith.constant 0 : i32
    %3 = vector.broadcast %c0_i32 : i32 to vector<2x32xi32>
    %4 = arith.cmpi sgt, %2, %3 : vector<2x32xi32>
    %c1_i32 = arith.constant 1 : i32
    %5 = vector.broadcast %c1_i32 : i32 to vector<2x32xi32>
    %6 = arith.cmpi sgt, %2, %5 : vector<2x32xi32>
    %c2_i32 = arith.constant 2 : i32
    %7 = vector.broadcast %c2_i32 : i32 to vector<2x32xi32>
    %8 = arith.cmpi sgt, %2, %7 : vector<2x32xi32>
    %c3_i32 = arith.constant 3 : i32
    %9 = vector.broadcast %c3_i32 : i32 to vector<2x32xi32>
    %10 = arith.cmpi sgt, %2, %9 : vector<2x32xi32>
    %c4_i32 = arith.constant 4 : i32
    %11 = vector.broadcast %c4_i32 : i32 to vector<2x32xi32>
    %12 = arith.cmpi sgt, %2, %11 : vector<2x32xi32>
    %c5_i32 = arith.constant 5 : i32
    %13 = vector.broadcast %c5_i32 : i32 to vector<2x32xi32>
    %14 = arith.cmpi sgt, %2, %13 : vector<2x32xi32>
    %c6_i32 = arith.constant 6 : i32
    %15 = vector.broadcast %c6_i32 : i32 to vector<2x32xi32>
    %16 = arith.cmpi sgt, %2, %15 : vector<2x32xi32>
    %c7_i32 = arith.constant 7 : i32
    %17 = vector.broadcast %c7_i32 : i32 to vector<2x32xi32>
    %18 = arith.cmpi sgt, %2, %17 : vector<2x32xi32>
    %c0_1 = arith.constant 0 : index
    %c0_2 = arith.constant 0 : index
    %19 = vector.load %arg1[%c0_1, %c0_2] : memref<16x16xbf16, #tpu.memory_space<vmem>>, vector<16x16xbf16>
    %c0_3 = arith.constant 0 : index
    %c0_4 = arith.constant 0 : index
    %20 = vector.load %arg2[%c0_3, %c0_4] : memref<16x256xbf16, #tpu.memory_space<vmem>>, vector<16x256xbf16>
    %cst = arith.constant dense<0.000000e+00> : vector<16x256xf32>
    %21 = tpu.matmul %19, %20, %cst {dimension_numbers = #tpu.dot_dimension_numbers<[1], [0], [0], [1], [0, 0, 1, 1], [], []>} : vector<16x16xbf16>, vector<16x256xbf16>, vector<16x256xf32> -> vector<16x256xf32>
    %c0_5 = arith.constant 0 : index
    %c0_6 = arith.constant 0 : index
    %22 = vector.load %arg5[%c0_5, %c0_6] : memref<1x256xf32, #tpu.memory_space<vmem>>, vector<1x256xf32>
    %23 = vector.broadcast %22 : vector<1x256xf32> to vector<16x256xf32>
    %24 = arith.addf %21, %23 : vector<16x256xf32>
    %c0_7 = arith.constant 0 : index
    %c0_8 = arith.constant 0 : index
    %25 = vector.load %arg3[%c0_7, %c0_8] : memref<32x128xbf16, #tpu.memory_space<vmem>>, vector<32x128xbf16>
    %c0_9 = arith.constant 0 : index
    %c0_10 = arith.constant 0 : index
    %26 = vector.load %arg4[%c0_9, %c0_10] : memref<32x128xbf16, #tpu.memory_space<vmem>>, vector<32x128xbf16>
    %cst_11 = arith.constant 0.000000e+00 : f32
    %27 = vector.broadcast %cst_11 : f32 to vector<2x32xf32>
    %cst_12 = arith.constant 0.000000e+00 : f32
    %28 = vector.broadcast %cst_12 : f32 to vector<2x32xf32>
    %cst_13 = arith.constant 0.000000e+00 : f32
    %29 = vector.broadcast %cst_13 : f32 to vector<2x32xf32>
    %cst_14 = arith.constant 0.000000e+00 : f32
    %30 = vector.broadcast %cst_14 : f32 to vector<2x32xf32>
    %31 = vector.extract_strided_slice %24 {offsets = [0, 0], sizes = [2, 128], strides = [1, 1]} : vector<16x256xf32> to vector<2x128xf32>
    %32 = arith.truncf %27 : vector<2x32xf32> to vector<2x32xbf16>
    %cst_15 = arith.constant dense<0.000000e+00> : vector<2x128xf32>
    %33 = tpu.matmul %32, %25, %cst_15 {dimension_numbers = #tpu.dot_dimension_numbers<[1], [0], [0], [1], [0, 0, 1, 1], [], []>} : vector<2x32xbf16>, vector<32x128xbf16>, vector<2x128xf32> -> vector<2x128xf32>
    %34 = arith.addf %31, %33 : vector<2x128xf32>
    %35 = vector.extract_strided_slice %34 {offsets = [0, 0], sizes = [2, 32], strides = [1, 1]} : vector<2x128xf32> to vector<2x32xf32>
    %36 = arith.negf %35 : vector<2x32xf32>
    %37 = math.exp %36 : vector<2x32xf32>
    %cst_16 = arith.constant 1.000000e+00 : f32
    %38 = vector.broadcast %cst_16 : f32 to vector<2x32xf32>
    %39 = arith.addf %38, %37 : vector<2x32xf32>
    %40 = arith.divf %38, %39 : vector<2x32xf32>
    %41 = vector.extract_strided_slice %34 {offsets = [0, 32], sizes = [2, 32], strides = [1, 1]} : vector<2x128xf32> to vector<2x32xf32>
    %42 = arith.negf %41 : vector<2x32xf32>
    %43 = math.exp %42 : vector<2x32xf32>
    %cst_17 = arith.constant 1.000000e+00 : f32
    %44 = vector.broadcast %cst_17 : f32 to vector<2x32xf32>
    %45 = arith.addf %44, %43 : vector<2x32xf32>
    %46 = arith.divf %44, %45 : vector<2x32xf32>
    %47 = vector.extract_strided_slice %34 {offsets = [0, 64], sizes = [2, 32], strides = [1, 1]} : vector<2x128xf32> to vector<2x32xf32>
    %48 = math.tanh %47 : vector<2x32xf32>
    %49 = vector.extract_strided_slice %34 {offsets = [0, 96], sizes = [2, 32], strides = [1, 1]} : vector<2x128xf32> to vector<2x32xf32>
    %50 = arith.negf %49 : vector<2x32xf32>
    %51 = math.exp %50 : vector<2x32xf32>
    %cst_18 = arith.constant 1.000000e+00 : f32
    %52 = vector.broadcast %cst_18 : f32 to vector<2x32xf32>
    %53 = arith.addf %52, %51 : vector<2x32xf32>
    %54 = arith.divf %52, %53 : vector<2x32xf32>
    %55 = arith.mulf %46, %28 : vector<2x32xf32>
    %56 = arith.mulf %40, %48 : vector<2x32xf32>
    %57 = arith.addf %55, %56 : vector<2x32xf32>
    %58 = math.tanh %57 : vector<2x32xf32>
    %59 = arith.mulf %54, %58 : vector<2x32xf32>
    %60 = arith.select %4, %59, %27 : vector<2x32xi1>, vector<2x32xf32>
    %61 = arith.select %4, %57, %28 : vector<2x32xi1>, vector<2x32xf32>
    %cst_19 = arith.constant 0.000000e+00 : f32
    %62 = vector.broadcast %cst_19 : f32 to vector<2x32xf32>
    %63 = arith.select %4, %59, %62 : vector<2x32xi1>, vector<2x32xf32>
    %c0_20 = arith.constant 0 : index
    %c0_21 = arith.constant 0 : index
    %64 = vector.load %arg15[%c0_20, %c0_21] : memref<16x64xf32, #tpu.memory_space<vmem>>, vector<2x32xf32>
    tpu.vector_store %arg15[%c0_20, %c0_21], %63 {strides = array<i32>} : memref<16x64xf32, #tpu.memory_space<vmem>>, vector<2x32xf32>,
    %65 = vector.extract_strided_slice %24 {offsets = [14, 128], sizes = [2, 128], strides = [1, 1]} : vector<16x256xf32> to vector<2x128xf32>
    %66 = arith.truncf %29 : vector<2x32xf32> to vector<2x32xbf16>
    %cst_22 = arith.constant dense<0.000000e+00> : vector<2x128xf32>
    %67 = tpu.matmul %66, %26, %cst_22 {dimension_numbers = #tpu.dot_dimension_numbers<[1], [0], [0], [1], [0, 0, 1, 1], [], []>} : vector<2x32xbf16>, vector<32x128xbf16>, vector<2x128xf32> -> vector<2x128xf32>
    %68 = arith.addf %65, %67 : vector<2x128xf32>
    %69 = vector.extract_strided_slice %68 {offsets = [0, 0], sizes = [2, 32], strides = [1, 1]} : vector<2x128xf32> to vector<2x32xf32>
    %70 = arith.negf %69 : vector<2x32xf32>
    %71 = math.exp %70 : vector<2x32xf32>
    %cst_23 = arith.constant 1.000000e+00 : f32
    %72 = vector.broadcast %cst_23 : f32 to vector<2x32xf32>
    %73 = arith.addf %72, %71 : vector<2x32xf32>
    %74 = arith.divf %72, %73 : vector<2x32xf32>
    %75 = vector.extract_strided_slice %68 {offsets = [0, 32], sizes = [2, 32], strides = [1, 1]} : vector<2x128xf32> to vector<2x32xf32>
    %76 = arith.negf %75 : vector<2x32xf32>
    %77 = math.exp %76 : vector<2x32xf32>
    %cst_24 = arith.constant 1.000000e+00 : f32
    %78 = vector.broadcast %cst_24 : f32 to vector<2x32xf32>
    %79 = arith.addf %78, %77 : vector<2x32xf32>
    %80 = arith.divf %78, %79 : vector<2x32xf32>
    %81 = vector.extract_strided_slice %68 {offsets = [0, 64], sizes = [2, 32], strides = [1, 1]} : vector<2x128xf32> to vector<2x32xf32>
    %82 = math.tanh %81 : vector<2x32xf32>
    %83 = vector.extract_strided_slice %68 {offsets = [0, 96], sizes = [2, 32], strides = [1, 1]} : vector<2x128xf32> to vector<2x32xf32>
    %84 = arith.negf %83 : vector<2x32xf32>
    %85 = math.exp %84 : vector<2x32xf32>
    %cst_25 = arith.constant 1.000000e+00 : f32
    %86 = vector.broadcast %cst_25 : f32 to vector<2x32xf32>
    %87 = arith.addf %86, %85 : vector<2x32xf32>
    %88 = arith.divf %86, %87 : vector<2x32xf32>
    %89 = arith.mulf %80, %30 : vector<2x32xf32>
    %90 = arith.mulf %74, %82 : vector<2x32xf32>
    %91 = arith.addf %89, %90 : vector<2x32xf32>
    %92 = math.tanh %91 : vector<2x32xf32>
    %93 = arith.mulf %88, %92 : vector<2x32xf32>
    %94 = arith.select %18, %93, %29 : vector<2x32xi1>, vector<2x32xf32>
    %95 = arith.select %18, %91, %30 : vector<2x32xi1>, vector<2x32xf32>
    %cst_26 = arith.constant 0.000000e+00 : f32
    %96 = vector.broadcast %cst_26 : f32 to vector<2x32xf32>
    %97 = arith.select %18, %93, %96 : vector<2x32xi1>, vector<2x32xf32>
    %c14 = arith.constant 14 : index
    %c32 = arith.constant 32 : index
    %98 = vector.load %arg15[%c14, %c32] : memref<16x64xf32, #tpu.memory_space<vmem>>, vector<2x32xf32>
    tpu.vector_store %arg15[%c14, %c32], %97 {strides = array<i32>} : memref<16x64xf32, #tpu.memory_space<vmem>>, vector<2x32xf32>,
    %99 = vector.extract_strided_slice %24 {offsets = [2, 0], sizes = [2, 128], strides = [1, 1]} : vector<16x256xf32> to vector<2x128xf32>
    %100 = arith.truncf %60 : vector<2x32xf32> to vector<2x32xbf16>
    %cst_27 = arith.constant dense<0.000000e+00> : vector<2x128xf32>
    %101 = tpu.matmul %100, %25, %cst_27 {dimension_numbers = #tpu.dot_dimension_numbers<[1], [0], [0], [1], [0, 0, 1, 1], [], []>} : vector<2x32xbf16>, vector<32x128xbf16>, vector<2x128xf32> -> vector<2x128xf32>
    %102 = arith.addf %99, %101 : vector<2x128xf32>
    %103 = vector.extract_strided_slice %102 {offsets = [0, 0], sizes = [2, 32], strides = [1, 1]} : vector<2x128xf32> to vector<2x32xf32>
    %104 = arith.negf %103 : vector<2x32xf32>
    %105 = math.exp %104 : vector<2x32xf32>
    %cst_28 = arith.constant 1.000000e+00 : f32
    %106 = vector.broadcast %cst_28 : f32 to vector<2x32xf32>
    %107 = arith.addf %106, %105 : vector<2x32xf32>
    %108 = arith.divf %106, %107 : vector<2x32xf32>
    %109 = vector.extract_strided_slice %102 {offsets = [0, 32], sizes = [2, 32], strides = [1, 1]} : vector<2x128xf32> to vector<2x32xf32>
    %110 = arith.negf %109 : vector<2x32xf32>
    %111 = math.exp %110 : vector<2x32xf32>
    %cst_29 = arith.constant 1.000000e+00 : f32
    %112 = vector.broadcast %cst_29 : f32 to vector<2x32xf32>
    %113 = arith.addf %112, %111 : vector<2x32xf32>
    %114 = arith.divf %112, %113 : vector<2x32xf32>
    %115 = vector.extract_strided_slice %102 {offsets = [0, 64], sizes = [2, 32], strides = [1, 1]} : vector<2x128xf32> to vector<2x32xf32>
    %116 = math.tanh %115 : vector<2x32xf32>
    %117 = vector.extract_strided_slice %102 {offsets = [0, 96], sizes = [2, 32], strides = [1, 1]} : vector<2x128xf32> to vector<2x32xf32>
    %118 = arith.negf %117 : vector<2x32xf32>
    %119 = math.exp %118 : vector<2x32xf32>
    %cst_30 = arith.constant 1.000000e+00 : f32
    %120 = vector.broadcast %cst_30 : f32 to vector<2x32xf32>
    %121 = arith.addf %120, %119 : vector<2x32xf32>
    %122 = arith.divf %120, %121 : vector<2x32xf32>
    %123 = arith.mulf %114, %61 : vector<2x32xf32>
    %124 = arith.mulf %108, %116 : vector<2x32xf32>
    %125 = arith.addf %123, %124 : vector<2x32xf32>
    %126 = math.tanh %125 : vector<2x32xf32>
    %127 = arith.mulf %122, %126 : vector<2x32xf32>
    %128 = arith.select %6, %127, %60 : vector<2x32xi1>, vector<2x32xf32>
    %129 = arith.select %6, %125, %61 : vector<2x32xi1>, vector<2x32xf32>
    %cst_31 = arith.constant 0.000000e+00 : f32
    %130 = vector.broadcast %cst_31 : f32 to vector<2x32xf32>
    %131 = arith.select %6, %127, %130 : vector<2x32xi1>, vector<2x32xf32>
    %c2 = arith.constant 2 : index
    %c0_32 = arith.constant 0 : index
    %132 = vector.load %arg15[%c2, %c0_32] : memref<16x64xf32, #tpu.memory_space<vmem>>, vector<2x32xf32>
    tpu.vector_store %arg15[%c2, %c0_32], %131 {strides = array<i32>} : memref<16x64xf32, #tpu.memory_space<vmem>>, vector<2x32xf32>,
    %133 = vector.extract_strided_slice %24 {offsets = [12, 128], sizes = [2, 128], strides = [1, 1]} : vector<16x256xf32> to vector<2x128xf32>
    %134 = arith.truncf %94 : vector<2x32xf32> to vector<2x32xbf16>
    %cst_33 = arith.constant dense<0.000000e+00> : vector<2x128xf32>
    %135 = tpu.matmul %134, %26, %cst_33 {dimension_numbers = #tpu.dot_dimension_numbers<[1], [0], [0], [1], [0, 0, 1, 1], [], []>} : vector<2x32xbf16>, vector<32x128xbf16>, vector<2x128xf32> -> vector<2x128xf32>
    %136 = arith.addf %133, %135 : vector<2x128xf32>
    %137 = vector.extract_strided_slice %136 {offsets = [0, 0], sizes = [2, 32], strides = [1, 1]} : vector<2x128xf32> to vector<2x32xf32>
    %138 = arith.negf %137 : vector<2x32xf32>
    %139 = math.exp %138 : vector<2x32xf32>
    %cst_34 = arith.constant 1.000000e+00 : f32
    %140 = vector.broadcast %cst_34 : f32 to vector<2x32xf32>
    %141 = arith.addf %140, %139 : vector<2x32xf32>
    %142 = arith.divf %140, %141 : vector<2x32xf32>
    %143 = vector.extract_strided_slice %136 {offsets = [0, 32], sizes = [2, 32], strides = [1, 1]} : vector<2x128xf32> to vector<2x32xf32>
    %144 = arith.negf %143 : vector<2x32xf32>
    %145 = math.exp %144 : vector<2x32xf32>
    %cst_35 = arith.constant 1.000000e+00 : f32
    %146 = vector.broadcast %cst_35 : f32 to vector<2x32xf32>
    %147 = arith.addf %146, %145 : vector<2x32xf32>
    %148 = arith.divf %146, %147 : vector<2x32xf32>
    %149 = vector.extract_strided_slice %136 {offsets = [0, 64], sizes = [2, 32], strides = [1, 1]} : vector<2x128xf32> to vector<2x32xf32>
    %150 = math.tanh %149 : vector<2x32xf32>
    %151 = vector.extract_strided_slice %136 {offsets = [0, 96], sizes = [2, 32], strides = [1, 1]} : vector<2x128xf32> to vector<2x32xf32>
    %152 = arith.negf %151 : vector<2x32xf32>
    %153 = math.exp %152 : vector<2x32xf32>
    %cst_36 = arith.constant 1.000000e+00 : f32
    %154 = vector.broadcast %cst_36 : f32 to vector<2x32xf32>
    %155 = arith.addf %154, %153 : vector<2x32xf32>
    %156 = arith.divf %154, %155 : vector<2x32xf32>
    %157 = arith.mulf %148, %95 : vector<2x32xf32>
    %158 = arith.mulf %142, %150 : vector<2x32xf32>
    %159 = arith.addf %157, %158 : vector<2x32xf32>
    %160 = math.tanh %159 : vector<2x32xf32>
    %161 = arith.mulf %156, %160 : vector<2x32xf32>
    %162 = arith.select %16, %161, %94 : vector<2x32xi1>, vector<2x32xf32>
    %163 = arith.select %16, %159, %95 : vector<2x32xi1>, vector<2x32xf32>
    %cst_37 = arith.constant 0.000000e+00 : f32
    %164 = vector.broadcast %cst_37 : f32 to vector<2x32xf32>
    %165 = arith.select %16, %161, %164 : vector<2x32xi1>, vector<2x32xf32>
    %c12 = arith.constant 12 : index
    %c32_38 = arith.constant 32 : index
    %166 = vector.load %arg15[%c12, %c32_38] : memref<16x64xf32, #tpu.memory_space<vmem>>, vector<2x32xf32>
    tpu.vector_store %arg15[%c12, %c32_38], %165 {strides = array<i32>} : memref<16x64xf32, #tpu.memory_space<vmem>>, vector<2x32xf32>,
    %167 = vector.extract_strided_slice %24 {offsets = [4, 0], sizes = [2, 128], strides = [1, 1]} : vector<16x256xf32> to vector<2x128xf32>
    %168 = arith.truncf %128 : vector<2x32xf32> to vector<2x32xbf16>
    %cst_39 = arith.constant dense<0.000000e+00> : vector<2x128xf32>
    %169 = tpu.matmul %168, %25, %cst_39 {dimension_numbers = #tpu.dot_dimension_numbers<[1], [0], [0], [1], [0, 0, 1, 1], [], []>} : vector<2x32xbf16>, vector<32x128xbf16>, vector<2x128xf32> -> vector<2x128xf32>
    %170 = arith.addf %167, %169 : vector<2x128xf32>
    %171 = vector.extract_strided_slice %170 {offsets = [0, 0], sizes = [2, 32], strides = [1, 1]} : vector<2x128xf32> to vector<2x32xf32>
    %172 = arith.negf %171 : vector<2x32xf32>
    %173 = math.exp %172 : vector<2x32xf32>
    %cst_40 = arith.constant 1.000000e+00 : f32
    %174 = vector.broadcast %cst_40 : f32 to vector<2x32xf32>
    %175 = arith.addf %174, %173 : vector<2x32xf32>
    %176 = arith.divf %174, %175 : vector<2x32xf32>
    %177 = vector.extract_strided_slice %170 {offsets = [0, 32], sizes = [2, 32], strides = [1, 1]} : vector<2x128xf32> to vector<2x32xf32>
    %178 = arith.negf %177 : vector<2x32xf32>
    %179 = math.exp %178 : vector<2x32xf32>
    %cst_41 = arith.constant 1.000000e+00 : f32
    %180 = vector.broadcast %cst_41 : f32 to vector<2x32xf32>
    %181 = arith.addf %180, %179 : vector<2x32xf32>
    %182 = arith.divf %180, %181 : vector<2x32xf32>
    %183 = vector.extract_strided_slice %170 {offsets = [0, 64], sizes = [2, 32], strides = [1, 1]} : vector<2x128xf32> to vector<2x32xf32>
    %184 = math.tanh %183 : vector<2x32xf32>
    %185 = vector.extract_strided_slice %170 {offsets = [0, 96], sizes = [2, 32], strides = [1, 1]} : vector<2x128xf32> to vector<2x32xf32>
    %186 = arith.negf %185 : vector<2x32xf32>
    %187 = math.exp %186 : vector<2x32xf32>
    %cst_42 = arith.constant 1.000000e+00 : f32
    %188 = vector.broadcast %cst_42 : f32 to vector<2x32xf32>
    %189 = arith.addf %188, %187 : vector<2x32xf32>
    %190 = arith.divf %188, %189 : vector<2x32xf32>
    %191 = arith.mulf %182, %129 : vector<2x32xf32>
    %192 = arith.mulf %176, %184 : vector<2x32xf32>
    %193 = arith.addf %191, %192 : vector<2x32xf32>
    %194 = math.tanh %193 : vector<2x32xf32>
    %195 = arith.mulf %190, %194 : vector<2x32xf32>
    %196 = arith.select %8, %195, %128 : vector<2x32xi1>, vector<2x32xf32>
    %197 = arith.select %8, %193, %129 : vector<2x32xi1>, vector<2x32xf32>
    %cst_43 = arith.constant 0.000000e+00 : f32
    %198 = vector.broadcast %cst_43 : f32 to vector<2x32xf32>
    %199 = arith.select %8, %195, %198 : vector<2x32xi1>, vector<2x32xf32>
    %c4 = arith.constant 4 : index
    %c0_44 = arith.constant 0 : index
    %200 = vector.load %arg15[%c4, %c0_44] : memref<16x64xf32, #tpu.memory_space<vmem>>, vector<2x32xf32>
    tpu.vector_store %arg15[%c4, %c0_44], %199 {strides = array<i32>} : memref<16x64xf32, #tpu.memory_space<vmem>>, vector<2x32xf32>,
    %201 = vector.extract_strided_slice %24 {offsets = [10, 128], sizes = [2, 128], strides = [1, 1]} : vector<16x256xf32> to vector<2x128xf32>
    %202 = arith.truncf %162 : vector<2x32xf32> to vector<2x32xbf16>
    %cst_45 = arith.constant dense<0.000000e+00> : vector<2x128xf32>
    %203 = tpu.matmul %202, %26, %cst_45 {dimension_numbers = #tpu.dot_dimension_numbers<[1], [0], [0], [1], [0, 0, 1, 1], [], []>} : vector<2x32xbf16>, vector<32x128xbf16>, vector<2x128xf32> -> vector<2x128xf32>
    %204 = arith.addf %201, %203 : vector<2x128xf32>
    %205 = vector.extract_strided_slice %204 {offsets = [0, 0], sizes = [2, 32], strides = [1, 1]} : vector<2x128xf32> to vector<2x32xf32>
    %206 = arith.negf %205 : vector<2x32xf32>
    %207 = math.exp %206 : vector<2x32xf32>
    %cst_46 = arith.constant 1.000000e+00 : f32
    %208 = vector.broadcast %cst_46 : f32 to vector<2x32xf32>
    %209 = arith.addf %208, %207 : vector<2x32xf32>
    %210 = arith.divf %208, %209 : vector<2x32xf32>
    %211 = vector.extract_strided_slice %204 {offsets = [0, 32], sizes = [2, 32], strides = [1, 1]} : vector<2x128xf32> to vector<2x32xf32>
    %212 = arith.negf %211 : vector<2x32xf32>
    %213 = math.exp %212 : vector<2x32xf32>
    %cst_47 = arith.constant 1.000000e+00 : f32
    %214 = vector.broadcast %cst_47 : f32 to vector<2x32xf32>
    %215 = arith.addf %214, %213 : vector<2x32xf32>
    %216 = arith.divf %214, %215 : vector<2x32xf32>
    %217 = vector.extract_strided_slice %204 {offsets = [0, 64], sizes = [2, 32], strides = [1, 1]} : vector<2x128xf32> to vector<2x32xf32>
    %218 = math.tanh %217 : vector<2x32xf32>
    %219 = vector.extract_strided_slice %204 {offsets = [0, 96], sizes = [2, 32], strides = [1, 1]} : vector<2x128xf32> to vector<2x32xf32>
    %220 = arith.negf %219 : vector<2x32xf32>
    %221 = math.exp %220 : vector<2x32xf32>
    %cst_48 = arith.constant 1.000000e+00 : f32
    %222 = vector.broadcast %cst_48 : f32 to vector<2x32xf32>
    %223 = arith.addf %222, %221 : vector<2x32xf32>
    %224 = arith.divf %222, %223 : vector<2x32xf32>
    %225 = arith.mulf %216, %163 : vector<2x32xf32>
    %226 = arith.mulf %210, %218 : vector<2x32xf32>
    %227 = arith.addf %225, %226 : vector<2x32xf32>
    %228 = math.tanh %227 : vector<2x32xf32>
    %229 = arith.mulf %224, %228 : vector<2x32xf32>
    %230 = arith.select %14, %229, %162 : vector<2x32xi1>, vector<2x32xf32>
    %231 = arith.select %14, %227, %163 : vector<2x32xi1>, vector<2x32xf32>
    %cst_49 = arith.constant 0.000000e+00 : f32
    %232 = vector.broadcast %cst_49 : f32 to vector<2x32xf32>
    %233 = arith.select %14, %229, %232 : vector<2x32xi1>, vector<2x32xf32>
    %c10 = arith.constant 10 : index
    %c32_50 = arith.constant 32 : index
    %234 = vector.load %arg15[%c10, %c32_50] : memref<16x64xf32, #tpu.memory_space<vmem>>, vector<2x32xf32>
    tpu.vector_store %arg15[%c10, %c32_50], %233 {strides = array<i32>} : memref<16x64xf32, #tpu.memory_space<vmem>>, vector<2x32xf32>,
    %235 = vector.extract_strided_slice %24 {offsets = [6, 0], sizes = [2, 128], strides = [1, 1]} : vector<16x256xf32> to vector<2x128xf32>
    %236 = arith.truncf %196 : vector<2x32xf32> to vector<2x32xbf16>
    %cst_51 = arith.constant dense<0.000000e+00> : vector<2x128xf32>
    %237 = tpu.matmul %236, %25, %cst_51 {dimension_numbers = #tpu.dot_dimension_numbers<[1], [0], [0], [1], [0, 0, 1, 1], [], []>} : vector<2x32xbf16>, vector<32x128xbf16>, vector<2x128xf32> -> vector<2x128xf32>
    %238 = arith.addf %235, %237 : vector<2x128xf32>
    %239 = vector.extract_strided_slice %238 {offsets = [0, 0], sizes = [2, 32], strides = [1, 1]} : vector<2x128xf32> to vector<2x32xf32>
    %240 = arith.negf %239 : vector<2x32xf32>
    %241 = math.exp %240 : vector<2x32xf32>
    %cst_52 = arith.constant 1.000000e+00 : f32
    %242 = vector.broadcast %cst_52 : f32 to vector<2x32xf32>
    %243 = arith.addf %242, %241 : vector<2x32xf32>
    %244 = arith.divf %242, %243 : vector<2x32xf32>
    %245 = vector.extract_strided_slice %238 {offsets = [0, 32], sizes = [2, 32], strides = [1, 1]} : vector<2x128xf32> to vector<2x32xf32>
    %246 = arith.negf %245 : vector<2x32xf32>
    %247 = math.exp %246 : vector<2x32xf32>
    %cst_53 = arith.constant 1.000000e+00 : f32
    %248 = vector.broadcast %cst_53 : f32 to vector<2x32xf32>
    %249 = arith.addf %248, %247 : vector<2x32xf32>
    %250 = arith.divf %248, %249 : vector<2x32xf32>
    %251 = vector.extract_strided_slice %238 {offsets = [0, 64], sizes = [2, 32], strides = [1, 1]} : vector<2x128xf32> to vector<2x32xf32>
    %252 = math.tanh %251 : vector<2x32xf32>
    %253 = vector.extract_strided_slice %238 {offsets = [0, 96], sizes = [2, 32], strides = [1, 1]} : vector<2x128xf32> to vector<2x32xf32>
    %254 = arith.negf %253 : vector<2x32xf32>
    %255 = math.exp %254 : vector<2x32xf32>
    %cst_54 = arith.constant 1.000000e+00 : f32
    %256 = vector.broadcast %cst_54 : f32 to vector<2x32xf32>
    %257 = arith.addf %256, %255 : vector<2x32xf32>
    %258 = arith.divf %256, %257 : vector<2x32xf32>
    %259 = arith.mulf %250, %197 : vector<2x32xf32>
    %260 = arith.mulf %244, %252 : vector<2x32xf32>
    %261 = arith.addf %259, %260 : vector<2x32xf32>
    %262 = math.tanh %261 : vector<2x32xf32>
    %263 = arith.mulf %258, %262 : vector<2x32xf32>
    %264 = arith.select %10, %263, %196 : vector<2x32xi1>, vector<2x32xf32>
    %265 = arith.select %10, %261, %197 : vector<2x32xi1>, vector<2x32xf32>
    %cst_55 = arith.constant 0.000000e+00 : f32
    %266 = vector.broadcast %cst_55 : f32 to vector<2x32xf32>
    %267 = arith.select %10, %263, %266 : vector<2x32xi1>, vector<2x32xf32>
    %c6 = arith.constant 6 : index
    %c0_56 = arith.constant 0 : index
    %268 = vector.load %arg15[%c6, %c0_56] : memref<16x64xf32, #tpu.memory_space<vmem>>, vector<2x32xf32>
    tpu.vector_store %arg15[%c6, %c0_56], %267 {strides = array<i32>} : memref<16x64xf32, #tpu.memory_space<vmem>>, vector<2x32xf32>,
    %269 = vector.extract_strided_slice %24 {offsets = [8, 128], sizes = [2, 128], strides = [1, 1]} : vector<16x256xf32> to vector<2x128xf32>
    %270 = arith.truncf %230 : vector<2x32xf32> to vector<2x32xbf16>
    %cst_57 = arith.constant dense<0.000000e+00> : vector<2x128xf32>
    %271 = tpu.matmul %270, %26, %cst_57 {dimension_numbers = #tpu.dot_dimension_numbers<[1], [0], [0], [1], [0, 0, 1, 1], [], []>} : vector<2x32xbf16>, vector<32x128xbf16>, vector<2x128xf32> -> vector<2x128xf32>
    %272 = arith.addf %269, %271 : vector<2x128xf32>
    %273 = vector.extract_strided_slice %272 {offsets = [0, 0], sizes = [2, 32], strides = [1, 1]} : vector<2x128xf32> to vector<2x32xf32>
    %274 = arith.negf %273 : vector<2x32xf32>
    %275 = math.exp %274 : vector<2x32xf32>
    %cst_58 = arith.constant 1.000000e+00 : f32
    %276 = vector.broadcast %cst_58 : f32 to vector<2x32xf32>
    %277 = arith.addf %276, %275 : vector<2x32xf32>
    %278 = arith.divf %276, %277 : vector<2x32xf32>
    %279 = vector.extract_strided_slice %272 {offsets = [0, 32], sizes = [2, 32], strides = [1, 1]} : vector<2x128xf32> to vector<2x32xf32>
    %280 = arith.negf %279 : vector<2x32xf32>
    %281 = math.exp %280 : vector<2x32xf32>
    %cst_59 = arith.constant 1.000000e+00 : f32
    %282 = vector.broadcast %cst_59 : f32 to vector<2x32xf32>
    %283 = arith.addf %282, %281 : vector<2x32xf32>
    %284 = arith.divf %282, %283 : vector<2x32xf32>
    %285 = vector.extract_strided_slice %272 {offsets = [0, 64], sizes = [2, 32], strides = [1, 1]} : vector<2x128xf32> to vector<2x32xf32>
    %286 = math.tanh %285 : vector<2x32xf32>
    %287 = vector.extract_strided_slice %272 {offsets = [0, 96], sizes = [2, 32], strides = [1, 1]} : vector<2x128xf32> to vector<2x32xf32>
    %288 = arith.negf %287 : vector<2x32xf32>
    %289 = math.exp %288 : vector<2x32xf32>
    %cst_60 = arith.constant 1.000000e+00 : f32
    %290 = vector.broadcast %cst_60 : f32 to vector<2x32xf32>
    %291 = arith.addf %290, %289 : vector<2x32xf32>
    %292 = arith.divf %290, %291 : vector<2x32xf32>
    %293 = arith.mulf %284, %231 : vector<2x32xf32>
    %294 = arith.mulf %278, %286 : vector<2x32xf32>
    %295 = arith.addf %293, %294 : vector<2x32xf32>
    %296 = math.tanh %295 : vector<2x32xf32>
    %297 = arith.mulf %292, %296 : vector<2x32xf32>
    %298 = arith.select %12, %297, %230 : vector<2x32xi1>, vector<2x32xf32>
    %299 = arith.select %12, %295, %231 : vector<2x32xi1>, vector<2x32xf32>
    %cst_61 = arith.constant 0.000000e+00 : f32
    %300 = vector.broadcast %cst_61 : f32 to vector<2x32xf32>
    %301 = arith.select %12, %297, %300 : vector<2x32xi1>, vector<2x32xf32>
    %c8 = arith.constant 8 : index
    %c32_62 = arith.constant 32 : index
    %302 = vector.load %arg15[%c8, %c32_62] : memref<16x64xf32, #tpu.memory_space<vmem>>, vector<2x32xf32>
    tpu.vector_store %arg15[%c8, %c32_62], %301 {strides = array<i32>} : memref<16x64xf32, #tpu.memory_space<vmem>>, vector<2x32xf32>,
    %303 = vector.extract_strided_slice %24 {offsets = [8, 0], sizes = [2, 128], strides = [1, 1]} : vector<16x256xf32> to vector<2x128xf32>
    %304 = arith.truncf %264 : vector<2x32xf32> to vector<2x32xbf16>
    %cst_63 = arith.constant dense<0.000000e+00> : vector<2x128xf32>
    %305 = tpu.matmul %304, %25, %cst_63 {dimension_numbers = #tpu.dot_dimension_numbers<[1], [0], [0], [1], [0, 0, 1, 1], [], []>} : vector<2x32xbf16>, vector<32x128xbf16>, vector<2x128xf32> -> vector<2x128xf32>
    %306 = arith.addf %303, %305 : vector<2x128xf32>
    %307 = vector.extract_strided_slice %306 {offsets = [0, 0], sizes = [2, 32], strides = [1, 1]} : vector<2x128xf32> to vector<2x32xf32>
    %308 = arith.negf %307 : vector<2x32xf32>
    %309 = math.exp %308 : vector<2x32xf32>
    %cst_64 = arith.constant 1.000000e+00 : f32
    %310 = vector.broadcast %cst_64 : f32 to vector<2x32xf32>
    %311 = arith.addf %310, %309 : vector<2x32xf32>
    %312 = arith.divf %310, %311 : vector<2x32xf32>
    %313 = vector.extract_strided_slice %306 {offsets = [0, 32], sizes = [2, 32], strides = [1, 1]} : vector<2x128xf32> to vector<2x32xf32>
    %314 = arith.negf %313 : vector<2x32xf32>
    %315 = math.exp %314 : vector<2x32xf32>
    %cst_65 = arith.constant 1.000000e+00 : f32
    %316 = vector.broadcast %cst_65 : f32 to vector<2x32xf32>
    %317 = arith.addf %316, %315 : vector<2x32xf32>
    %318 = arith.divf %316, %317 : vector<2x32xf32>
    %319 = vector.extract_strided_slice %306 {offsets = [0, 64], sizes = [2, 32], strides = [1, 1]} : vector<2x128xf32> to vector<2x32xf32>
    %320 = math.tanh %319 : vector<2x32xf32>
    %321 = vector.extract_strided_slice %306 {offsets = [0, 96], sizes = [2, 32], strides = [1, 1]} : vector<2x128xf32> to vector<2x32xf32>
    %322 = arith.negf %321 : vector<2x32xf32>
    %323 = math.exp %322 : vector<2x32xf32>
    %cst_66 = arith.constant 1.000000e+00 : f32
    %324 = vector.broadcast %cst_66 : f32 to vector<2x32xf32>
    %325 = arith.addf %324, %323 : vector<2x32xf32>
    %326 = arith.divf %324, %325 : vector<2x32xf32>
    %327 = arith.mulf %318, %265 : vector<2x32xf32>
    %328 = arith.mulf %312, %320 : vector<2x32xf32>
    %329 = arith.addf %327, %328 : vector<2x32xf32>
    %330 = math.tanh %329 : vector<2x32xf32>
    %331 = arith.mulf %326, %330 : vector<2x32xf32>
    %332 = arith.select %12, %331, %264 : vector<2x32xi1>, vector<2x32xf32>
    %333 = arith.select %12, %329, %265 : vector<2x32xi1>, vector<2x32xf32>
    %cst_67 = arith.constant 0.000000e+00 : f32
    %334 = vector.broadcast %cst_67 : f32 to vector<2x32xf32>
    %335 = arith.select %12, %331, %334 : vector<2x32xi1>, vector<2x32xf32>
    %c8_68 = arith.constant 8 : index
    %c0_69 = arith.constant 0 : index
    %336 = vector.load %arg15[%c8_68, %c0_69] : memref<16x64xf32, #tpu.memory_space<vmem>>, vector<2x32xf32>
    tpu.vector_store %arg15[%c8_68, %c0_69], %335 {strides = array<i32>} : memref<16x64xf32, #tpu.memory_space<vmem>>, vector<2x32xf32>,
    %337 = vector.extract_strided_slice %24 {offsets = [6, 128], sizes = [2, 128], strides = [1, 1]} : vector<16x256xf32> to vector<2x128xf32>
    %338 = arith.truncf %298 : vector<2x32xf32> to vector<2x32xbf16>
    %cst_70 = arith.constant dense<0.000000e+00> : vector<2x128xf32>
    %339 = tpu.matmul %338, %26, %cst_70 {dimension_numbers = #tpu.dot_dimension_numbers<[1], [0], [0], [1], [0, 0, 1, 1], [], []>} : vector<2x32xbf16>, vector<32x128xbf16>, vector<2x128xf32> -> vector<2x128xf32>
    %340 = arith.addf %337, %339 : vector<2x128xf32>
    %341 = vector.extract_strided_slice %340 {offsets = [0, 0], sizes = [2, 32], strides = [1, 1]} : vector<2x128xf32> to vector<2x32xf32>
    %342 = arith.negf %341 : vector<2x32xf32>
    %343 = math.exp %342 : vector<2x32xf32>
    %cst_71 = arith.constant 1.000000e+00 : f32
    %344 = vector.broadcast %cst_71 : f32 to vector<2x32xf32>
    %345 = arith.addf %344, %343 : vector<2x32xf32>
    %346 = arith.divf %344, %345 : vector<2x32xf32>
    %347 = vector.extract_strided_slice %340 {offsets = [0, 32], sizes = [2, 32], strides = [1, 1]} : vector<2x128xf32> to vector<2x32xf32>
    %348 = arith.negf %347 : vector<2x32xf32>
    %349 = math.exp %348 : vector<2x32xf32>
    %cst_72 = arith.constant 1.000000e+00 : f32
    %350 = vector.broadcast %cst_72 : f32 to vector<2x32xf32>
    %351 = arith.addf %350, %349 : vector<2x32xf32>
    %352 = arith.divf %350, %351 : vector<2x32xf32>
    %353 = vector.extract_strided_slice %340 {offsets = [0, 64], sizes = [2, 32], strides = [1, 1]} : vector<2x128xf32> to vector<2x32xf32>
    %354 = math.tanh %353 : vector<2x32xf32>
    %355 = vector.extract_strided_slice %340 {offsets = [0, 96], sizes = [2, 32], strides = [1, 1]} : vector<2x128xf32> to vector<2x32xf32>
    %356 = arith.negf %355 : vector<2x32xf32>
    %357 = math.exp %356 : vector<2x32xf32>
    %cst_73 = arith.constant 1.000000e+00 : f32
    %358 = vector.broadcast %cst_73 : f32 to vector<2x32xf32>
    %359 = arith.addf %358, %357 : vector<2x32xf32>
    %360 = arith.divf %358, %359 : vector<2x32xf32>
    %361 = arith.mulf %352, %299 : vector<2x32xf32>
    %362 = arith.mulf %346, %354 : vector<2x32xf32>
    %363 = arith.addf %361, %362 : vector<2x32xf32>
    %364 = math.tanh %363 : vector<2x32xf32>
    %365 = arith.mulf %360, %364 : vector<2x32xf32>
    %366 = arith.select %10, %365, %298 : vector<2x32xi1>, vector<2x32xf32>
    %367 = arith.select %10, %363, %299 : vector<2x32xi1>, vector<2x32xf32>
    %cst_74 = arith.constant 0.000000e+00 : f32
    %368 = vector.broadcast %cst_74 : f32 to vector<2x32xf32>
    %369 = arith.select %10, %365, %368 : vector<2x32xi1>, vector<2x32xf32>
    %c6_75 = arith.constant 6 : index
    %c32_76 = arith.constant 32 : index
    %370 = vector.load %arg15[%c6_75, %c32_76] : memref<16x64xf32, #tpu.memory_space<vmem>>, vector<2x32xf32>
    tpu.vector_store %arg15[%c6_75, %c32_76], %369 {strides = array<i32>} : memref<16x64xf32, #tpu.memory_space<vmem>>, vector<2x32xf32>,
    %371 = vector.extract_strided_slice %24 {offsets = [10, 0], sizes = [2, 128], strides = [1, 1]} : vector<16x256xf32> to vector<2x128xf32>
    %372 = arith.truncf %332 : vector<2x32xf32> to vector<2x32xbf16>
    %cst_77 = arith.constant dense<0.000000e+00> : vector<2x128xf32>
    %373 = tpu.matmul %372, %25, %cst_77 {dimension_numbers = #tpu.dot_dimension_numbers<[1], [0], [0], [1], [0, 0, 1, 1], [], []>} : vector<2x32xbf16>, vector<32x128xbf16>, vector<2x128xf32> -> vector<2x128xf32>
    %374 = arith.addf %371, %373 : vector<2x128xf32>
    %375 = vector.extract_strided_slice %374 {offsets = [0, 0], sizes = [2, 32], strides = [1, 1]} : vector<2x128xf32> to vector<2x32xf32>
    %376 = arith.negf %375 : vector<2x32xf32>
    %377 = math.exp %376 : vector<2x32xf32>
    %cst_78 = arith.constant 1.000000e+00 : f32
    %378 = vector.broadcast %cst_78 : f32 to vector<2x32xf32>
    %379 = arith.addf %378, %377 : vector<2x32xf32>
    %380 = arith.divf %378, %379 : vector<2x32xf32>
    %381 = vector.extract_strided_slice %374 {offsets = [0, 32], sizes = [2, 32], strides = [1, 1]} : vector<2x128xf32> to vector<2x32xf32>
    %382 = arith.negf %381 : vector<2x32xf32>
    %383 = math.exp %382 : vector<2x32xf32>
    %cst_79 = arith.constant 1.000000e+00 : f32
    %384 = vector.broadcast %cst_79 : f32 to vector<2x32xf32>
    %385 = arith.addf %384, %383 : vector<2x32xf32>
    %386 = arith.divf %384, %385 : vector<2x32xf32>
    %387 = vector.extract_strided_slice %374 {offsets = [0, 64], sizes = [2, 32], strides = [1, 1]} : vector<2x128xf32> to vector<2x32xf32>
    %388 = math.tanh %387 : vector<2x32xf32>
    %389 = vector.extract_strided_slice %374 {offsets = [0, 96], sizes = [2, 32], strides = [1, 1]} : vector<2x128xf32> to vector<2x32xf32>
    %390 = arith.negf %389 : vector<2x32xf32>
    %391 = math.exp %390 : vector<2x32xf32>
    %cst_80 = arith.constant 1.000000e+00 : f32
    %392 = vector.broadcast %cst_80 : f32 to vector<2x32xf32>
    %393 = arith.addf %392, %391 : vector<2x32xf32>
    %394 = arith.divf %392, %393 : vector<2x32xf32>
    %395 = arith.mulf %386, %333 : vector<2x32xf32>
    %396 = arith.mulf %380, %388 : vector<2x32xf32>
    %397 = arith.addf %395, %396 : vector<2x32xf32>
    %398 = math.tanh %397 : vector<2x32xf32>
    %399 = arith.mulf %394, %398 : vector<2x32xf32>
    %400 = arith.select %14, %399, %332 : vector<2x32xi1>, vector<2x32xf32>
    %401 = arith.select %14, %397, %333 : vector<2x32xi1>, vector<2x32xf32>
    %cst_81 = arith.constant 0.000000e+00 : f32
    %402 = vector.broadcast %cst_81 : f32 to vector<2x32xf32>
    %403 = arith.select %14, %399, %402 : vector<2x32xi1>, vector<2x32xf32>
    %c10_82 = arith.constant 10 : index
    %c0_83 = arith.constant 0 : index
    %404 = vector.load %arg15[%c10_82, %c0_83] : memref<16x64xf32, #tpu.memory_space<vmem>>, vector<2x32xf32>
    tpu.vector_store %arg15[%c10_82, %c0_83], %403 {strides = array<i32>} : memref<16x64xf32, #tpu.memory_space<vmem>>, vector<2x32xf32>,
    %405 = vector.extract_strided_slice %24 {offsets = [4, 128], sizes = [2, 128], strides = [1, 1]} : vector<16x256xf32> to vector<2x128xf32>
    %406 = arith.truncf %366 : vector<2x32xf32> to vector<2x32xbf16>
    %cst_84 = arith.constant dense<0.000000e+00> : vector<2x128xf32>
    %407 = tpu.matmul %406, %26, %cst_84 {dimension_numbers = #tpu.dot_dimension_numbers<[1], [0], [0], [1], [0, 0, 1, 1], [], []>} : vector<2x32xbf16>, vector<32x128xbf16>, vector<2x128xf32> -> vector<2x128xf32>
    %408 = arith.addf %405, %407 : vector<2x128xf32>
    %409 = vector.extract_strided_slice %408 {offsets = [0, 0], sizes = [2, 32], strides = [1, 1]} : vector<2x128xf32> to vector<2x32xf32>
    %410 = arith.negf %409 : vector<2x32xf32>
    %411 = math.exp %410 : vector<2x32xf32>
    %cst_85 = arith.constant 1.000000e+00 : f32
    %412 = vector.broadcast %cst_85 : f32 to vector<2x32xf32>
    %413 = arith.addf %412, %411 : vector<2x32xf32>
    %414 = arith.divf %412, %413 : vector<2x32xf32>
    %415 = vector.extract_strided_slice %408 {offsets = [0, 32], sizes = [2, 32], strides = [1, 1]} : vector<2x128xf32> to vector<2x32xf32>
    %416 = arith.negf %415 : vector<2x32xf32>
    %417 = math.exp %416 : vector<2x32xf32>
    %cst_86 = arith.constant 1.000000e+00 : f32
    %418 = vector.broadcast %cst_86 : f32 to vector<2x32xf32>
    %419 = arith.addf %418, %417 : vector<2x32xf32>
    %420 = arith.divf %418, %419 : vector<2x32xf32>
    %421 = vector.extract_strided_slice %408 {offsets = [0, 64], sizes = [2, 32], strides = [1, 1]} : vector<2x128xf32> to vector<2x32xf32>
    %422 = math.tanh %421 : vector<2x32xf32>
    %423 = vector.extract_strided_slice %408 {offsets = [0, 96], sizes = [2, 32], strides = [1, 1]} : vector<2x128xf32> to vector<2x32xf32>
    %424 = arith.negf %423 : vector<2x32xf32>
    %425 = math.exp %424 : vector<2x32xf32>
    %cst_87 = arith.constant 1.000000e+00 : f32
    %426 = vector.broadcast %cst_87 : f32 to vector<2x32xf32>
    %427 = arith.addf %426, %425 : vector<2x32xf32>
    %428 = arith.divf %426, %427 : vector<2x32xf32>
    %429 = arith.mulf %420, %367 : vector<2x32xf32>
    %430 = arith.mulf %414, %422 : vector<2x32xf32>
    %431 = arith.addf %429, %430 : vector<2x32xf32>
    %432 = math.tanh %431 : vector<2x32xf32>
    %433 = arith.mulf %428, %432 : vector<2x32xf32>
    %434 = arith.select %8, %433, %366 : vector<2x32xi1>, vector<2x32xf32>
    %435 = arith.select %8, %431, %367 : vector<2x32xi1>, vector<2x32xf32>
    %cst_88 = arith.constant 0.000000e+00 : f32
    %436 = vector.broadcast %cst_88 : f32 to vector<2x32xf32>
    %437 = arith.select %8, %433, %436 : vector<2x32xi1>, vector<2x32xf32>
    %c4_89 = arith.constant 4 : index
    %c32_90 = arith.constant 32 : index
    %438 = vector.load %arg15[%c4_89, %c32_90] : memref<16x64xf32, #tpu.memory_space<vmem>>, vector<2x32xf32>
    tpu.vector_store %arg15[%c4_89, %c32_90], %437 {strides = array<i32>} : memref<16x64xf32, #tpu.memory_space<vmem>>, vector<2x32xf32>,
    %439 = vector.extract_strided_slice %24 {offsets = [12, 0], sizes = [2, 128], strides = [1, 1]} : vector<16x256xf32> to vector<2x128xf32>
    %440 = arith.truncf %400 : vector<2x32xf32> to vector<2x32xbf16>
    %cst_91 = arith.constant dense<0.000000e+00> : vector<2x128xf32>
    %441 = tpu.matmul %440, %25, %cst_91 {dimension_numbers = #tpu.dot_dimension_numbers<[1], [0], [0], [1], [0, 0, 1, 1], [], []>} : vector<2x32xbf16>, vector<32x128xbf16>, vector<2x128xf32> -> vector<2x128xf32>
    %442 = arith.addf %439, %441 : vector<2x128xf32>
    %443 = vector.extract_strided_slice %442 {offsets = [0, 0], sizes = [2, 32], strides = [1, 1]} : vector<2x128xf32> to vector<2x32xf32>
    %444 = arith.negf %443 : vector<2x32xf32>
    %445 = math.exp %444 : vector<2x32xf32>
    %cst_92 = arith.constant 1.000000e+00 : f32
    %446 = vector.broadcast %cst_92 : f32 to vector<2x32xf32>
    %447 = arith.addf %446, %445 : vector<2x32xf32>
    %448 = arith.divf %446, %447 : vector<2x32xf32>
    %449 = vector.extract_strided_slice %442 {offsets = [0, 32], sizes = [2, 32], strides = [1, 1]} : vector<2x128xf32> to vector<2x32xf32>
    %450 = arith.negf %449 : vector<2x32xf32>
    %451 = math.exp %450 : vector<2x32xf32>
    %cst_93 = arith.constant 1.000000e+00 : f32
    %452 = vector.broadcast %cst_93 : f32 to vector<2x32xf32>
    %453 = arith.addf %452, %451 : vector<2x32xf32>
    %454 = arith.divf %452, %453 : vector<2x32xf32>
    %455 = vector.extract_strided_slice %442 {offsets = [0, 64], sizes = [2, 32], strides = [1, 1]} : vector<2x128xf32> to vector<2x32xf32>
    %456 = math.tanh %455 : vector<2x32xf32>
    %457 = vector.extract_strided_slice %442 {offsets = [0, 96], sizes = [2, 32], strides = [1, 1]} : vector<2x128xf32> to vector<2x32xf32>
    %458 = arith.negf %457 : vector<2x32xf32>
    %459 = math.exp %458 : vector<2x32xf32>
    %cst_94 = arith.constant 1.000000e+00 : f32
    %460 = vector.broadcast %cst_94 : f32 to vector<2x32xf32>
    %461 = arith.addf %460, %459 : vector<2x32xf32>
    %462 = arith.divf %460, %461 : vector<2x32xf32>
    %463 = arith.mulf %454, %401 : vector<2x32xf32>
    %464 = arith.mulf %448, %456 : vector<2x32xf32>
    %465 = arith.addf %463, %464 : vector<2x32xf32>
    %466 = math.tanh %465 : vector<2x32xf32>
    %467 = arith.mulf %462, %466 : vector<2x32xf32>
    %468 = arith.select %16, %467, %400 : vector<2x32xi1>, vector<2x32xf32>
    %469 = arith.select %16, %465, %401 : vector<2x32xi1>, vector<2x32xf32>
    %cst_95 = arith.constant 0.000000e+00 : f32
    %470 = vector.broadcast %cst_95 : f32 to vector<2x32xf32>
    %471 = arith.select %16, %467, %470 : vector<2x32xi1>, vector<2x32xf32>
    %c12_96 = arith.constant 12 : index
    %c0_97 = arith.constant 0 : index
    %472 = vector.load %arg15[%c12_96, %c0_97] : memref<16x64xf32, #tpu.memory_space<vmem>>, vector<2x32xf32>
    tpu.vector_store %arg15[%c12_96, %c0_97], %471 {strides = array<i32>} : memref<16x64xf32, #tpu.memory_space<vmem>>, vector<2x32xf32>,
    %473 = vector.extract_strided_slice %24 {offsets = [2, 128], sizes = [2, 128], strides = [1, 1]} : vector<16x256xf32> to vector<2x128xf32>
    %474 = arith.truncf %434 : vector<2x32xf32> to vector<2x32xbf16>
    %cst_98 = arith.constant dense<0.000000e+00> : vector<2x128xf32>
    %475 = tpu.matmul %474, %26, %cst_98 {dimension_numbers = #tpu.dot_dimension_numbers<[1], [0], [0], [1], [0, 0, 1, 1], [], []>} : vector<2x32xbf16>, vector<32x128xbf16>, vector<2x128xf32> -> vector<2x128xf32>
    %476 = arith.addf %473, %475 : vector<2x128xf32>
    %477 = vector.extract_strided_slice %476 {offsets = [0, 0], sizes = [2, 32], strides = [1, 1]} : vector<2x128xf32> to vector<2x32xf32>
    %478 = arith.negf %477 : vector<2x32xf32>
    %479 = math.exp %478 : vector<2x32xf32>
    %cst_99 = arith.constant 1.000000e+00 : f32
    %480 = vector.broadcast %cst_99 : f32 to vector<2x32xf32>
    %481 = arith.addf %480, %479 : vector<2x32xf32>
    %482 = arith.divf %480, %481 : vector<2x32xf32>
    %483 = vector.extract_strided_slice %476 {offsets = [0, 32], sizes = [2, 32], strides = [1, 1]} : vector<2x128xf32> to vector<2x32xf32>
    %484 = arith.negf %483 : vector<2x32xf32>
    %485 = math.exp %484 : vector<2x32xf32>
    %cst_100 = arith.constant 1.000000e+00 : f32
    %486 = vector.broadcast %cst_100 : f32 to vector<2x32xf32>
    %487 = arith.addf %486, %485 : vector<2x32xf32>
    %488 = arith.divf %486, %487 : vector<2x32xf32>
    %489 = vector.extract_strided_slice %476 {offsets = [0, 64], sizes = [2, 32], strides = [1, 1]} : vector<2x128xf32> to vector<2x32xf32>
    %490 = math.tanh %489 : vector<2x32xf32>
    %491 = vector.extract_strided_slice %476 {offsets = [0, 96], sizes = [2, 32], strides = [1, 1]} : vector<2x128xf32> to vector<2x32xf32>
    %492 = arith.negf %491 : vector<2x32xf32>
    %493 = math.exp %492 : vector<2x32xf32>
    %cst_101 = arith.constant 1.000000e+00 : f32
    %494 = vector.broadcast %cst_101 : f32 to vector<2x32xf32>
    %495 = arith.addf %494, %493 : vector<2x32xf32>
    %496 = arith.divf %494, %495 : vector<2x32xf32>
    %497 = arith.mulf %488, %435 : vector<2x32xf32>
    %498 = arith.mulf %482, %490 : vector<2x32xf32>
    %499 = arith.addf %497, %498 : vector<2x32xf32>
    %500 = math.tanh %499 : vector<2x32xf32>
    %501 = arith.mulf %496, %500 : vector<2x32xf32>
    %502 = arith.select %6, %501, %434 : vector<2x32xi1>, vector<2x32xf32>
    %503 = arith.select %6, %499, %435 : vector<2x32xi1>, vector<2x32xf32>
    %cst_102 = arith.constant 0.000000e+00 : f32
    %504 = vector.broadcast %cst_102 : f32 to vector<2x32xf32>
    %505 = arith.select %6, %501, %504 : vector<2x32xi1>, vector<2x32xf32>
    %c2_103 = arith.constant 2 : index
    %c32_104 = arith.constant 32 : index
    %506 = vector.load %arg15[%c2_103, %c32_104] : memref<16x64xf32, #tpu.memory_space<vmem>>, vector<2x32xf32>
    tpu.vector_store %arg15[%c2_103, %c32_104], %505 {strides = array<i32>} : memref<16x64xf32, #tpu.memory_space<vmem>>, vector<2x32xf32>,
    %507 = vector.extract_strided_slice %24 {offsets = [14, 0], sizes = [2, 128], strides = [1, 1]} : vector<16x256xf32> to vector<2x128xf32>
    %508 = arith.truncf %468 : vector<2x32xf32> to vector<2x32xbf16>
    %cst_105 = arith.constant dense<0.000000e+00> : vector<2x128xf32>
    %509 = tpu.matmul %508, %25, %cst_105 {dimension_numbers = #tpu.dot_dimension_numbers<[1], [0], [0], [1], [0, 0, 1, 1], [], []>} : vector<2x32xbf16>, vector<32x128xbf16>, vector<2x128xf32> -> vector<2x128xf32>
    %510 = arith.addf %507, %509 : vector<2x128xf32>
    %511 = vector.extract_strided_slice %510 {offsets = [0, 0], sizes = [2, 32], strides = [1, 1]} : vector<2x128xf32> to vector<2x32xf32>
    %512 = arith.negf %511 : vector<2x32xf32>
    %513 = math.exp %512 : vector<2x32xf32>
    %cst_106 = arith.constant 1.000000e+00 : f32
    %514 = vector.broadcast %cst_106 : f32 to vector<2x32xf32>
    %515 = arith.addf %514, %513 : vector<2x32xf32>
    %516 = arith.divf %514, %515 : vector<2x32xf32>
    %517 = vector.extract_strided_slice %510 {offsets = [0, 32], sizes = [2, 32], strides = [1, 1]} : vector<2x128xf32> to vector<2x32xf32>
    %518 = arith.negf %517 : vector<2x32xf32>
    %519 = math.exp %518 : vector<2x32xf32>
    %cst_107 = arith.constant 1.000000e+00 : f32
    %520 = vector.broadcast %cst_107 : f32 to vector<2x32xf32>
    %521 = arith.addf %520, %519 : vector<2x32xf32>
    %522 = arith.divf %520, %521 : vector<2x32xf32>
    %523 = vector.extract_strided_slice %510 {offsets = [0, 64], sizes = [2, 32], strides = [1, 1]} : vector<2x128xf32> to vector<2x32xf32>
    %524 = math.tanh %523 : vector<2x32xf32>
    %525 = vector.extract_strided_slice %510 {offsets = [0, 96], sizes = [2, 32], strides = [1, 1]} : vector<2x128xf32> to vector<2x32xf32>
    %526 = arith.negf %525 : vector<2x32xf32>
    %527 = math.exp %526 : vector<2x32xf32>
    %cst_108 = arith.constant 1.000000e+00 : f32
    %528 = vector.broadcast %cst_108 : f32 to vector<2x32xf32>
    %529 = arith.addf %528, %527 : vector<2x32xf32>
    %530 = arith.divf %528, %529 : vector<2x32xf32>
    %531 = arith.mulf %522, %469 : vector<2x32xf32>
    %532 = arith.mulf %516, %524 : vector<2x32xf32>
    %533 = arith.addf %531, %532 : vector<2x32xf32>
    %534 = math.tanh %533 : vector<2x32xf32>
    %535 = arith.mulf %530, %534 : vector<2x32xf32>
    %cst_109 = arith.constant 0.000000e+00 : f32
    %536 = vector.broadcast %cst_109 : f32 to vector<2x32xf32>
    %537 = arith.select %18, %535, %536 : vector<2x32xi1>, vector<2x32xf32>
    %c14_110 = arith.constant 14 : index
    %c0_111 = arith.constant 0 : index
    %538 = vector.load %arg15[%c14_110, %c0_111] : memref<16x64xf32, #tpu.memory_space<vmem>>, vector<2x32xf32>
    tpu.vector_store %arg15[%c14_110, %c0_111], %537 {strides = array<i32>} : memref<16x64xf32, #tpu.memory_space<vmem>>, vector<2x32xf32>,
    %539 = vector.extract_strided_slice %24 {offsets = [0, 128], sizes = [2, 128], strides = [1, 1]} : vector<16x256xf32> to vector<2x128xf32>
    %540 = arith.truncf %502 : vector<2x32xf32> to vector<2x32xbf16>
    %cst_112 = arith.constant dense<0.000000e+00> : vector<2x128xf32>
    %541 = tpu.matmul %540, %26, %cst_112 {dimension_numbers = #tpu.dot_dimension_numbers<[1], [0], [0], [1], [0, 0, 1, 1], [], []>} : vector<2x32xbf16>, vector<32x128xbf16>, vector<2x128xf32> -> vector<2x128xf32>
    %542 = arith.addf %539, %541 : vector<2x128xf32>
    %543 = vector.extract_strided_slice %542 {offsets = [0, 0], sizes = [2, 32], strides = [1, 1]} : vector<2x128xf32> to vector<2x32xf32>
    %544 = arith.negf %543 : vector<2x32xf32>
    %545 = math.exp %544 : vector<2x32xf32>
    %cst_113 = arith.constant 1.000000e+00 : f32
    %546 = vector.broadcast %cst_113 : f32 to vector<2x32xf32>
    %547 = arith.addf %546, %545 : vector<2x32xf32>
    %548 = arith.divf %546, %547 : vector<2x32xf32>
    %549 = vector.extract_strided_slice %542 {offsets = [0, 32], sizes = [2, 32], strides = [1, 1]} : vector<2x128xf32> to vector<2x32xf32>
    %550 = arith.negf %549 : vector<2x32xf32>
    %551 = math.exp %550 : vector<2x32xf32>
    %cst_114 = arith.constant 1.000000e+00 : f32
    %552 = vector.broadcast %cst_114 : f32 to vector<2x32xf32>
    %553 = arith.addf %552, %551 : vector<2x32xf32>
    %554 = arith.divf %552, %553 : vector<2x32xf32>
    %555 = vector.extract_strided_slice %542 {offsets = [0, 64], sizes = [2, 32], strides = [1, 1]} : vector<2x128xf32> to vector<2x32xf32>
    %556 = math.tanh %555 : vector<2x32xf32>
    %557 = vector.extract_strided_slice %542 {offsets = [0, 96], sizes = [2, 32], strides = [1, 1]} : vector<2x128xf32> to vector<2x32xf32>
    %558 = arith.negf %557 : vector<2x32xf32>
    %559 = math.exp %558 : vector<2x32xf32>
    %cst_115 = arith.constant 1.000000e+00 : f32
    %560 = vector.broadcast %cst_115 : f32 to vector<2x32xf32>
    %561 = arith.addf %560, %559 : vector<2x32xf32>
    %562 = arith.divf %560, %561 : vector<2x32xf32>
    %563 = arith.mulf %554, %503 : vector<2x32xf32>
    %564 = arith.mulf %548, %556 : vector<2x32xf32>
    %565 = arith.addf %563, %564 : vector<2x32xf32>
    %566 = math.tanh %565 : vector<2x32xf32>
    %567 = arith.mulf %562, %566 : vector<2x32xf32>
    %cst_116 = arith.constant 0.000000e+00 : f32
    %568 = vector.broadcast %cst_116 : f32 to vector<2x32xf32>
    %569 = arith.select %4, %567, %568 : vector<2x32xi1>, vector<2x32xf32>
    %c0_117 = arith.constant 0 : index
    %c32_118 = arith.constant 32 : index
    %570 = vector.load %arg15[%c0_117, %c32_118] : memref<16x64xf32, #tpu.memory_space<vmem>>, vector<2x32xf32>
    tpu.vector_store %arg15[%c0_117, %c32_118], %569 {strides = array<i32>} : memref<16x64xf32, #tpu.memory_space<vmem>>, vector<2x32xf32>,
    %c0_119 = arith.constant 0 : index
    %c0_120 = arith.constant 0 : index
    %571 = vector.load %arg15[%c0_119, %c0_120] : memref<16x64xf32, #tpu.memory_space<vmem>>, vector<16x64xf32>
    %572 = arith.truncf %571 : vector<16x64xf32> to vector<16x64xbf16>
    %c0_121 = arith.constant 0 : index
    %c0_122 = arith.constant 0 : index
    %573 = vector.load %arg6[%c0_121, %c0_122] : memref<64x256xbf16, #tpu.memory_space<vmem>>, vector<64x256xbf16>
    %cst_123 = arith.constant dense<0.000000e+00> : vector<16x256xf32>
    %574 = tpu.matmul %572, %573, %cst_123 {dimension_numbers = #tpu.dot_dimension_numbers<[1], [0], [0], [1], [0, 0, 1, 1], [], []>} : vector<16x64xbf16>, vector<64x256xbf16>, vector<16x256xf32> -> vector<16x256xf32>
    %c0_124 = arith.constant 0 : index
    %c0_125 = arith.constant 0 : index
    %575 = vector.load %arg9[%c0_124, %c0_125] : memref<1x256xf32, #tpu.memory_space<vmem>>, vector<1x256xf32>
    %576 = vector.broadcast %575 : vector<1x256xf32> to vector<16x256xf32>
    %577 = arith.addf %574, %576 : vector<16x256xf32>
    %c0_126 = arith.constant 0 : index
    %c0_127 = arith.constant 0 : index
    %578 = vector.load %arg7[%c0_126, %c0_127] : memref<32x128xbf16, #tpu.memory_space<vmem>>, vector<32x128xbf16>
    %c0_128 = arith.constant 0 : index
    %c0_129 = arith.constant 0 : index
    %579 = vector.load %arg8[%c0_128, %c0_129] : memref<32x128xbf16, #tpu.memory_space<vmem>>, vector<32x128xbf16>
    %cst_130 = arith.constant 0.000000e+00 : f32
    %580 = vector.broadcast %cst_130 : f32 to vector<2x32xf32>
    %cst_131 = arith.constant 0.000000e+00 : f32
    %581 = vector.broadcast %cst_131 : f32 to vector<2x32xf32>
    %cst_132 = arith.constant 0.000000e+00 : f32
    %582 = vector.broadcast %cst_132 : f32 to vector<2x32xf32>
    %cst_133 = arith.constant 0.000000e+00 : f32
    %583 = vector.broadcast %cst_133 : f32 to vector<2x32xf32>
    %584 = vector.extract_strided_slice %577 {offsets = [0, 0], sizes = [2, 128], strides = [1, 1]} : vector<16x256xf32> to vector<2x128xf32>
    %585 = arith.truncf %580 : vector<2x32xf32> to vector<2x32xbf16>
    %cst_134 = arith.constant dense<0.000000e+00> : vector<2x128xf32>
    %586 = tpu.matmul %585, %578, %cst_134 {dimension_numbers = #tpu.dot_dimension_numbers<[1], [0], [0], [1], [0, 0, 1, 1], [], []>} : vector<2x32xbf16>, vector<32x128xbf16>, vector<2x128xf32> -> vector<2x128xf32>
    %587 = arith.addf %584, %586 : vector<2x128xf32>
    %588 = vector.extract_strided_slice %587 {offsets = [0, 0], sizes = [2, 32], strides = [1, 1]} : vector<2x128xf32> to vector<2x32xf32>
    %589 = arith.negf %588 : vector<2x32xf32>
    %590 = math.exp %589 : vector<2x32xf32>
    %cst_135 = arith.constant 1.000000e+00 : f32
    %591 = vector.broadcast %cst_135 : f32 to vector<2x32xf32>
    %592 = arith.addf %591, %590 : vector<2x32xf32>
    %593 = arith.divf %591, %592 : vector<2x32xf32>
    %594 = vector.extract_strided_slice %587 {offsets = [0, 32], sizes = [2, 32], strides = [1, 1]} : vector<2x128xf32> to vector<2x32xf32>
    %595 = arith.negf %594 : vector<2x32xf32>
    %596 = math.exp %595 : vector<2x32xf32>
    %cst_136 = arith.constant 1.000000e+00 : f32
    %597 = vector.broadcast %cst_136 : f32 to vector<2x32xf32>
    %598 = arith.addf %597, %596 : vector<2x32xf32>
    %599 = arith.divf %597, %598 : vector<2x32xf32>
    %600 = vector.extract_strided_slice %587 {offsets = [0, 64], sizes = [2, 32], strides = [1, 1]} : vector<2x128xf32> to vector<2x32xf32>
    %601 = math.tanh %600 : vector<2x32xf32>
    %602 = vector.extract_strided_slice %587 {offsets = [0, 96], sizes = [2, 32], strides = [1, 1]} : vector<2x128xf32> to vector<2x32xf32>
    %603 = arith.negf %602 : vector<2x32xf32>
    %604 = math.exp %603 : vector<2x32xf32>
    %cst_137 = arith.constant 1.000000e+00 : f32
    %605 = vector.broadcast %cst_137 : f32 to vector<2x32xf32>
    %606 = arith.addf %605, %604 : vector<2x32xf32>
    %607 = arith.divf %605, %606 : vector<2x32xf32>
    %608 = arith.mulf %599, %581 : vector<2x32xf32>
    %609 = arith.mulf %593, %601 : vector<2x32xf32>
    %610 = arith.addf %608, %609 : vector<2x32xf32>
    %611 = math.tanh %610 : vector<2x32xf32>
    %612 = arith.mulf %607, %611 : vector<2x32xf32>
    %613 = arith.select %4, %612, %580 : vector<2x32xi1>, vector<2x32xf32>
    %614 = arith.select %4, %610, %581 : vector<2x32xi1>, vector<2x32xf32>
    %cst_138 = arith.constant 0.000000e+00 : f32
    %615 = vector.broadcast %cst_138 : f32 to vector<2x32xf32>
    %616 = arith.select %4, %612, %615 : vector<2x32xi1>, vector<2x32xf32>
    %c0_139 = arith.constant 0 : index
    %c0_140 = arith.constant 0 : index
    %617 = vector.load %arg15[%c0_139, %c0_140] : memref<16x64xf32, #tpu.memory_space<vmem>>, vector<2x32xf32>
    tpu.vector_store %arg15[%c0_139, %c0_140], %616 {strides = array<i32>} : memref<16x64xf32, #tpu.memory_space<vmem>>, vector<2x32xf32>,
    %618 = vector.extract_strided_slice %577 {offsets = [14, 128], sizes = [2, 128], strides = [1, 1]} : vector<16x256xf32> to vector<2x128xf32>
    %619 = arith.truncf %582 : vector<2x32xf32> to vector<2x32xbf16>
    %cst_141 = arith.constant dense<0.000000e+00> : vector<2x128xf32>
    %620 = tpu.matmul %619, %579, %cst_141 {dimension_numbers = #tpu.dot_dimension_numbers<[1], [0], [0], [1], [0, 0, 1, 1], [], []>} : vector<2x32xbf16>, vector<32x128xbf16>, vector<2x128xf32> -> vector<2x128xf32>
    %621 = arith.addf %618, %620 : vector<2x128xf32>
    %622 = vector.extract_strided_slice %621 {offsets = [0, 0], sizes = [2, 32], strides = [1, 1]} : vector<2x128xf32> to vector<2x32xf32>
    %623 = arith.negf %622 : vector<2x32xf32>
    %624 = math.exp %623 : vector<2x32xf32>
    %cst_142 = arith.constant 1.000000e+00 : f32
    %625 = vector.broadcast %cst_142 : f32 to vector<2x32xf32>
    %626 = arith.addf %625, %624 : vector<2x32xf32>
    %627 = arith.divf %625, %626 : vector<2x32xf32>
    %628 = vector.extract_strided_slice %621 {offsets = [0, 32], sizes = [2, 32], strides = [1, 1]} : vector<2x128xf32> to vector<2x32xf32>
    %629 = arith.negf %628 : vector<2x32xf32>
    %630 = math.exp %629 : vector<2x32xf32>
    %cst_143 = arith.constant 1.000000e+00 : f32
    %631 = vector.broadcast %cst_143 : f32 to vector<2x32xf32>
    %632 = arith.addf %631, %630 : vector<2x32xf32>
    %633 = arith.divf %631, %632 : vector<2x32xf32>
    %634 = vector.extract_strided_slice %621 {offsets = [0, 64], sizes = [2, 32], strides = [1, 1]} : vector<2x128xf32> to vector<2x32xf32>
    %635 = math.tanh %634 : vector<2x32xf32>
    %636 = vector.extract_strided_slice %621 {offsets = [0, 96], sizes = [2, 32], strides = [1, 1]} : vector<2x128xf32> to vector<2x32xf32>
    %637 = arith.negf %636 : vector<2x32xf32>
    %638 = math.exp %637 : vector<2x32xf32>
    %cst_144 = arith.constant 1.000000e+00 : f32
    %639 = vector.broadcast %cst_144 : f32 to vector<2x32xf32>
    %640 = arith.addf %639, %638 : vector<2x32xf32>
    %641 = arith.divf %639, %640 : vector<2x32xf32>
    %642 = arith.mulf %633, %583 : vector<2x32xf32>
    %643 = arith.mulf %627, %635 : vector<2x32xf32>
    %644 = arith.addf %642, %643 : vector<2x32xf32>
    %645 = math.tanh %644 : vector<2x32xf32>
    %646 = arith.mulf %641, %645 : vector<2x32xf32>
    %647 = arith.select %18, %646, %582 : vector<2x32xi1>, vector<2x32xf32>
    %648 = arith.select %18, %644, %583 : vector<2x32xi1>, vector<2x32xf32>
    %cst_145 = arith.constant 0.000000e+00 : f32
    %649 = vector.broadcast %cst_145 : f32 to vector<2x32xf32>
    %650 = arith.select %18, %646, %649 : vector<2x32xi1>, vector<2x32xf32>
    %c14_146 = arith.constant 14 : index
    %c32_147 = arith.constant 32 : index
    %651 = vector.load %arg15[%c14_146, %c32_147] : memref<16x64xf32, #tpu.memory_space<vmem>>, vector<2x32xf32>
    tpu.vector_store %arg15[%c14_146, %c32_147], %650 {strides = array<i32>} : memref<16x64xf32, #tpu.memory_space<vmem>>, vector<2x32xf32>,
    %652 = vector.extract_strided_slice %577 {offsets = [2, 0], sizes = [2, 128], strides = [1, 1]} : vector<16x256xf32> to vector<2x128xf32>
    %653 = arith.truncf %613 : vector<2x32xf32> to vector<2x32xbf16>
    %cst_148 = arith.constant dense<0.000000e+00> : vector<2x128xf32>
    %654 = tpu.matmul %653, %578, %cst_148 {dimension_numbers = #tpu.dot_dimension_numbers<[1], [0], [0], [1], [0, 0, 1, 1], [], []>} : vector<2x32xbf16>, vector<32x128xbf16>, vector<2x128xf32> -> vector<2x128xf32>
    %655 = arith.addf %652, %654 : vector<2x128xf32>
    %656 = vector.extract_strided_slice %655 {offsets = [0, 0], sizes = [2, 32], strides = [1, 1]} : vector<2x128xf32> to vector<2x32xf32>
    %657 = arith.negf %656 : vector<2x32xf32>
    %658 = math.exp %657 : vector<2x32xf32>
    %cst_149 = arith.constant 1.000000e+00 : f32
    %659 = vector.broadcast %cst_149 : f32 to vector<2x32xf32>
    %660 = arith.addf %659, %658 : vector<2x32xf32>
    %661 = arith.divf %659, %660 : vector<2x32xf32>
    %662 = vector.extract_strided_slice %655 {offsets = [0, 32], sizes = [2, 32], strides = [1, 1]} : vector<2x128xf32> to vector<2x32xf32>
    %663 = arith.negf %662 : vector<2x32xf32>
    %664 = math.exp %663 : vector<2x32xf32>
    %cst_150 = arith.constant 1.000000e+00 : f32
    %665 = vector.broadcast %cst_150 : f32 to vector<2x32xf32>
    %666 = arith.addf %665, %664 : vector<2x32xf32>
    %667 = arith.divf %665, %666 : vector<2x32xf32>
    %668 = vector.extract_strided_slice %655 {offsets = [0, 64], sizes = [2, 32], strides = [1, 1]} : vector<2x128xf32> to vector<2x32xf32>
    %669 = math.tanh %668 : vector<2x32xf32>
    %670 = vector.extract_strided_slice %655 {offsets = [0, 96], sizes = [2, 32], strides = [1, 1]} : vector<2x128xf32> to vector<2x32xf32>
    %671 = arith.negf %670 : vector<2x32xf32>
    %672 = math.exp %671 : vector<2x32xf32>
    %cst_151 = arith.constant 1.000000e+00 : f32
    %673 = vector.broadcast %cst_151 : f32 to vector<2x32xf32>
    %674 = arith.addf %673, %672 : vector<2x32xf32>
    %675 = arith.divf %673, %674 : vector<2x32xf32>
    %676 = arith.mulf %667, %614 : vector<2x32xf32>
    %677 = arith.mulf %661, %669 : vector<2x32xf32>
    %678 = arith.addf %676, %677 : vector<2x32xf32>
    %679 = math.tanh %678 : vector<2x32xf32>
    %680 = arith.mulf %675, %679 : vector<2x32xf32>
    %681 = arith.select %6, %680, %613 : vector<2x32xi1>, vector<2x32xf32>
    %682 = arith.select %6, %678, %614 : vector<2x32xi1>, vector<2x32xf32>
    %cst_152 = arith.constant 0.000000e+00 : f32
    %683 = vector.broadcast %cst_152 : f32 to vector<2x32xf32>
    %684 = arith.select %6, %680, %683 : vector<2x32xi1>, vector<2x32xf32>
    %c2_153 = arith.constant 2 : index
    %c0_154 = arith.constant 0 : index
    %685 = vector.load %arg15[%c2_153, %c0_154] : memref<16x64xf32, #tpu.memory_space<vmem>>, vector<2x32xf32>
    tpu.vector_store %arg15[%c2_153, %c0_154], %684 {strides = array<i32>} : memref<16x64xf32, #tpu.memory_space<vmem>>, vector<2x32xf32>,
    %686 = vector.extract_strided_slice %577 {offsets = [12, 128], sizes = [2, 128], strides = [1, 1]} : vector<16x256xf32> to vector<2x128xf32>
    %687 = arith.truncf %647 : vector<2x32xf32> to vector<2x32xbf16>
    %cst_155 = arith.constant dense<0.000000e+00> : vector<2x128xf32>
    %688 = tpu.matmul %687, %579, %cst_155 {dimension_numbers = #tpu.dot_dimension_numbers<[1], [0], [0], [1], [0, 0, 1, 1], [], []>} : vector<2x32xbf16>, vector<32x128xbf16>, vector<2x128xf32> -> vector<2x128xf32>
    %689 = arith.addf %686, %688 : vector<2x128xf32>
    %690 = vector.extract_strided_slice %689 {offsets = [0, 0], sizes = [2, 32], strides = [1, 1]} : vector<2x128xf32> to vector<2x32xf32>
    %691 = arith.negf %690 : vector<2x32xf32>
    %692 = math.exp %691 : vector<2x32xf32>
    %cst_156 = arith.constant 1.000000e+00 : f32
    %693 = vector.broadcast %cst_156 : f32 to vector<2x32xf32>
    %694 = arith.addf %693, %692 : vector<2x32xf32>
    %695 = arith.divf %693, %694 : vector<2x32xf32>
    %696 = vector.extract_strided_slice %689 {offsets = [0, 32], sizes = [2, 32], strides = [1, 1]} : vector<2x128xf32> to vector<2x32xf32>
    %697 = arith.negf %696 : vector<2x32xf32>
    %698 = math.exp %697 : vector<2x32xf32>
    %cst_157 = arith.constant 1.000000e+00 : f32
    %699 = vector.broadcast %cst_157 : f32 to vector<2x32xf32>
    %700 = arith.addf %699, %698 : vector<2x32xf32>
    %701 = arith.divf %699, %700 : vector<2x32xf32>
    %702 = vector.extract_strided_slice %689 {offsets = [0, 64], sizes = [2, 32], strides = [1, 1]} : vector<2x128xf32> to vector<2x32xf32>
    %703 = math.tanh %702 : vector<2x32xf32>
    %704 = vector.extract_strided_slice %689 {offsets = [0, 96], sizes = [2, 32], strides = [1, 1]} : vector<2x128xf32> to vector<2x32xf32>
    %705 = arith.negf %704 : vector<2x32xf32>
    %706 = math.exp %705 : vector<2x32xf32>
    %cst_158 = arith.constant 1.000000e+00 : f32
    %707 = vector.broadcast %cst_158 : f32 to vector<2x32xf32>
    %708 = arith.addf %707, %706 : vector<2x32xf32>
    %709 = arith.divf %707, %708 : vector<2x32xf32>
    %710 = arith.mulf %701, %648 : vector<2x32xf32>
    %711 = arith.mulf %695, %703 : vector<2x32xf32>
    %712 = arith.addf %710, %711 : vector<2x32xf32>
    %713 = math.tanh %712 : vector<2x32xf32>
    %714 = arith.mulf %709, %713 : vector<2x32xf32>
    %715 = arith.select %16, %714, %647 : vector<2x32xi1>, vector<2x32xf32>
    %716 = arith.select %16, %712, %648 : vector<2x32xi1>, vector<2x32xf32>
    %cst_159 = arith.constant 0.000000e+00 : f32
    %717 = vector.broadcast %cst_159 : f32 to vector<2x32xf32>
    %718 = arith.select %16, %714, %717 : vector<2x32xi1>, vector<2x32xf32>
    %c12_160 = arith.constant 12 : index
    %c32_161 = arith.constant 32 : index
    %719 = vector.load %arg15[%c12_160, %c32_161] : memref<16x64xf32, #tpu.memory_space<vmem>>, vector<2x32xf32>
    tpu.vector_store %arg15[%c12_160, %c32_161], %718 {strides = array<i32>} : memref<16x64xf32, #tpu.memory_space<vmem>>, vector<2x32xf32>,
    %720 = vector.extract_strided_slice %577 {offsets = [4, 0], sizes = [2, 128], strides = [1, 1]} : vector<16x256xf32> to vector<2x128xf32>
    %721 = arith.truncf %681 : vector<2x32xf32> to vector<2x32xbf16>
    %cst_162 = arith.constant dense<0.000000e+00> : vector<2x128xf32>
    %722 = tpu.matmul %721, %578, %cst_162 {dimension_numbers = #tpu.dot_dimension_numbers<[1], [0], [0], [1], [0, 0, 1, 1], [], []>} : vector<2x32xbf16>, vector<32x128xbf16>, vector<2x128xf32> -> vector<2x128xf32>
    %723 = arith.addf %720, %722 : vector<2x128xf32>
    %724 = vector.extract_strided_slice %723 {offsets = [0, 0], sizes = [2, 32], strides = [1, 1]} : vector<2x128xf32> to vector<2x32xf32>
    %725 = arith.negf %724 : vector<2x32xf32>
    %726 = math.exp %725 : vector<2x32xf32>
    %cst_163 = arith.constant 1.000000e+00 : f32
    %727 = vector.broadcast %cst_163 : f32 to vector<2x32xf32>
    %728 = arith.addf %727, %726 : vector<2x32xf32>
    %729 = arith.divf %727, %728 : vector<2x32xf32>
    %730 = vector.extract_strided_slice %723 {offsets = [0, 32], sizes = [2, 32], strides = [1, 1]} : vector<2x128xf32> to vector<2x32xf32>
    %731 = arith.negf %730 : vector<2x32xf32>
    %732 = math.exp %731 : vector<2x32xf32>
    %cst_164 = arith.constant 1.000000e+00 : f32
    %733 = vector.broadcast %cst_164 : f32 to vector<2x32xf32>
    %734 = arith.addf %733, %732 : vector<2x32xf32>
    %735 = arith.divf %733, %734 : vector<2x32xf32>
    %736 = vector.extract_strided_slice %723 {offsets = [0, 64], sizes = [2, 32], strides = [1, 1]} : vector<2x128xf32> to vector<2x32xf32>
    %737 = math.tanh %736 : vector<2x32xf32>
    %738 = vector.extract_strided_slice %723 {offsets = [0, 96], sizes = [2, 32], strides = [1, 1]} : vector<2x128xf32> to vector<2x32xf32>
    %739 = arith.negf %738 : vector<2x32xf32>
    %740 = math.exp %739 : vector<2x32xf32>
    %cst_165 = arith.constant 1.000000e+00 : f32
    %741 = vector.broadcast %cst_165 : f32 to vector<2x32xf32>
    %742 = arith.addf %741, %740 : vector<2x32xf32>
    %743 = arith.divf %741, %742 : vector<2x32xf32>
    %744 = arith.mulf %735, %682 : vector<2x32xf32>
    %745 = arith.mulf %729, %737 : vector<2x32xf32>
    %746 = arith.addf %744, %745 : vector<2x32xf32>
    %747 = math.tanh %746 : vector<2x32xf32>
    %748 = arith.mulf %743, %747 : vector<2x32xf32>
    %749 = arith.select %8, %748, %681 : vector<2x32xi1>, vector<2x32xf32>
    %750 = arith.select %8, %746, %682 : vector<2x32xi1>, vector<2x32xf32>
    %cst_166 = arith.constant 0.000000e+00 : f32
    %751 = vector.broadcast %cst_166 : f32 to vector<2x32xf32>
    %752 = arith.select %8, %748, %751 : vector<2x32xi1>, vector<2x32xf32>
    %c4_167 = arith.constant 4 : index
    %c0_168 = arith.constant 0 : index
    %753 = vector.load %arg15[%c4_167, %c0_168] : memref<16x64xf32, #tpu.memory_space<vmem>>, vector<2x32xf32>
    tpu.vector_store %arg15[%c4_167, %c0_168], %752 {strides = array<i32>} : memref<16x64xf32, #tpu.memory_space<vmem>>, vector<2x32xf32>,
    %754 = vector.extract_strided_slice %577 {offsets = [10, 128], sizes = [2, 128], strides = [1, 1]} : vector<16x256xf32> to vector<2x128xf32>
    %755 = arith.truncf %715 : vector<2x32xf32> to vector<2x32xbf16>
    %cst_169 = arith.constant dense<0.000000e+00> : vector<2x128xf32>
    %756 = tpu.matmul %755, %579, %cst_169 {dimension_numbers = #tpu.dot_dimension_numbers<[1], [0], [0], [1], [0, 0, 1, 1], [], []>} : vector<2x32xbf16>, vector<32x128xbf16>, vector<2x128xf32> -> vector<2x128xf32>
    %757 = arith.addf %754, %756 : vector<2x128xf32>
    %758 = vector.extract_strided_slice %757 {offsets = [0, 0], sizes = [2, 32], strides = [1, 1]} : vector<2x128xf32> to vector<2x32xf32>
    %759 = arith.negf %758 : vector<2x32xf32>
    %760 = math.exp %759 : vector<2x32xf32>
    %cst_170 = arith.constant 1.000000e+00 : f32
    %761 = vector.broadcast %cst_170 : f32 to vector<2x32xf32>
    %762 = arith.addf %761, %760 : vector<2x32xf32>
    %763 = arith.divf %761, %762 : vector<2x32xf32>
    %764 = vector.extract_strided_slice %757 {offsets = [0, 32], sizes = [2, 32], strides = [1, 1]} : vector<2x128xf32> to vector<2x32xf32>
    %765 = arith.negf %764 : vector<2x32xf32>
    %766 = math.exp %765 : vector<2x32xf32>
    %cst_171 = arith.constant 1.000000e+00 : f32
    %767 = vector.broadcast %cst_171 : f32 to vector<2x32xf32>
    %768 = arith.addf %767, %766 : vector<2x32xf32>
    %769 = arith.divf %767, %768 : vector<2x32xf32>
    %770 = vector.extract_strided_slice %757 {offsets = [0, 64], sizes = [2, 32], strides = [1, 1]} : vector<2x128xf32> to vector<2x32xf32>
    %771 = math.tanh %770 : vector<2x32xf32>
    %772 = vector.extract_strided_slice %757 {offsets = [0, 96], sizes = [2, 32], strides = [1, 1]} : vector<2x128xf32> to vector<2x32xf32>
    %773 = arith.negf %772 : vector<2x32xf32>
    %774 = math.exp %773 : vector<2x32xf32>
    %cst_172 = arith.constant 1.000000e+00 : f32
    %775 = vector.broadcast %cst_172 : f32 to vector<2x32xf32>
    %776 = arith.addf %775, %774 : vector<2x32xf32>
    %777 = arith.divf %775, %776 : vector<2x32xf32>
    %778 = arith.mulf %769, %716 : vector<2x32xf32>
    %779 = arith.mulf %763, %771 : vector<2x32xf32>
    %780 = arith.addf %778, %779 : vector<2x32xf32>
    %781 = math.tanh %780 : vector<2x32xf32>
    %782 = arith.mulf %777, %781 : vector<2x32xf32>
    %783 = arith.select %14, %782, %715 : vector<2x32xi1>, vector<2x32xf32>
    %784 = arith.select %14, %780, %716 : vector<2x32xi1>, vector<2x32xf32>
    %cst_173 = arith.constant 0.000000e+00 : f32
    %785 = vector.broadcast %cst_173 : f32 to vector<2x32xf32>
    %786 = arith.select %14, %782, %785 : vector<2x32xi1>, vector<2x32xf32>
    %c10_174 = arith.constant 10 : index
    %c32_175 = arith.constant 32 : index
    %787 = vector.load %arg15[%c10_174, %c32_175] : memref<16x64xf32, #tpu.memory_space<vmem>>, vector<2x32xf32>
    tpu.vector_store %arg15[%c10_174, %c32_175], %786 {strides = array<i32>} : memref<16x64xf32, #tpu.memory_space<vmem>>, vector<2x32xf32>,
    %788 = vector.extract_strided_slice %577 {offsets = [6, 0], sizes = [2, 128], strides = [1, 1]} : vector<16x256xf32> to vector<2x128xf32>
    %789 = arith.truncf %749 : vector<2x32xf32> to vector<2x32xbf16>
    %cst_176 = arith.constant dense<0.000000e+00> : vector<2x128xf32>
    %790 = tpu.matmul %789, %578, %cst_176 {dimension_numbers = #tpu.dot_dimension_numbers<[1], [0], [0], [1], [0, 0, 1, 1], [], []>} : vector<2x32xbf16>, vector<32x128xbf16>, vector<2x128xf32> -> vector<2x128xf32>
    %791 = arith.addf %788, %790 : vector<2x128xf32>
    %792 = vector.extract_strided_slice %791 {offsets = [0, 0], sizes = [2, 32], strides = [1, 1]} : vector<2x128xf32> to vector<2x32xf32>
    %793 = arith.negf %792 : vector<2x32xf32>
    %794 = math.exp %793 : vector<2x32xf32>
    %cst_177 = arith.constant 1.000000e+00 : f32
    %795 = vector.broadcast %cst_177 : f32 to vector<2x32xf32>
    %796 = arith.addf %795, %794 : vector<2x32xf32>
    %797 = arith.divf %795, %796 : vector<2x32xf32>
    %798 = vector.extract_strided_slice %791 {offsets = [0, 32], sizes = [2, 32], strides = [1, 1]} : vector<2x128xf32> to vector<2x32xf32>
    %799 = arith.negf %798 : vector<2x32xf32>
    %800 = math.exp %799 : vector<2x32xf32>
    %cst_178 = arith.constant 1.000000e+00 : f32
    %801 = vector.broadcast %cst_178 : f32 to vector<2x32xf32>
    %802 = arith.addf %801, %800 : vector<2x32xf32>
    %803 = arith.divf %801, %802 : vector<2x32xf32>
    %804 = vector.extract_strided_slice %791 {offsets = [0, 64], sizes = [2, 32], strides = [1, 1]} : vector<2x128xf32> to vector<2x32xf32>
    %805 = math.tanh %804 : vector<2x32xf32>
    %806 = vector.extract_strided_slice %791 {offsets = [0, 96], sizes = [2, 32], strides = [1, 1]} : vector<2x128xf32> to vector<2x32xf32>
    %807 = arith.negf %806 : vector<2x32xf32>
    %808 = math.exp %807 : vector<2x32xf32>
    %cst_179 = arith.constant 1.000000e+00 : f32
    %809 = vector.broadcast %cst_179 : f32 to vector<2x32xf32>
    %810 = arith.addf %809, %808 : vector<2x32xf32>
    %811 = arith.divf %809, %810 : vector<2x32xf32>
    %812 = arith.mulf %803, %750 : vector<2x32xf32>
    %813 = arith.mulf %797, %805 : vector<2x32xf32>
    %814 = arith.addf %812, %813 : vector<2x32xf32>
    %815 = math.tanh %814 : vector<2x32xf32>
    %816 = arith.mulf %811, %815 : vector<2x32xf32>
    %817 = arith.select %10, %816, %749 : vector<2x32xi1>, vector<2x32xf32>
    %818 = arith.select %10, %814, %750 : vector<2x32xi1>, vector<2x32xf32>
    %cst_180 = arith.constant 0.000000e+00 : f32
    %819 = vector.broadcast %cst_180 : f32 to vector<2x32xf32>
    %820 = arith.select %10, %816, %819 : vector<2x32xi1>, vector<2x32xf32>
    %c6_181 = arith.constant 6 : index
    %c0_182 = arith.constant 0 : index
    %821 = vector.load %arg15[%c6_181, %c0_182] : memref<16x64xf32, #tpu.memory_space<vmem>>, vector<2x32xf32>
    tpu.vector_store %arg15[%c6_181, %c0_182], %820 {strides = array<i32>} : memref<16x64xf32, #tpu.memory_space<vmem>>, vector<2x32xf32>,
    %822 = vector.extract_strided_slice %577 {offsets = [8, 128], sizes = [2, 128], strides = [1, 1]} : vector<16x256xf32> to vector<2x128xf32>
    %823 = arith.truncf %783 : vector<2x32xf32> to vector<2x32xbf16>
    %cst_183 = arith.constant dense<0.000000e+00> : vector<2x128xf32>
    %824 = tpu.matmul %823, %579, %cst_183 {dimension_numbers = #tpu.dot_dimension_numbers<[1], [0], [0], [1], [0, 0, 1, 1], [], []>} : vector<2x32xbf16>, vector<32x128xbf16>, vector<2x128xf32> -> vector<2x128xf32>
    %825 = arith.addf %822, %824 : vector<2x128xf32>
    %826 = vector.extract_strided_slice %825 {offsets = [0, 0], sizes = [2, 32], strides = [1, 1]} : vector<2x128xf32> to vector<2x32xf32>
    %827 = arith.negf %826 : vector<2x32xf32>
    %828 = math.exp %827 : vector<2x32xf32>
    %cst_184 = arith.constant 1.000000e+00 : f32
    %829 = vector.broadcast %cst_184 : f32 to vector<2x32xf32>
    %830 = arith.addf %829, %828 : vector<2x32xf32>
    %831 = arith.divf %829, %830 : vector<2x32xf32>
    %832 = vector.extract_strided_slice %825 {offsets = [0, 32], sizes = [2, 32], strides = [1, 1]} : vector<2x128xf32> to vector<2x32xf32>
    %833 = arith.negf %832 : vector<2x32xf32>
    %834 = math.exp %833 : vector<2x32xf32>
    %cst_185 = arith.constant 1.000000e+00 : f32
    %835 = vector.broadcast %cst_185 : f32 to vector<2x32xf32>
    %836 = arith.addf %835, %834 : vector<2x32xf32>
    %837 = arith.divf %835, %836 : vector<2x32xf32>
    %838 = vector.extract_strided_slice %825 {offsets = [0, 64], sizes = [2, 32], strides = [1, 1]} : vector<2x128xf32> to vector<2x32xf32>
    %839 = math.tanh %838 : vector<2x32xf32>
    %840 = vector.extract_strided_slice %825 {offsets = [0, 96], sizes = [2, 32], strides = [1, 1]} : vector<2x128xf32> to vector<2x32xf32>
    %841 = arith.negf %840 : vector<2x32xf32>
    %842 = math.exp %841 : vector<2x32xf32>
    %cst_186 = arith.constant 1.000000e+00 : f32
    %843 = vector.broadcast %cst_186 : f32 to vector<2x32xf32>
    %844 = arith.addf %843, %842 : vector<2x32xf32>
    %845 = arith.divf %843, %844 : vector<2x32xf32>
    %846 = arith.mulf %837, %784 : vector<2x32xf32>
    %847 = arith.mulf %831, %839 : vector<2x32xf32>
    %848 = arith.addf %846, %847 : vector<2x32xf32>
    %849 = math.tanh %848 : vector<2x32xf32>
    %850 = arith.mulf %845, %849 : vector<2x32xf32>
    %851 = arith.select %12, %850, %783 : vector<2x32xi1>, vector<2x32xf32>
    %852 = arith.select %12, %848, %784 : vector<2x32xi1>, vector<2x32xf32>
    %cst_187 = arith.constant 0.000000e+00 : f32
    %853 = vector.broadcast %cst_187 : f32 to vector<2x32xf32>
    %854 = arith.select %12, %850, %853 : vector<2x32xi1>, vector<2x32xf32>
    %c8_188 = arith.constant 8 : index
    %c32_189 = arith.constant 32 : index
    %855 = vector.load %arg15[%c8_188, %c32_189] : memref<16x64xf32, #tpu.memory_space<vmem>>, vector<2x32xf32>
    tpu.vector_store %arg15[%c8_188, %c32_189], %854 {strides = array<i32>} : memref<16x64xf32, #tpu.memory_space<vmem>>, vector<2x32xf32>,
    %856 = vector.extract_strided_slice %577 {offsets = [8, 0], sizes = [2, 128], strides = [1, 1]} : vector<16x256xf32> to vector<2x128xf32>
    %857 = arith.truncf %817 : vector<2x32xf32> to vector<2x32xbf16>
    %cst_190 = arith.constant dense<0.000000e+00> : vector<2x128xf32>
    %858 = tpu.matmul %857, %578, %cst_190 {dimension_numbers = #tpu.dot_dimension_numbers<[1], [0], [0], [1], [0, 0, 1, 1], [], []>} : vector<2x32xbf16>, vector<32x128xbf16>, vector<2x128xf32> -> vector<2x128xf32>
    %859 = arith.addf %856, %858 : vector<2x128xf32>
    %860 = vector.extract_strided_slice %859 {offsets = [0, 0], sizes = [2, 32], strides = [1, 1]} : vector<2x128xf32> to vector<2x32xf32>
    %861 = arith.negf %860 : vector<2x32xf32>
    %862 = math.exp %861 : vector<2x32xf32>
    %cst_191 = arith.constant 1.000000e+00 : f32
    %863 = vector.broadcast %cst_191 : f32 to vector<2x32xf32>
    %864 = arith.addf %863, %862 : vector<2x32xf32>
    %865 = arith.divf %863, %864 : vector<2x32xf32>
    %866 = vector.extract_strided_slice %859 {offsets = [0, 32], sizes = [2, 32], strides = [1, 1]} : vector<2x128xf32> to vector<2x32xf32>
    %867 = arith.negf %866 : vector<2x32xf32>
    %868 = math.exp %867 : vector<2x32xf32>
    %cst_192 = arith.constant 1.000000e+00 : f32
    %869 = vector.broadcast %cst_192 : f32 to vector<2x32xf32>
    %870 = arith.addf %869, %868 : vector<2x32xf32>
    %871 = arith.divf %869, %870 : vector<2x32xf32>
    %872 = vector.extract_strided_slice %859 {offsets = [0, 64], sizes = [2, 32], strides = [1, 1]} : vector<2x128xf32> to vector<2x32xf32>
    %873 = math.tanh %872 : vector<2x32xf32>
    %874 = vector.extract_strided_slice %859 {offsets = [0, 96], sizes = [2, 32], strides = [1, 1]} : vector<2x128xf32> to vector<2x32xf32>
    %875 = arith.negf %874 : vector<2x32xf32>
    %876 = math.exp %875 : vector<2x32xf32>
    %cst_193 = arith.constant 1.000000e+00 : f32
    %877 = vector.broadcast %cst_193 : f32 to vector<2x32xf32>
    %878 = arith.addf %877, %876 : vector<2x32xf32>
    %879 = arith.divf %877, %878 : vector<2x32xf32>
    %880 = arith.mulf %871, %818 : vector<2x32xf32>
    %881 = arith.mulf %865, %873 : vector<2x32xf32>
    %882 = arith.addf %880, %881 : vector<2x32xf32>
    %883 = math.tanh %882 : vector<2x32xf32>
    %884 = arith.mulf %879, %883 : vector<2x32xf32>
    %885 = arith.select %12, %884, %817 : vector<2x32xi1>, vector<2x32xf32>
    %886 = arith.select %12, %882, %818 : vector<2x32xi1>, vector<2x32xf32>
    %cst_194 = arith.constant 0.000000e+00 : f32
    %887 = vector.broadcast %cst_194 : f32 to vector<2x32xf32>
    %888 = arith.select %12, %884, %887 : vector<2x32xi1>, vector<2x32xf32>
    %c8_195 = arith.constant 8 : index
    %c0_196 = arith.constant 0 : index
    %889 = vector.load %arg15[%c8_195, %c0_196] : memref<16x64xf32, #tpu.memory_space<vmem>>, vector<2x32xf32>
    tpu.vector_store %arg15[%c8_195, %c0_196], %888 {strides = array<i32>} : memref<16x64xf32, #tpu.memory_space<vmem>>, vector<2x32xf32>,
    %890 = vector.extract_strided_slice %577 {offsets = [6, 128], sizes = [2, 128], strides = [1, 1]} : vector<16x256xf32> to vector<2x128xf32>
    %891 = arith.truncf %851 : vector<2x32xf32> to vector<2x32xbf16>
    %cst_197 = arith.constant dense<0.000000e+00> : vector<2x128xf32>
    %892 = tpu.matmul %891, %579, %cst_197 {dimension_numbers = #tpu.dot_dimension_numbers<[1], [0], [0], [1], [0, 0, 1, 1], [], []>} : vector<2x32xbf16>, vector<32x128xbf16>, vector<2x128xf32> -> vector<2x128xf32>
    %893 = arith.addf %890, %892 : vector<2x128xf32>
    %894 = vector.extract_strided_slice %893 {offsets = [0, 0], sizes = [2, 32], strides = [1, 1]} : vector<2x128xf32> to vector<2x32xf32>
    %895 = arith.negf %894 : vector<2x32xf32>
    %896 = math.exp %895 : vector<2x32xf32>
    %cst_198 = arith.constant 1.000000e+00 : f32
    %897 = vector.broadcast %cst_198 : f32 to vector<2x32xf32>
    %898 = arith.addf %897, %896 : vector<2x32xf32>
    %899 = arith.divf %897, %898 : vector<2x32xf32>
    %900 = vector.extract_strided_slice %893 {offsets = [0, 32], sizes = [2, 32], strides = [1, 1]} : vector<2x128xf32> to vector<2x32xf32>
    %901 = arith.negf %900 : vector<2x32xf32>
    %902 = math.exp %901 : vector<2x32xf32>
    %cst_199 = arith.constant 1.000000e+00 : f32
    %903 = vector.broadcast %cst_199 : f32 to vector<2x32xf32>
    %904 = arith.addf %903, %902 : vector<2x32xf32>
    %905 = arith.divf %903, %904 : vector<2x32xf32>
    %906 = vector.extract_strided_slice %893 {offsets = [0, 64], sizes = [2, 32], strides = [1, 1]} : vector<2x128xf32> to vector<2x32xf32>
    %907 = math.tanh %906 : vector<2x32xf32>
    %908 = vector.extract_strided_slice %893 {offsets = [0, 96], sizes = [2, 32], strides = [1, 1]} : vector<2x128xf32> to vector<2x32xf32>
    %909 = arith.negf %908 : vector<2x32xf32>
    %910 = math.exp %909 : vector<2x32xf32>
    %cst_200 = arith.constant 1.000000e+00 : f32
    %911 = vector.broadcast %cst_200 : f32 to vector<2x32xf32>
    %912 = arith.addf %911, %910 : vector<2x32xf32>
    %913 = arith.divf %911, %912 : vector<2x32xf32>
    %914 = arith.mulf %905, %852 : vector<2x32xf32>
    %915 = arith.mulf %899, %907 : vector<2x32xf32>
    %916 = arith.addf %914, %915 : vector<2x32xf32>
    %917 = math.tanh %916 : vector<2x32xf32>
    %918 = arith.mulf %913, %917 : vector<2x32xf32>
    %919 = arith.select %10, %918, %851 : vector<2x32xi1>, vector<2x32xf32>
    %920 = arith.select %10, %916, %852 : vector<2x32xi1>, vector<2x32xf32>
    %cst_201 = arith.constant 0.000000e+00 : f32
    %921 = vector.broadcast %cst_201 : f32 to vector<2x32xf32>
    %922 = arith.select %10, %918, %921 : vector<2x32xi1>, vector<2x32xf32>
    %c6_202 = arith.constant 6 : index
    %c32_203 = arith.constant 32 : index
    %923 = vector.load %arg15[%c6_202, %c32_203] : memref<16x64xf32, #tpu.memory_space<vmem>>, vector<2x32xf32>
    tpu.vector_store %arg15[%c6_202, %c32_203], %922 {strides = array<i32>} : memref<16x64xf32, #tpu.memory_space<vmem>>, vector<2x32xf32>,
    %924 = vector.extract_strided_slice %577 {offsets = [10, 0], sizes = [2, 128], strides = [1, 1]} : vector<16x256xf32> to vector<2x128xf32>
    %925 = arith.truncf %885 : vector<2x32xf32> to vector<2x32xbf16>
    %cst_204 = arith.constant dense<0.000000e+00> : vector<2x128xf32>
    %926 = tpu.matmul %925, %578, %cst_204 {dimension_numbers = #tpu.dot_dimension_numbers<[1], [0], [0], [1], [0, 0, 1, 1], [], []>} : vector<2x32xbf16>, vector<32x128xbf16>, vector<2x128xf32> -> vector<2x128xf32>
    %927 = arith.addf %924, %926 : vector<2x128xf32>
    %928 = vector.extract_strided_slice %927 {offsets = [0, 0], sizes = [2, 32], strides = [1, 1]} : vector<2x128xf32> to vector<2x32xf32>
    %929 = arith.negf %928 : vector<2x32xf32>
    %930 = math.exp %929 : vector<2x32xf32>
    %cst_205 = arith.constant 1.000000e+00 : f32
    %931 = vector.broadcast %cst_205 : f32 to vector<2x32xf32>
    %932 = arith.addf %931, %930 : vector<2x32xf32>
    %933 = arith.divf %931, %932 : vector<2x32xf32>
    %934 = vector.extract_strided_slice %927 {offsets = [0, 32], sizes = [2, 32], strides = [1, 1]} : vector<2x128xf32> to vector<2x32xf32>
    %935 = arith.negf %934 : vector<2x32xf32>
    %936 = math.exp %935 : vector<2x32xf32>
    %cst_206 = arith.constant 1.000000e+00 : f32
    %937 = vector.broadcast %cst_206 : f32 to vector<2x32xf32>
    %938 = arith.addf %937, %936 : vector<2x32xf32>
    %939 = arith.divf %937, %938 : vector<2x32xf32>
    %940 = vector.extract_strided_slice %927 {offsets = [0, 64], sizes = [2, 32], strides = [1, 1]} : vector<2x128xf32> to vector<2x32xf32>
    %941 = math.tanh %940 : vector<2x32xf32>
    %942 = vector.extract_strided_slice %927 {offsets = [0, 96], sizes = [2, 32], strides = [1, 1]} : vector<2x128xf32> to vector<2x32xf32>
    %943 = arith.negf %942 : vector<2x32xf32>
    %944 = math.exp %943 : vector<2x32xf32>
    %cst_207 = arith.constant 1.000000e+00 : f32
    %945 = vector.broadcast %cst_207 : f32 to vector<2x32xf32>
    %946 = arith.addf %945, %944 : vector<2x32xf32>
    %947 = arith.divf %945, %946 : vector<2x32xf32>
    %948 = arith.mulf %939, %886 : vector<2x32xf32>
    %949 = arith.mulf %933, %941 : vector<2x32xf32>
    %950 = arith.addf %948, %949 : vector<2x32xf32>
    %951 = math.tanh %950 : vector<2x32xf32>
    %952 = arith.mulf %947, %951 : vector<2x32xf32>
    %953 = arith.select %14, %952, %885 : vector<2x32xi1>, vector<2x32xf32>
    %954 = arith.select %14, %950, %886 : vector<2x32xi1>, vector<2x32xf32>
    %cst_208 = arith.constant 0.000000e+00 : f32
    %955 = vector.broadcast %cst_208 : f32 to vector<2x32xf32>
    %956 = arith.select %14, %952, %955 : vector<2x32xi1>, vector<2x32xf32>
    %c10_209 = arith.constant 10 : index
    %c0_210 = arith.constant 0 : index
    %957 = vector.load %arg15[%c10_209, %c0_210] : memref<16x64xf32, #tpu.memory_space<vmem>>, vector<2x32xf32>
    tpu.vector_store %arg15[%c10_209, %c0_210], %956 {strides = array<i32>} : memref<16x64xf32, #tpu.memory_space<vmem>>, vector<2x32xf32>,
    %958 = vector.extract_strided_slice %577 {offsets = [4, 128], sizes = [2, 128], strides = [1, 1]} : vector<16x256xf32> to vector<2x128xf32>
    %959 = arith.truncf %919 : vector<2x32xf32> to vector<2x32xbf16>
    %cst_211 = arith.constant dense<0.000000e+00> : vector<2x128xf32>
    %960 = tpu.matmul %959, %579, %cst_211 {dimension_numbers = #tpu.dot_dimension_numbers<[1], [0], [0], [1], [0, 0, 1, 1], [], []>} : vector<2x32xbf16>, vector<32x128xbf16>, vector<2x128xf32> -> vector<2x128xf32>
    %961 = arith.addf %958, %960 : vector<2x128xf32>
    %962 = vector.extract_strided_slice %961 {offsets = [0, 0], sizes = [2, 32], strides = [1, 1]} : vector<2x128xf32> to vector<2x32xf32>
    %963 = arith.negf %962 : vector<2x32xf32>
    %964 = math.exp %963 : vector<2x32xf32>
    %cst_212 = arith.constant 1.000000e+00 : f32
    %965 = vector.broadcast %cst_212 : f32 to vector<2x32xf32>
    %966 = arith.addf %965, %964 : vector<2x32xf32>
    %967 = arith.divf %965, %966 : vector<2x32xf32>
    %968 = vector.extract_strided_slice %961 {offsets = [0, 32], sizes = [2, 32], strides = [1, 1]} : vector<2x128xf32> to vector<2x32xf32>
    %969 = arith.negf %968 : vector<2x32xf32>
    %970 = math.exp %969 : vector<2x32xf32>
    %cst_213 = arith.constant 1.000000e+00 : f32
    %971 = vector.broadcast %cst_213 : f32 to vector<2x32xf32>
    %972 = arith.addf %971, %970 : vector<2x32xf32>
    %973 = arith.divf %971, %972 : vector<2x32xf32>
    %974 = vector.extract_strided_slice %961 {offsets = [0, 64], sizes = [2, 32], strides = [1, 1]} : vector<2x128xf32> to vector<2x32xf32>
    %975 = math.tanh %974 : vector<2x32xf32>
    %976 = vector.extract_strided_slice %961 {offsets = [0, 96], sizes = [2, 32], strides = [1, 1]} : vector<2x128xf32> to vector<2x32xf32>
    %977 = arith.negf %976 : vector<2x32xf32>
    %978 = math.exp %977 : vector<2x32xf32>
    %cst_214 = arith.constant 1.000000e+00 : f32
    %979 = vector.broadcast %cst_214 : f32 to vector<2x32xf32>
    %980 = arith.addf %979, %978 : vector<2x32xf32>
    %981 = arith.divf %979, %980 : vector<2x32xf32>
    %982 = arith.mulf %973, %920 : vector<2x32xf32>
    %983 = arith.mulf %967, %975 : vector<2x32xf32>
    %984 = arith.addf %982, %983 : vector<2x32xf32>
    %985 = math.tanh %984 : vector<2x32xf32>
    %986 = arith.mulf %981, %985 : vector<2x32xf32>
    %987 = arith.select %8, %986, %919 : vector<2x32xi1>, vector<2x32xf32>
    %988 = arith.select %8, %984, %920 : vector<2x32xi1>, vector<2x32xf32>
    %cst_215 = arith.constant 0.000000e+00 : f32
    %989 = vector.broadcast %cst_215 : f32 to vector<2x32xf32>
    %990 = arith.select %8, %986, %989 : vector<2x32xi1>, vector<2x32xf32>
    %c4_216 = arith.constant 4 : index
    %c32_217 = arith.constant 32 : index
    %991 = vector.load %arg15[%c4_216, %c32_217] : memref<16x64xf32, #tpu.memory_space<vmem>>, vector<2x32xf32>
    tpu.vector_store %arg15[%c4_216, %c32_217], %990 {strides = array<i32>} : memref<16x64xf32, #tpu.memory_space<vmem>>, vector<2x32xf32>,
    %992 = vector.extract_strided_slice %577 {offsets = [12, 0], sizes = [2, 128], strides = [1, 1]} : vector<16x256xf32> to vector<2x128xf32>
    %993 = arith.truncf %953 : vector<2x32xf32> to vector<2x32xbf16>
    %cst_218 = arith.constant dense<0.000000e+00> : vector<2x128xf32>
    %994 = tpu.matmul %993, %578, %cst_218 {dimension_numbers = #tpu.dot_dimension_numbers<[1], [0], [0], [1], [0, 0, 1, 1], [], []>} : vector<2x32xbf16>, vector<32x128xbf16>, vector<2x128xf32> -> vector<2x128xf32>
    %995 = arith.addf %992, %994 : vector<2x128xf32>
    %996 = vector.extract_strided_slice %995 {offsets = [0, 0], sizes = [2, 32], strides = [1, 1]} : vector<2x128xf32> to vector<2x32xf32>
    %997 = arith.negf %996 : vector<2x32xf32>
    %998 = math.exp %997 : vector<2x32xf32>
    %cst_219 = arith.constant 1.000000e+00 : f32
    %999 = vector.broadcast %cst_219 : f32 to vector<2x32xf32>
    %1000 = arith.addf %999, %998 : vector<2x32xf32>
    %1001 = arith.divf %999, %1000 : vector<2x32xf32>
    %1002 = vector.extract_strided_slice %995 {offsets = [0, 32], sizes = [2, 32], strides = [1, 1]} : vector<2x128xf32> to vector<2x32xf32>
    %1003 = arith.negf %1002 : vector<2x32xf32>
    %1004 = math.exp %1003 : vector<2x32xf32>
    %cst_220 = arith.constant 1.000000e+00 : f32
    %1005 = vector.broadcast %cst_220 : f32 to vector<2x32xf32>
    %1006 = arith.addf %1005, %1004 : vector<2x32xf32>
    %1007 = arith.divf %1005, %1006 : vector<2x32xf32>
    %1008 = vector.extract_strided_slice %995 {offsets = [0, 64], sizes = [2, 32], strides = [1, 1]} : vector<2x128xf32> to vector<2x32xf32>
    %1009 = math.tanh %1008 : vector<2x32xf32>
    %1010 = vector.extract_strided_slice %995 {offsets = [0, 96], sizes = [2, 32], strides = [1, 1]} : vector<2x128xf32> to vector<2x32xf32>
    %1011 = arith.negf %1010 : vector<2x32xf32>
    %1012 = math.exp %1011 : vector<2x32xf32>
    %cst_221 = arith.constant 1.000000e+00 : f32
    %1013 = vector.broadcast %cst_221 : f32 to vector<2x32xf32>
    %1014 = arith.addf %1013, %1012 : vector<2x32xf32>
    %1015 = arith.divf %1013, %1014 : vector<2x32xf32>
    %1016 = arith.mulf %1007, %954 : vector<2x32xf32>
    %1017 = arith.mulf %1001, %1009 : vector<2x32xf32>
    %1018 = arith.addf %1016, %1017 : vector<2x32xf32>
    %1019 = math.tanh %1018 : vector<2x32xf32>
    %1020 = arith.mulf %1015, %1019 : vector<2x32xf32>
    %1021 = arith.select %16, %1020, %953 : vector<2x32xi1>, vector<2x32xf32>
    %1022 = arith.select %16, %1018, %954 : vector<2x32xi1>, vector<2x32xf32>
    %cst_222 = arith.constant 0.000000e+00 : f32
    %1023 = vector.broadcast %cst_222 : f32 to vector<2x32xf32>
    %1024 = arith.select %16, %1020, %1023 : vector<2x32xi1>, vector<2x32xf32>
    %c12_223 = arith.constant 12 : index
    %c0_224 = arith.constant 0 : index
    %1025 = vector.load %arg15[%c12_223, %c0_224] : memref<16x64xf32, #tpu.memory_space<vmem>>, vector<2x32xf32>
    tpu.vector_store %arg15[%c12_223, %c0_224], %1024 {strides = array<i32>} : memref<16x64xf32, #tpu.memory_space<vmem>>, vector<2x32xf32>,
    %1026 = vector.extract_strided_slice %577 {offsets = [2, 128], sizes = [2, 128], strides = [1, 1]} : vector<16x256xf32> to vector<2x128xf32>
    %1027 = arith.truncf %987 : vector<2x32xf32> to vector<2x32xbf16>
    %cst_225 = arith.constant dense<0.000000e+00> : vector<2x128xf32>
    %1028 = tpu.matmul %1027, %579, %cst_225 {dimension_numbers = #tpu.dot_dimension_numbers<[1], [0], [0], [1], [0, 0, 1, 1], [], []>} : vector<2x32xbf16>, vector<32x128xbf16>, vector<2x128xf32> -> vector<2x128xf32>
    %1029 = arith.addf %1026, %1028 : vector<2x128xf32>
    %1030 = vector.extract_strided_slice %1029 {offsets = [0, 0], sizes = [2, 32], strides = [1, 1]} : vector<2x128xf32> to vector<2x32xf32>
    %1031 = arith.negf %1030 : vector<2x32xf32>
    %1032 = math.exp %1031 : vector<2x32xf32>
    %cst_226 = arith.constant 1.000000e+00 : f32
    %1033 = vector.broadcast %cst_226 : f32 to vector<2x32xf32>
    %1034 = arith.addf %1033, %1032 : vector<2x32xf32>
    %1035 = arith.divf %1033, %1034 : vector<2x32xf32>
    %1036 = vector.extract_strided_slice %1029 {offsets = [0, 32], sizes = [2, 32], strides = [1, 1]} : vector<2x128xf32> to vector<2x32xf32>
    %1037 = arith.negf %1036 : vector<2x32xf32>
    %1038 = math.exp %1037 : vector<2x32xf32>
    %cst_227 = arith.constant 1.000000e+00 : f32
    %1039 = vector.broadcast %cst_227 : f32 to vector<2x32xf32>
    %1040 = arith.addf %1039, %1038 : vector<2x32xf32>
    %1041 = arith.divf %1039, %1040 : vector<2x32xf32>
    %1042 = vector.extract_strided_slice %1029 {offsets = [0, 64], sizes = [2, 32], strides = [1, 1]} : vector<2x128xf32> to vector<2x32xf32>
    %1043 = math.tanh %1042 : vector<2x32xf32>
    %1044 = vector.extract_strided_slice %1029 {offsets = [0, 96], sizes = [2, 32], strides = [1, 1]} : vector<2x128xf32> to vector<2x32xf32>
    %1045 = arith.negf %1044 : vector<2x32xf32>
    %1046 = math.exp %1045 : vector<2x32xf32>
    %cst_228 = arith.constant 1.000000e+00 : f32
    %1047 = vector.broadcast %cst_228 : f32 to vector<2x32xf32>
    %1048 = arith.addf %1047, %1046 : vector<2x32xf32>
    %1049 = arith.divf %1047, %1048 : vector<2x32xf32>
    %1050 = arith.mulf %1041, %988 : vector<2x32xf32>
    %1051 = arith.mulf %1035, %1043 : vector<2x32xf32>
    %1052 = arith.addf %1050, %1051 : vector<2x32xf32>
    %1053 = math.tanh %1052 : vector<2x32xf32>
    %1054 = arith.mulf %1049, %1053 : vector<2x32xf32>
    %1055 = arith.select %6, %1054, %987 : vector<2x32xi1>, vector<2x32xf32>
    %1056 = arith.select %6, %1052, %988 : vector<2x32xi1>, vector<2x32xf32>
    %cst_229 = arith.constant 0.000000e+00 : f32
    %1057 = vector.broadcast %cst_229 : f32 to vector<2x32xf32>
    %1058 = arith.select %6, %1054, %1057 : vector<2x32xi1>, vector<2x32xf32>
    %c2_230 = arith.constant 2 : index
    %c32_231 = arith.constant 32 : index
    %1059 = vector.load %arg15[%c2_230, %c32_231] : memref<16x64xf32, #tpu.memory_space<vmem>>, vector<2x32xf32>
    tpu.vector_store %arg15[%c2_230, %c32_231], %1058 {strides = array<i32>} : memref<16x64xf32, #tpu.memory_space<vmem>>, vector<2x32xf32>,
    %1060 = vector.extract_strided_slice %577 {offsets = [14, 0], sizes = [2, 128], strides = [1, 1]} : vector<16x256xf32> to vector<2x128xf32>
    %1061 = arith.truncf %1021 : vector<2x32xf32> to vector<2x32xbf16>
    %cst_232 = arith.constant dense<0.000000e+00> : vector<2x128xf32>
    %1062 = tpu.matmul %1061, %578, %cst_232 {dimension_numbers = #tpu.dot_dimension_numbers<[1], [0], [0], [1], [0, 0, 1, 1], [], []>} : vector<2x32xbf16>, vector<32x128xbf16>, vector<2x128xf32> -> vector<2x128xf32>
    %1063 = arith.addf %1060, %1062 : vector<2x128xf32>
    %1064 = vector.extract_strided_slice %1063 {offsets = [0, 0], sizes = [2, 32], strides = [1, 1]} : vector<2x128xf32> to vector<2x32xf32>
    %1065 = arith.negf %1064 : vector<2x32xf32>
    %1066 = math.exp %1065 : vector<2x32xf32>
    %cst_233 = arith.constant 1.000000e+00 : f32
    %1067 = vector.broadcast %cst_233 : f32 to vector<2x32xf32>
    %1068 = arith.addf %1067, %1066 : vector<2x32xf32>
    %1069 = arith.divf %1067, %1068 : vector<2x32xf32>
    %1070 = vector.extract_strided_slice %1063 {offsets = [0, 32], sizes = [2, 32], strides = [1, 1]} : vector<2x128xf32> to vector<2x32xf32>
    %1071 = arith.negf %1070 : vector<2x32xf32>
    %1072 = math.exp %1071 : vector<2x32xf32>
    %cst_234 = arith.constant 1.000000e+00 : f32
    %1073 = vector.broadcast %cst_234 : f32 to vector<2x32xf32>
    %1074 = arith.addf %1073, %1072 : vector<2x32xf32>
    %1075 = arith.divf %1073, %1074 : vector<2x32xf32>
    %1076 = vector.extract_strided_slice %1063 {offsets = [0, 64], sizes = [2, 32], strides = [1, 1]} : vector<2x128xf32> to vector<2x32xf32>
    %1077 = math.tanh %1076 : vector<2x32xf32>
    %1078 = vector.extract_strided_slice %1063 {offsets = [0, 96], sizes = [2, 32], strides = [1, 1]} : vector<2x128xf32> to vector<2x32xf32>
    %1079 = arith.negf %1078 : vector<2x32xf32>
    %1080 = math.exp %1079 : vector<2x32xf32>
    %cst_235 = arith.constant 1.000000e+00 : f32
    %1081 = vector.broadcast %cst_235 : f32 to vector<2x32xf32>
    %1082 = arith.addf %1081, %1080 : vector<2x32xf32>
    %1083 = arith.divf %1081, %1082 : vector<2x32xf32>
    %1084 = arith.mulf %1075, %1022 : vector<2x32xf32>
    %1085 = arith.mulf %1069, %1077 : vector<2x32xf32>
    %1086 = arith.addf %1084, %1085 : vector<2x32xf32>
    %1087 = math.tanh %1086 : vector<2x32xf32>
    %1088 = arith.mulf %1083, %1087 : vector<2x32xf32>
    %cst_236 = arith.constant 0.000000e+00 : f32
    %1089 = vector.broadcast %cst_236 : f32 to vector<2x32xf32>
    %1090 = arith.select %18, %1088, %1089 : vector<2x32xi1>, vector<2x32xf32>
    %c14_237 = arith.constant 14 : index
    %c0_238 = arith.constant 0 : index
    %1091 = vector.load %arg15[%c14_237, %c0_238] : memref<16x64xf32, #tpu.memory_space<vmem>>, vector<2x32xf32>
    tpu.vector_store %arg15[%c14_237, %c0_238], %1090 {strides = array<i32>} : memref<16x64xf32, #tpu.memory_space<vmem>>, vector<2x32xf32>,
    %1092 = vector.extract_strided_slice %577 {offsets = [0, 128], sizes = [2, 128], strides = [1, 1]} : vector<16x256xf32> to vector<2x128xf32>
    %1093 = arith.truncf %1055 : vector<2x32xf32> to vector<2x32xbf16>
    %cst_239 = arith.constant dense<0.000000e+00> : vector<2x128xf32>
    %1094 = tpu.matmul %1093, %579, %cst_239 {dimension_numbers = #tpu.dot_dimension_numbers<[1], [0], [0], [1], [0, 0, 1, 1], [], []>} : vector<2x32xbf16>, vector<32x128xbf16>, vector<2x128xf32> -> vector<2x128xf32>
    %1095 = arith.addf %1092, %1094 : vector<2x128xf32>
    %1096 = vector.extract_strided_slice %1095 {offsets = [0, 0], sizes = [2, 32], strides = [1, 1]} : vector<2x128xf32> to vector<2x32xf32>
    %1097 = arith.negf %1096 : vector<2x32xf32>
    %1098 = math.exp %1097 : vector<2x32xf32>
    %cst_240 = arith.constant 1.000000e+00 : f32
    %1099 = vector.broadcast %cst_240 : f32 to vector<2x32xf32>
    %1100 = arith.addf %1099, %1098 : vector<2x32xf32>
    %1101 = arith.divf %1099, %1100 : vector<2x32xf32>
    %1102 = vector.extract_strided_slice %1095 {offsets = [0, 32], sizes = [2, 32], strides = [1, 1]} : vector<2x128xf32> to vector<2x32xf32>
    %1103 = arith.negf %1102 : vector<2x32xf32>
    %1104 = math.exp %1103 : vector<2x32xf32>
    %cst_241 = arith.constant 1.000000e+00 : f32
    %1105 = vector.broadcast %cst_241 : f32 to vector<2x32xf32>
    %1106 = arith.addf %1105, %1104 : vector<2x32xf32>
    %1107 = arith.divf %1105, %1106 : vector<2x32xf32>
    %1108 = vector.extract_strided_slice %1095 {offsets = [0, 64], sizes = [2, 32], strides = [1, 1]} : vector<2x128xf32> to vector<2x32xf32>
    %1109 = math.tanh %1108 : vector<2x32xf32>
    %1110 = vector.extract_strided_slice %1095 {offsets = [0, 96], sizes = [2, 32], strides = [1, 1]} : vector<2x128xf32> to vector<2x32xf32>
    %1111 = arith.negf %1110 : vector<2x32xf32>
    %1112 = math.exp %1111 : vector<2x32xf32>
    %cst_242 = arith.constant 1.000000e+00 : f32
    %1113 = vector.broadcast %cst_242 : f32 to vector<2x32xf32>
    %1114 = arith.addf %1113, %1112 : vector<2x32xf32>
    %1115 = arith.divf %1113, %1114 : vector<2x32xf32>
    %1116 = arith.mulf %1107, %1056 : vector<2x32xf32>
    %1117 = arith.mulf %1101, %1109 : vector<2x32xf32>
    %1118 = arith.addf %1116, %1117 : vector<2x32xf32>
    %1119 = math.tanh %1118 : vector<2x32xf32>
    %1120 = arith.mulf %1115, %1119 : vector<2x32xf32>
    %cst_243 = arith.constant 0.000000e+00 : f32
    %1121 = vector.broadcast %cst_243 : f32 to vector<2x32xf32>
    %1122 = arith.select %4, %1120, %1121 : vector<2x32xi1>, vector<2x32xf32>
    %c0_244 = arith.constant 0 : index
    %c32_245 = arith.constant 32 : index
    %1123 = vector.load %arg15[%c0_244, %c32_245] : memref<16x64xf32, #tpu.memory_space<vmem>>, vector<2x32xf32>
    tpu.vector_store %arg15[%c0_244, %c32_245], %1122 {strides = array<i32>} : memref<16x64xf32, #tpu.memory_space<vmem>>, vector<2x32xf32>,
    %c0_246 = arith.constant 0 : index
    %c0_247 = arith.constant 0 : index
    %1124 = vector.load %arg15[%c0_246, %c0_247] : memref<16x64xf32, #tpu.memory_space<vmem>>, vector<16x64xf32>
    %c0_248 = arith.constant 0 : index
    %c0_249 = arith.constant 0 : index
    %1125 = vector.load %arg10[%c0_248, %c0_249] : memref<1x64xf32, #tpu.memory_space<vmem>>, vector<1x64xf32>
    %1126 = vector.broadcast %1125 : vector<1x64xf32> to vector<16x64xf32>
    %1127 = arith.mulf %1124, %1126 : vector<16x64xf32>
    %c0_250 = arith.constant 0 : index
    %c0_251 = arith.constant 0 : index
    %1128 = vector.load %arg11[%c0_250, %c0_251] : memref<1x64xf32, #tpu.memory_space<vmem>>, vector<1x64xf32>
    %1129 = vector.broadcast %1128 : vector<1x64xf32> to vector<16x64xf32>
    %1130 = arith.addf %1127, %1129 : vector<16x64xf32>
    %1131 = arith.truncf %1130 : vector<16x64xf32> to vector<16x64xbf16>
    %c0_252 = arith.constant 0 : index
    %c0_253 = arith.constant 0 : index
    %1132 = vector.load %arg12[%c0_252, %c0_253] : memref<64x128xbf16, #tpu.memory_space<vmem>>, vector<64x128xbf16>
    %cst_254 = arith.constant dense<0.000000e+00> : vector<16x128xf32>
    %1133 = tpu.matmul %1131, %1132, %cst_254 {dimension_numbers = #tpu.dot_dimension_numbers<[1], [0], [0], [1], [0, 0, 1, 1], [], []>} : vector<16x64xbf16>, vector<64x128xbf16>, vector<16x128xf32> -> vector<16x128xf32>
    %c0_255 = arith.constant 0 : index
    %c0_256 = arith.constant 0 : index
    %1134 = vector.load %arg13[%c0_255, %c0_256] : memref<1x128xf32, #tpu.memory_space<vmem>>, vector<1x128xf32>
    %1135 = vector.broadcast %1134 : vector<1x128xf32> to vector<16x128xf32>
    %1136 = arith.addf %1133, %1135 : vector<16x128xf32>
    %c0_257 = arith.constant 0 : index
    %c0_258 = arith.constant 0 : index
    %1137 = vector.load %arg14[%c0_257, %c0_258] : memref<16x128xf32, #tpu.memory_space<vmem>>, vector<16x128xf32>
    tpu.vector_store %arg14[%c0_257, %c0_258], %1136 {strides = array<i32>} : memref<16x128xf32, #tpu.memory_space<vmem>>, vector<16x128xf32>,
    return
  }
}

</mosaic_0001>

<llo_original>
// kernel: bilstm_forward.1
$region0: #{bilstm_forward.1}
  #allocation0 [shape = 'u32[]', space=smem, size = 0x4, offset = 0x4, fixed_abs, tag = 'smem constant byte address 0x4 - core index']
  #allocation1 [shape = 'u32[144,128]{1,0:T(1,128)}', space=vmem, size = 0x12000, scoped, tag = 'internal scratch']
  #allocation2 [shape = 'f32[16,64]{1,0:T(8,128)}', space=vmem, size = 0x2000, scoped, tag = 'scratch operand']
  %s0 = inlined_call_operand.vmem [shape: s32[2,1], index: 0, kind: input, shape index: {}]
  %s1 = inlined_call_operand.vmem [shape: bf16[16,16], index: 1, kind: input, shape index: {}]
  %s2 = inlined_call_operand.vmem [shape: bf16[16,256], index: 2, kind: input, shape index: {}]
  %s3 = inlined_call_operand.vmem [shape: bf16[32,128], index: 3, kind: input, shape index: {}]
  %s4 = inlined_call_operand.vmem [shape: bf16[32,128], index: 4, kind: input, shape index: {}]
  %s5 = inlined_call_operand.vmem [shape: f32[1,256], index: 5, kind: input, shape index: {}]
  %s6 = inlined_call_operand.vmem [shape: bf16[64,256], index: 6, kind: input, shape index: {}]
  %s7 = inlined_call_operand.vmem [shape: bf16[32,128], index: 7, kind: input, shape index: {}]
  %s8 = inlined_call_operand.vmem [shape: bf16[32,128], index: 8, kind: input, shape index: {}]
  %s9 = inlined_call_operand.vmem [shape: f32[1,256], index: 9, kind: input, shape index: {}]
  %s10 = inlined_call_operand.vmem [shape: f32[1,64], index: 10, kind: input, shape index: {}]
  %s11 = inlined_call_operand.vmem [shape: f32[1,64], index: 11, kind: input, shape index: {}]
  %s12 = inlined_call_operand.vmem [shape: bf16[64,128], index: 12, kind: input, shape index: {}]
  %s13 = inlined_call_operand.vmem [shape: f32[1,128], index: 13, kind: input, shape index: {}]
  %s14 = inlined_call_operand.vmem [shape: f32[16,128], index: 14, kind: output, shape index: {}]
  %s15 = sld [smem:[#allocation0]]
  $region66: #{bilstm_forward.1} parent=0
    _
  %s17 = ssub.s32 1, %s15
  %s18 = scalar_select 0, %s17, %s15
  // Predicated region
  $region2: #{bilstm_forward.1} parent=0 // pred_check
    _
  $region3: #{bilstm_forward.1} parent=0 // pred_check_branch
    %20 = sbr.rel (0) target = $region5
  $region4: #{bilstm_forward.1} parent=0 // pred_region
    _
  $region5: #{bilstm_forward.1} parent=0 // pred_fallthru
    _
  // Predicated region
  $region6: #{bilstm_forward.1} parent=0 // pred_check
    _
  $region7: #{bilstm_forward.1} parent=0 // pred_check_branch
    %22 = sbr.rel (0) target = $region9
  $region8: #{bilstm_forward.1} parent=0 // pred_region
    _
  $region9: #{bilstm_forward.1} parent=0 // pred_fallthru
    _
  // Predicated region
  $region10: #{bilstm_forward.1} parent=0 // pred_check
    _
  $region11: #{bilstm_forward.1} parent=0 // pred_check_branch
    %24 = sbr.rel (0) target = $region13
  $region12: #{bilstm_forward.1} parent=0 // pred_region
    _
  $region13: #{bilstm_forward.1} parent=0 // pred_fallthru
    _
  // Predicated region
  $region14: #{bilstm_forward.1} parent=0 // pred_check
    _
  $region15: #{bilstm_forward.1} parent=0 // pred_check_branch
    %26 = sbr.rel (0) target = $region17
  $region16: #{bilstm_forward.1} parent=0 // pred_region
    _
  $region17: #{bilstm_forward.1} parent=0 // pred_fallthru
    _
  // Predicated region
  $region18: #{bilstm_forward.1} parent=0 // pred_check
    _
  $region19: #{bilstm_forward.1} parent=0 // pred_check_branch
    %28 = sbr.rel (0) target = $region21
  $region20: #{bilstm_forward.1} parent=0 // pred_region
    _
  $region21: #{bilstm_forward.1} parent=0 // pred_fallthru
    _
  // Predicated region
  $region22: #{bilstm_forward.1} parent=0 // pred_check
    _
  $region23: #{bilstm_forward.1} parent=0 // pred_check_branch
    %30 = sbr.rel (0) target = $region25
  $region24: #{bilstm_forward.1} parent=0 // pred_region
    _
  $region25: #{bilstm_forward.1} parent=0 // pred_fallthru
    _
  // Predicated region
  $region26: #{bilstm_forward.1} parent=0 // pred_check
    _
  $region27: #{bilstm_forward.1} parent=0 // pred_check_branch
    %32 = sbr.rel (0) target = $region29
  $region28: #{bilstm_forward.1} parent=0 // pred_region
    _
  $region29: #{bilstm_forward.1} parent=0 // pred_fallthru
    _
  // Predicated region
  $region30: #{bilstm_forward.1} parent=0 // pred_check
    _
  $region31: #{bilstm_forward.1} parent=0 // pred_check_branch
    %34 = sbr.rel (0) target = $region33
  $region32: #{bilstm_forward.1} parent=0 // pred_region
    _
  $region33: #{bilstm_forward.1} parent=0 // pred_fallthru
    _
  // Predicated region
  $region34: #{bilstm_forward.1} parent=0 // pred_check
    _
  $region35: #{bilstm_forward.1} parent=0 // pred_check_branch
    %36 = sbr.rel (0) target = $region37
  $region36: #{bilstm_forward.1} parent=0 // pred_region
    _
  $region37: #{bilstm_forward.1} parent=0 // pred_fallthru
    _
  // Predicated region
  $region38: #{bilstm_forward.1} parent=0 // pred_check
    _
  $region39: #{bilstm_forward.1} parent=0 // pred_check_branch
    %38 = sbr.rel (0) target = $region41
  $region40: #{bilstm_forward.1} parent=0 // pred_region
    _
  $region41: #{bilstm_forward.1} parent=0 // pred_fallthru
    _
  // Predicated region
  $region42: #{bilstm_forward.1} parent=0 // pred_check
    _
  $region43: #{bilstm_forward.1} parent=0 // pred_check_branch
    %40 = sbr.rel (0) target = $region45
  $region44: #{bilstm_forward.1} parent=0 // pred_region
    _
  $region45: #{bilstm_forward.1} parent=0 // pred_fallthru
    _
  // Predicated region
  $region46: #{bilstm_forward.1} parent=0 // pred_check
    _
  $region47: #{bilstm_forward.1} parent=0 // pred_check_branch
    %42 = sbr.rel (0) target = $region49
  $region48: #{bilstm_forward.1} parent=0 // pred_region
    _
  $region49: #{bilstm_forward.1} parent=0 // pred_fallthru
    _
  // Predicated region
  $region50: #{bilstm_forward.1} parent=0 // pred_check
    _
  $region51: #{bilstm_forward.1} parent=0 // pred_check_branch
    %44 = sbr.rel (0) target = $region53
  $region52: #{bilstm_forward.1} parent=0 // pred_region
    _
  $region53: #{bilstm_forward.1} parent=0 // pred_fallthru
    _
  // Predicated region
  $region54: #{bilstm_forward.1} parent=0 // pred_check
    _
  $region55: #{bilstm_forward.1} parent=0 // pred_check_branch
    %46 = sbr.rel (0) target = $region57
  $region56: #{bilstm_forward.1} parent=0 // pred_region
    _
  $region57: #{bilstm_forward.1} parent=0 // pred_fallthru
    _
  %v48 = vld [vmem:[%s0] sm:$0x3]
  %49 = vset.pattern.permute.xlu0 0
  %50 = vperm.xlu0 %49, %v48
  %v51 = vpop.permute.xlu0 %50
  %vm52 = vcmp.gt.s32.totalorder %v51, 0
  %vm53 = vcmp.gt.s32.totalorder %v51, 1
  %vm54 = vcmp.gt.s32.totalorder %v51, 2
  %vm55 = vcmp.gt.s32.totalorder %v51, 3
  %vm56 = vcmp.gt.s32.totalorder %v51, 4
  %vm57 = vcmp.gt.s32.totalorder %v51, 5
  %vm58 = vcmp.gt.s32.totalorder %v51, 6
  %vm59 = vcmp.gt.s32.totalorder %v51, 7
  %v60 = vld [vmem:[%s1] sm:$0xf]
  %v61 = vld [vmem:[%s1 + $0x4] sm:$0xf]
  %v62 = vld [vmem:[%s2] sm:$0xff]
  %v63 = vld [vmem:[%s2 + $0x8] sm:$0xff]
  %v64 = vld [vmem:[%s5] sm:$0x3]
  %v66 = vlaneseq
  %v67 = vshrl.u32 %v66, 7
  %v68 = vsub.s32 0, %v67
  %v69 = vrot.slane %v64, %v68
  %v70 = vlaneseq
  %v71 = vshrl.u32 %v70, 7
  %v72 = vsub.s32 1, %v71
  %v73 = vrot.slane %v64, %v72
  %v78 = vunpack.c.l.b16 %v60
  %v79 = vunpack.c.l.b16 %v61
  %v80 = vpack.c.b16 %v79, %v78
  %v83 = vunpack.c.l.b16 %v62
  %v84 = vunpack.c.h.b16 %v62
  %v85 = vunpack.c.l.b16 %v63
  %v86 = vunpack.c.h.b16 %v63
  %v87 = vpack.c.b16 %v85, %v83
  %v88 = vpack.c.b16 %v86, %v84
  %vm91 = vcmask 130048
  %v93 = vsel %vm91, %v80, 0
  %95 = vmatprep.subr.bf16.mxu0 %v88
  %96 = vmatpush1.bf16.msra.mxu0 %v87
  %97 = vmatprep.subr.bf16.mxu0 0
  %98 = vmatpush1.bf16.msra.mxu0 0
  %99 = vmatprep.subr.bf16.mxu0 0
  %100 = vmatpush1.bf16.msra.mxu0 0
  %101 = vmatprep.subr.bf16.mxu0 0
  %102 = vmatpush1.bf16.msra.mxu0 0
  %103 = vmatprep.subr.bf16.mxu0 0
  %104 = vmatpush1.bf16.msra.mxu0 0
  %105 = vmatprep.subr.bf16.mxu0 0
  %106 = vmatpush1.bf16.msra.mxu0 0
  %107 = vmatprep.subr.bf16.mxu0 0
  %108 = vmatpush1.bf16.msra.mxu0 0
  %109 = vmatprep.subr.bf16.mxu0 0
  %110 = vmatpush1.bf16.msra.mxu0 0
  %111 = vmatprep.subr.bf16.mxu0 0
  %112 = vmatpush1.bf16.msra.mxu0 0
  %113 = vmatprep.subr.bf16.mxu0 0
  %114 = vmatpush1.bf16.msra.mxu0 0
  %115 = vmatprep.subr.bf16.mxu0 0
  %116 = vmatpush1.bf16.msra.mxu0 0
  %117 = vmatprep.subr.bf16.mxu0 0
  %118 = vmatpush1.bf16.msra.mxu0 0
  %119 = vmatprep.subr.bf16.mxu0 0
  %120 = vmatpush1.bf16.msra.mxu0 0
  %121 = vmatprep.subr.bf16.mxu0 0
  %122 = vmatpush1.bf16.msra.mxu0 0
  %123 = vmatprep.subr.bf16.mxu0 0
  %124 = vmatpush1.bf16.msra.mxu0 0
  %125 = vmatprep.subr.bf16.mxu0 0
  %126 = vmatpush1.bf16.msra.mxu0 0
  %127 = vmatprep.mubr.bf16.mxu0 0
  %128 = vmatmul.mubr.bf16.gmra.mrb[0].mxu0 %v93
  %v129 = vpop.f32.mrb[0].mxu0
  %v130 = vadd.f32 %v69, %v129
  %v131 = vpop.f32.mrb[0].mxu0
  %v132 = vadd.f32 %v73, %v131
  %v133 = vpop.f32.mrb[0].mxu0
  %v134 = vadd.f32 %v69, %v133
  %v135 = vpop.f32.mrb[0].mxu0
  %v136 = vadd.f32 %v73, %v135
  %137 = vdwg.mxu0
  %v138 = vld [vmem:[%s3] sm:$0xf]
  %v139 = vld [vmem:[%s3 + $0x4] sm:$0xf]
  %v140 = vld [vmem:[%s3 + $0x8] sm:$0xf]
  %v141 = vld [vmem:[%s3 + $0xc] sm:$0xf]
  %v142 = vld [vmem:[%s4] sm:$0xf]
  %v143 = vld [vmem:[%s4 + $0x4] sm:$0xf]
  %v144 = vld [vmem:[%s4 + $0x8] sm:$0xf]
  %v145 = vld [vmem:[%s4 + $0xc] sm:$0xf]
  %v150 = vunpack.c.l.b16 %v138
  %v151 = vunpack.c.l.b16 %v139
  %v152 = vunpack.c.l.b16 %v140
  %v153 = vunpack.c.l.b16 %v141
  %v154 = vpack.c.b16 %v151, %v150
  %v155 = vpack.c.b16 %v153, %v152
  %vm158 = vcmask 261120
  %v160 = vsel %vm158, 0, 0
  %162 = vmatprep.subr.bf16.mxu0 0
  %163 = vmatpush1.bf16.msra.mxu0 %v154
  %164 = vmatprep.subr.bf16.mxu0 0
  %165 = vmatpush1.bf16.msra.mxu0 %v155
  %166 = vmatprep.subr.bf16.mxu0 0
  %167 = vmatpush1.bf16.msra.mxu0 0
  %168 = vmatprep.subr.bf16.mxu0 0
  %169 = vmatpush1.bf16.msra.mxu0 0
  %170 = vmatprep.subr.bf16.mxu0 0
  %171 = vmatpush1.bf16.msra.mxu0 0
  %172 = vmatprep.subr.bf16.mxu0 0
  %173 = vmatpush1.bf16.msra.mxu0 0
  %174 = vmatprep.subr.bf16.mxu0 0
  %175 = vmatpush1.bf16.msra.mxu0 0
  %176 = vmatprep.subr.bf16.mxu0 0
  %177 = vmatpush1.bf16.msra.mxu0 0
  %178 = vmatprep.subr.bf16.mxu0 0
  %179 = vmatpush1.bf16.msra.mxu0 0
  %180 = vmatprep.subr.bf16.mxu0 0
  %181 = vmatpush1.bf16.msra.mxu0 0
  %182 = vmatprep.subr.bf16.mxu0 0
  %183 = vmatpush1.bf16.msra.mxu0 0
  %184 = vmatprep.subr.bf16.mxu0 0
  %185 = vmatpush1.bf16.msra.mxu0 0
  %186 = vmatprep.subr.bf16.mxu0 0
  %187 = vmatpush1.bf16.msra.mxu0 0
  %188 = vmatprep.subr.bf16.mxu0 0
  %189 = vmatpush1.bf16.msra.mxu0 0
  %190 = vmatprep.subr.bf16.mxu0 0
  %191 = vmatpush1.bf16.msra.mxu0 0
  %192 = vmatprep.subr.bf16.mxu0 0
  %193 = vmatpush1.bf16.msra.mxu0 0
  %194 = vmatprep.mubr.bf16.mxu0 0
  %195 = vmatmul.mubr.bf16.gmra.mrb[0].mxu0 %v160
  %v196 = vpop.f32.mrb[0].mxu0
  %v197 = vadd.f32 0.0, %v196
  %v198 = vpop.f32.mrb[0].mxu0
  %v199 = vpop.f32.mrb[0].mxu0
  %v200 = vpop.f32.mrb[0].mxu0
  %201 = vdwg.mxu0
  %v202 = vadd.f32 %v130, %v197
  %v203 = vxor.u32 %v202, 2147483648
  %v204 = vmul.f32 %v203, 1.442695
  %v205 = vpow.pop %v204
  %v206 = vadd.f32 %v205, 1.0
  %v207 = vrcp.pop %v206
  %v208 = vmul.f32 1.0, %v207
  %v209 = vtanh.pop %v202
  %v210 = vmul.f32 %v208, 0.0
  %212 = vrot.lane.b32.xlu0 %v209, 64
  %v213 = vpop.permute.xlu0 %212
  %v215 = vmul.f32 %v208, %v213
  %217 = vrot.lane.b32.xlu0 %v215, 32
  %v218 = vpop.permute.xlu0 %217
  %v220 = vadd.f32 %v210, %v218
  %v221 = vtanh.pop %v220
  %223 = vrot.lane.b32.xlu0 %v221, 64
  %v224 = vpop.permute.xlu0 %223
  %v226 = vmul.f32 %v208, %v224
  %v227 = vsel %vm52, %v226, 0.0
  %v228 = vsel %vm52, %v220, 0.0
  %230 = vrot.lane.b32.xlu0 %v227, 32
  %v231 = vpop.permute.xlu0 %230
  %vm233 = vcmask 254976
  %234 = vst.msk [vmem:[#allocation2] sm:$0x3] %vm233, %v231
  %v239 = vunpack.c.l.b16 %v142
  %v240 = vunpack.c.l.b16 %v143
  %v241 = vunpack.c.l.b16 %v144
  %v242 = vunpack.c.l.b16 %v145
  %v243 = vpack.c.b16 %v240, %v239
  %v244 = vpack.c.b16 %v242, %v241
  %247 = vmatprep.subr.bf16.mxu0 0
  %248 = vmatpush1.bf16.msra.mxu0 %v243
  %249 = vmatprep.subr.bf16.mxu0 0
  %250 = vmatpush1.bf16.msra.mxu0 %v244
  %251 = vmatprep.subr.bf16.mxu0 0
  %252 = vmatpush1.bf16.msra.mxu0 0
  %253 = vmatprep.subr.bf16.mxu0 0
  %254 = vmatpush1.bf16.msra.mxu0 0
  %255 = vmatprep.subr.bf16.mxu0 0
  %256 = vmatpush1.bf16.msra.mxu0 0
  %257 = vmatprep.subr.bf16.mxu0 0
  %258 = vmatpush1.bf16.msra.mxu0 0
  %259 = vmatprep.subr.bf16.mxu0 0
  %260 = vmatpush1.bf16.msra.mxu0 0
  %261 = vmatprep.subr.bf16.mxu0 0
  %262 = vmatpush1.bf16.msra.mxu0 0
  %263 = vmatprep.subr.bf16.mxu0 0
  %264 = vmatpush1.bf16.msra.mxu0 0
  %265 = vmatprep.subr.bf16.mxu0 0
  %266 = vmatpush1.bf16.msra.mxu0 0
  %267 = vmatprep.subr.bf16.mxu0 0
  %268 = vmatpush1.bf16.msra.mxu0 0
  %269 = vmatprep.subr.bf16.mxu0 0
  %270 = vmatpush1.bf16.msra.mxu0 0
  %271 = vmatprep.subr.bf16.mxu0 0
  %272 = vmatpush1.bf16.msra.mxu0 0
  %273 = vmatprep.subr.bf16.mxu0 0
  %274 = vmatpush1.bf16.msra.mxu0 0
  %275 = vmatprep.subr.bf16.mxu0 0
  %276 = vmatpush1.bf16.msra.mxu0 0
  %277 = vmatprep.subr.bf16.mxu0 0
  %278 = vmatpush1.bf16.msra.mxu0 0
  %279 = vmatprep.mubr.bf16.mxu0 0
  %280 = vmatmul.mubr.bf16.gmra.mrb[0].mxu0 %v160
  %v281 = vpop.f32.mrb[0].mxu0
  %v282 = vadd.f32 0.0, %v281
  %v283 = vpop.f32.mrb[0].mxu0
  %v284 = vpop.f32.mrb[0].mxu0
  %v285 = vpop.f32.mrb[0].mxu0
  %286 = vdwg.mxu0
  %v288 = vrot.slane %v282, 2
  %v290 = vadd.f32 %v136, %v288
  %v291 = vxor.u32 %v290, 2147483648
  %v292 = vmul.f32 %v291, 1.442695
  %v293 = vpow.pop %v292
  %v294 = vadd.f32 %v293, 1.0
  %v295 = vrcp.pop %v294
  %v296 = vmul.f32 1.0, %v295
  %v297 = vtanh.pop %v290
  %v298 = vmul.f32 %v296, 0.0
  %300 = vrot.lane.b32.xlu0 %v297, 64
  %v301 = vpop.permute.xlu0 %300
  %v303 = vmul.f32 %v296, %v301
  %305 = vrot.lane.b32.xlu0 %v303, 32
  %v306 = vpop.permute.xlu0 %305
  %v308 = vadd.f32 %v298, %v306
  %v309 = vtanh.pop %v308
  %311 = vrot.lane.b32.xlu0 %v309, 64
  %v312 = vpop.permute.xlu0 %311
  %v314 = vmul.f32 %v296, %v312
  %v316 = vrot.slane %v314, 6
  %317 = vrot.lane.b32.xlu0 %v316, 32
  %v318 = vpop.permute.xlu0 %317
  %v320 = vsel %vm59, %v318, 0.0
  %v322 = vrot.slane %v308, 6
  %323 = vrot.lane.b32.xlu0 %v322, 96
  %v324 = vpop.permute.xlu0 %323
  %v326 = vsel %vm59, %v324, 0.0
  %328 = vrot.lane.b32.xlu0 %v320, 32
  %v329 = vpop.permute.xlu0 %328
  %vm331 = vcmask 517376
  %332 = vst.msk [vmem:[#allocation2 + $0xe] sm:$0x3] %vm331, %v329
  %v333 = vpack.c.bf16 %v227, %v227
  %335 = vrot.lane.b32.xlu0 %v333, 32
  %v336 = vpop.permute.xlu0 %335
  %v338 = vsel %vm158, %v336, 0
  %340 = vmatprep.subr.bf16.mxu0 0
  %341 = vmatpush1.bf16.msra.mxu0 %v154
  %342 = vmatprep.subr.bf16.mxu0 0
  %343 = vmatpush1.bf16.msra.mxu0 %v155
  %344 = vmatprep.subr.bf16.mxu0 0
  %345 = vmatpush1.bf16.msra.mxu0 0
  %346 = vmatprep.subr.bf16.mxu0 0
  %347 = vmatpush1.bf16.msra.mxu0 0
  %348 = vmatprep.subr.bf16.mxu0 0
  %349 = vmatpush1.bf16.msra.mxu0 0
  %350 = vmatprep.subr.bf16.mxu0 0
  %351 = vmatpush1.bf16.msra.mxu0 0
  %352 = vmatprep.subr.bf16.mxu0 0
  %353 = vmatpush1.bf16.msra.mxu0 0
  %354 = vmatprep.subr.bf16.mxu0 0
  %355 = vmatpush1.bf16.msra.mxu0 0
  %356 = vmatprep.subr.bf16.mxu0 0
  %357 = vmatpush1.bf16.msra.mxu0 0
  %358 = vmatprep.subr.bf16.mxu0 0
  %359 = vmatpush1.bf16.msra.mxu0 0
  %360 = vmatprep.subr.bf16.mxu0 0
  %361 = vmatpush1.bf16.msra.mxu0 0
  %362 = vmatprep.subr.bf16.mxu0 0
  %363 = vmatpush1.bf16.msra.mxu0 0
  %364 = vmatprep.subr.bf16.mxu0 0
  %365 = vmatpush1.bf16.msra.mxu0 0
  %366 = vmatprep.subr.bf16.mxu0 0
  %367 = vmatpush1.bf16.msra.mxu0 0
  %368 = vmatprep.subr.bf16.mxu0 0
  %369 = vmatpush1.bf16.msra.mxu0 0
  %370 = vmatprep.subr.bf16.mxu0 0
  %371 = vmatpush1.bf16.msra.mxu0 0
  %372 = vmatprep.mubr.bf16.mxu0 0
  %373 = vmatmul.mubr.bf16.gmra.mrb[0].mxu0 %v338
  %v374 = vpop.f32.mrb[0].mxu0
  %v375 = vadd.f32 0.0, %v374
  %v376 = vpop.f32.mrb[0].mxu0
  %v377 = vpop.f32.mrb[0].mxu0
  %v378 = vpop.f32.mrb[0].mxu0
  %379 = vdwg.mxu0
  %v381 = vrot.slane %v375, 6
  %v383 = vadd.f32 %v130, %v381
  %v384 = vxor.u32 %v383, 2147483648
  %v385 = vmul.f32 %v384, 1.442695
  %v386 = vpow.pop %v385
  %v387 = vadd.f32 %v386, 1.0
  %v388 = vrcp.pop %v387
  %v389 = vmul.f32 1.0, %v388
  %v390 = vtanh.pop %v383
  %v392 = vrot.slane %v228, 6
  %v394 = vmul.f32 %v389, %v392
  %396 = vrot.lane.b32.xlu0 %v390, 64
  %v397 = vpop.permute.xlu0 %396
  %v399 = vmul.f32 %v389, %v397
  %401 = vrot.lane.b32.xlu0 %v399, 32
  %v402 = vpop.permute.xlu0 %401
  %v404 = vadd.f32 %v394, %v402
  %v405 = vtanh.pop %v404
  %407 = vrot.lane.b32.xlu0 %v405, 64
  %v408 = vpop.permute.xlu0 %407
  %v410 = vmul.f32 %v389, %v408
  %v412 = vrot.slane %v410, 2
  %413 = vrot.lane.b32.xlu0 %v412, 32
  %v414 = vpop.permute.xlu0 %413
  %v416 = vsel %vm53, %v414, %v231
  %v418 = vrot.slane %v404, 2
  %419 = vrot.lane.b32.xlu0 %v418, 96
  %v420 = vpop.permute.xlu0 %419
  %422 = vrot.lane.b32.xlu0 %v228, 96
  %v423 = vpop.permute.xlu0 %422
  %v425 = vsel %vm53, %v420, %v423
  %v426 = vsel %vm53, %v414, 0.0
  %427 = vst.msk [vmem:[#allocation2 + $0x2] sm:$0x3] %vm233, %v426
  %v428 = vpack.c.bf16 %v320, %v320
  %v430 = vsel %vm158, %v428, 0
  %432 = vmatprep.subr.bf16.mxu0 0
  %433 = vmatpush1.bf16.msra.mxu0 %v243
  %434 = vmatprep.subr.bf16.mxu0 0
  %435 = vmatpush1.bf16.msra.mxu0 %v244
  %436 = vmatprep.subr.bf16.mxu0 0
  %437 = vmatpush1.bf16.msra.mxu0 0
  %438 = vmatprep.subr.bf16.mxu0 0
  %439 = vmatpush1.bf16.msra.mxu0 0
  %440 = vmatprep.subr.bf16.mxu0 0
  %441 = vmatpush1.bf16.msra.mxu0 0
  %442 = vmatprep.subr.bf16.mxu0 0
  %443 = vmatpush1.bf16.msra.mxu0 0
  %444 = vmatprep.subr.bf16.mxu0 0
  %445 = vmatpush1.bf16.msra.mxu0 0
  %446 = vmatprep.subr.bf16.mxu0 0
  %447 = vmatpush1.bf16.msra.mxu0 0
  %448 = vmatprep.subr.bf16.mxu0 0
  %449 = vmatpush1.bf16.msra.mxu0 0
  %450 = vmatprep.subr.bf16.mxu0 0
  %451 = vmatpush1.bf16.msra.mxu0 0
  %452 = vmatprep.subr.bf16.mxu0 0
  %453 = vmatpush1.bf16.msra.mxu0 0
  %454 = vmatprep.subr.bf16.mxu0 0
  %455 = vmatpush1.bf16.msra.mxu0 0
  %456 = vmatprep.subr.bf16.mxu0 0
  %457 = vmatpush1.bf16.msra.mxu0 0
  %458 = vmatprep.subr.bf16.mxu0 0
  %459 = vmatpush1.bf16.msra.mxu0 0
  %460 = vmatprep.subr.bf16.mxu0 0
  %461 = vmatpush1.bf16.msra.mxu0 0
  %462 = vmatprep.subr.bf16.mxu0 0
  %463 = vmatpush1.bf16.msra.mxu0 0
  %464 = vmatprep.mubr.bf16.mxu0 0
  %465 = vmatmul.mubr.bf16.gmra.mrb[0].mxu0 %v430
  %v466 = vpop.f32.mrb[0].mxu0
  %v467 = vadd.f32 0.0, %v466
  %v468 = vpop.f32.mrb[0].mxu0
  %v469 = vpop.f32.mrb[0].mxu0
  %v470 = vpop.f32.mrb[0].mxu0
  %471 = vdwg.mxu0
  %v473 = vrot.slane %v467, 4
  %v475 = vadd.f32 %v136, %v473
  %v476 = vxor.u32 %v475, 2147483648
  %v477 = vmul.f32 %v476, 1.442695
  %v478 = vpow.pop %v477
  %v479 = vadd.f32 %v478, 1.0
  %v480 = vrcp.pop %v479
  %v481 = vmul.f32 1.0, %v480
  %v482 = vtanh.pop %v475
  %v484 = vrot.slane %v326, 4
  %485 = vrot.lane.b32.xlu0 %v484, 32
  %v486 = vpop.permute.xlu0 %485
  %v488 = vmul.f32 %v481, %v486
  %490 = vrot.lane.b32.xlu0 %v482, 64
  %v491 = vpop.permute.xlu0 %490
  %v493 = vmul.f32 %v481, %v491
  %495 = vrot.lane.b32.xlu0 %v493, 32
  %v496 = vpop.permute.xlu0 %495
  %v498 = vadd.f32 %v488, %v496
  %v499 = vtanh.pop %v498
  %501 = vrot.lane.b32.xlu0 %v499, 64
  %v502 = vpop.permute.xlu0 %501
  %v504 = vmul.f32 %v481, %v502
  %v506 = vrot.slane %v504, 4
  %507 = vrot.lane.b32.xlu0 %v506, 32
  %v508 = vpop.permute.xlu0 %507
  %v510 = vsel %vm58, %v508, %v320
  %v512 = vrot.slane %v498, 4
  %513 = vrot.lane.b32.xlu0 %v512, 96
  %v514 = vpop.permute.xlu0 %513
  %v516 = vsel %vm58, %v514, %v326
  %v517 = vsel %vm58, %v508, 0.0
  %519 = vrot.lane.b32.xlu0 %v517, 32
  %v520 = vpop.permute.xlu0 %519
  %522 = vst.msk [vmem:[#allocation2 + $0xc] sm:$0x3] %vm331, %v520
  %v523 = vpack.c.bf16 %v416, %v416
  %v525 = vsel %vm158, %v523, 0
  %527 = vmatprep.subr.bf16.mxu0 0
  %528 = vmatpush1.bf16.msra.mxu0 %v154
  %529 = vmatprep.subr.bf16.mxu0 0
  %530 = vmatpush1.bf16.msra.mxu0 %v155
  %531 = vmatprep.subr.bf16.mxu0 0
  %532 = vmatpush1.bf16.msra.mxu0 0
  %533 = vmatprep.subr.bf16.mxu0 0
  %534 = vmatpush1.bf16.msra.mxu0 0
  %535 = vmatprep.subr.bf16.mxu0 0
  %536 = vmatpush1.bf16.msra.mxu0 0
  %537 = vmatprep.subr.bf16.mxu0 0
  %538 = vmatpush1.bf16.msra.mxu0 0
  %539 = vmatprep.subr.bf16.mxu0 0
  %540 = vmatpush1.bf16.msra.mxu0 0
  %541 = vmatprep.subr.bf16.mxu0 0
  %542 = vmatpush1.bf16.msra.mxu0 0
  %543 = vmatprep.subr.bf16.mxu0 0
  %544 = vmatpush1.bf16.msra.mxu0 0
  %545 = vmatprep.subr.bf16.mxu0 0
  %546 = vmatpush1.bf16.msra.mxu0 0
  %547 = vmatprep.subr.bf16.mxu0 0
  %548 = vmatpush1.bf16.msra.mxu0 0
  %549 = vmatprep.subr.bf16.mxu0 0
  %550 = vmatpush1.bf16.msra.mxu0 0
  %551 = vmatprep.subr.bf16.mxu0 0
  %552 = vmatpush1.bf16.msra.mxu0 0
  %553 = vmatprep.subr.bf16.mxu0 0
  %554 = vmatpush1.bf16.msra.mxu0 0
  %555 = vmatprep.subr.bf16.mxu0 0
  %556 = vmatpush1.bf16.msra.mxu0 0
  %557 = vmatprep.subr.bf16.mxu0 0
  %558 = vmatpush1.bf16.msra.mxu0 0
  %559 = vmatprep.mubr.bf16.mxu0 0
  %560 = vmatmul.mubr.bf16.gmra.mrb[0].mxu0 %v525
  %v561 = vpop.f32.mrb[0].mxu0
  %v562 = vadd.f32 0.0, %v561
  %v563 = vpop.f32.mrb[0].mxu0
  %v564 = vpop.f32.mrb[0].mxu0
  %v565 = vpop.f32.mrb[0].mxu0
  %566 = vdwg.mxu0
  %v568 = vrot.slane %v562, 4
  %v570 = vadd.f32 %v130, %v568
  %v571 = vxor.u32 %v570, 2147483648
  %v572 = vmul.f32 %v571, 1.442695
  %v573 = vpow.pop %v572
  %v574 = vadd.f32 %v573, 1.0
  %v575 = vrcp.pop %v574
  %v576 = vmul.f32 1.0, %v575
  %v577 = vtanh.pop %v570
  %v579 = vrot.slane %v425, 4
  %580 = vrot.lane.b32.xlu0 %v579, 32
  %v581 = vpop.permute.xlu0 %580
  %v583 = vmul.f32 %v576, %v581
  %585 = vrot.lane.b32.xlu0 %v577, 64
  %v586 = vpop.permute.xlu0 %585
  %v588 = vmul.f32 %v576, %v586
  %590 = vrot.lane.b32.xlu0 %v588, 32
  %v591 = vpop.permute.xlu0 %590
  %v593 = vadd.f32 %v583, %v591
  %v594 = vtanh.pop %v593
  %596 = vrot.lane.b32.xlu0 %v594, 64
  %v597 = vpop.permute.xlu0 %596
  %v599 = vmul.f32 %v576, %v597
  %v601 = vrot.slane %v599, 4
  %602 = vrot.lane.b32.xlu0 %v601, 32
  %v603 = vpop.permute.xlu0 %602
  %v605 = vsel %vm54, %v603, %v416
  %v607 = vrot.slane %v593, 4
  %608 = vrot.lane.b32.xlu0 %v607, 96
  %v609 = vpop.permute.xlu0 %608
  %v611 = vsel %vm54, %v609, %v425
  %v612 = vsel %vm54, %v603, 0.0
  %613 = vst.msk [vmem:[#allocation2 + $0x4] sm:$0x3] %vm233, %v612
  %v614 = vpack.c.bf16 %v510, %v510
  %v616 = vsel %vm158, %v614, 0
  %618 = vmatprep.subr.bf16.mxu0 0
  %619 = vmatpush1.bf16.msra.mxu0 %v243
  %620 = vmatprep.subr.bf16.mxu0 0
  %621 = vmatpush1.bf16.msra.mxu0 %v244
  %622 = vmatprep.subr.bf16.mxu0 0
  %623 = vmatpush1.bf16.msra.mxu0 0
  %624 = vmatprep.subr.bf16.mxu0 0
  %625 = vmatpush1.bf16.msra.mxu0 0
  %626 = vmatprep.subr.bf16.mxu0 0
  %627 = vmatpush1.bf16.msra.mxu0 0
  %628 = vmatprep.subr.bf16.mxu0 0
  %629 = vmatpush1.bf16.msra.mxu0 0
  %630 = vmatprep.subr.bf16.mxu0 0
  %631 = vmatpush1.bf16.msra.mxu0 0
  %632 = vmatprep.subr.bf16.mxu0 0
  %633 = vmatpush1.bf16.msra.mxu0 0
  %634 = vmatprep.subr.bf16.mxu0 0
  %635 = vmatpush1.bf16.msra.mxu0 0
  %636 = vmatprep.subr.bf16.mxu0 0
  %637 = vmatpush1.bf16.msra.mxu0 0
  %638 = vmatprep.subr.bf16.mxu0 0
  %639 = vmatpush1.bf16.msra.mxu0 0
  %640 = vmatprep.subr.bf16.mxu0 0
  %641 = vmatpush1.bf16.msra.mxu0 0
  %642 = vmatprep.subr.bf16.mxu0 0
  %643 = vmatpush1.bf16.msra.mxu0 0
  %644 = vmatprep.subr.bf16.mxu0 0
  %645 = vmatpush1.bf16.msra.mxu0 0
  %646 = vmatprep.subr.bf16.mxu0 0
  %647 = vmatpush1.bf16.msra.mxu0 0
  %648 = vmatprep.subr.bf16.mxu0 0
  %649 = vmatpush1.bf16.msra.mxu0 0
  %650 = vmatprep.mubr.bf16.mxu0 0
  %651 = vmatmul.mubr.bf16.gmra.mrb[0].mxu0 %v616
  %v652 = vpop.f32.mrb[0].mxu0
  %v653 = vadd.f32 0.0, %v652
  %v654 = vpop.f32.mrb[0].mxu0
  %v655 = vpop.f32.mrb[0].mxu0
  %v656 = vpop.f32.mrb[0].mxu0
  %657 = vdwg.mxu0
  %v659 = vrot.slane %v653, 6
  %v661 = vadd.f32 %v136, %v659
  %v662 = vxor.u32 %v661, 2147483648
  %v663 = vmul.f32 %v662, 1.442695
  %v664 = vpow.pop %v663
  %v665 = vadd.f32 %v664, 1.0
  %v666 = vrcp.pop %v665
  %v667 = vmul.f32 1.0, %v666
  %v668 = vtanh.pop %v661
  %v670 = vrot.slane %v516, 6
  %671 = vrot.lane.b32.xlu0 %v670, 32
  %v672 = vpop.permute.xlu0 %671
  %v674 = vmul.f32 %v667, %v672
  %676 = vrot.lane.b32.xlu0 %v668, 64
  %v677 = vpop.permute.xlu0 %676
  %v679 = vmul.f32 %v667, %v677
  %681 = vrot.lane.b32.xlu0 %v679, 32
  %v682 = vpop.permute.xlu0 %681
  %v684 = vadd.f32 %v674, %v682
  %v685 = vtanh.pop %v684
  %687 = vrot.lane.b32.xlu0 %v685, 64
  %v688 = vpop.permute.xlu0 %687
  %v690 = vmul.f32 %v667, %v688
  %v692 = vrot.slane %v690, 2
  %693 = vrot.lane.b32.xlu0 %v692, 32
  %v694 = vpop.permute.xlu0 %693
  %v696 = vsel %vm57, %v694, %v510
  %v698 = vrot.slane %v684, 2
  %699 = vrot.lane.b32.xlu0 %v698, 96
  %v700 = vpop.permute.xlu0 %699
  %v702 = vsel %vm57, %v700, %v516
  %v703 = vsel %vm57, %v694, 0.0
  %705 = vrot.lane.b32.xlu0 %v703, 32
  %v706 = vpop.permute.xlu0 %705
  %708 = vst.msk [vmem:[#allocation2 + $0xa] sm:$0x3] %vm331, %v706
  %v709 = vpack.c.bf16 %v605, %v605
  %v711 = vsel %vm158, %v709, 0
  %713 = vmatprep.subr.bf16.mxu0 0
  %714 = vmatpush1.bf16.msra.mxu0 %v154
  %715 = vmatprep.subr.bf16.mxu0 0
  %716 = vmatpush1.bf16.msra.mxu0 %v155
  %717 = vmatprep.subr.bf16.mxu0 0
  %718 = vmatpush1.bf16.msra.mxu0 0
  %719 = vmatprep.subr.bf16.mxu0 0
  %720 = vmatpush1.bf16.msra.mxu0 0
  %721 = vmatprep.subr.bf16.mxu0 0
  %722 = vmatpush1.bf16.msra.mxu0 0
  %723 = vmatprep.subr.bf16.mxu0 0
  %724 = vmatpush1.bf16.msra.mxu0 0
  %725 = vmatprep.subr.bf16.mxu0 0
  %726 = vmatpush1.bf16.msra.mxu0 0
  %727 = vmatprep.subr.bf16.mxu0 0
  %728 = vmatpush1.bf16.msra.mxu0 0
  %729 = vmatprep.subr.bf16.mxu0 0
  %730 = vmatpush1.bf16.msra.mxu0 0
  %731 = vmatprep.subr.bf16.mxu0 0
  %732 = vmatpush1.bf16.msra.mxu0 0
  %733 = vmatprep.subr.bf16.mxu0 0
  %734 = vmatpush1.bf16.msra.mxu0 0
  %735 = vmatprep.subr.bf16.mxu0 0
  %736 = vmatpush1.bf16.msra.mxu0 0
  %737 = vmatprep.subr.bf16.mxu0 0
  %738 = vmatpush1.bf16.msra.mxu0 0
  %739 = vmatprep.subr.bf16.mxu0 0
  %740 = vmatpush1.bf16.msra.mxu0 0
  %741 = vmatprep.subr.bf16.mxu0 0
  %742 = vmatpush1.bf16.msra.mxu0 0
  %743 = vmatprep.subr.bf16.mxu0 0
  %744 = vmatpush1.bf16.msra.mxu0 0
  %745 = vmatprep.mubr.bf16.mxu0 0
  %746 = vmatmul.mubr.bf16.gmra.mrb[0].mxu0 %v711
  %v747 = vpop.f32.mrb[0].mxu0
  %v748 = vadd.f32 0.0, %v747
  %v749 = vpop.f32.mrb[0].mxu0
  %v750 = vpop.f32.mrb[0].mxu0
  %v751 = vpop.f32.mrb[0].mxu0
  %752 = vdwg.mxu0
  %v754 = vrot.slane %v748, 2
  %v756 = vadd.f32 %v130, %v754
  %v757 = vxor.u32 %v756, 2147483648
  %v758 = vmul.f32 %v757, 1.442695
  %v759 = vpow.pop %v758
  %v760 = vadd.f32 %v759, 1.0
  %v761 = vrcp.pop %v760
  %v762 = vmul.f32 1.0, %v761
  %v763 = vtanh.pop %v756
  %v765 = vrot.slane %v611, 2
  %766 = vrot.lane.b32.xlu0 %v765, 32
  %v767 = vpop.permute.xlu0 %766
  %v769 = vmul.f32 %v762, %v767
  %771 = vrot.lane.b32.xlu0 %v763, 64
  %v772 = vpop.permute.xlu0 %771
  %v774 = vmul.f32 %v762, %v772
  %776 = vrot.lane.b32.xlu0 %v774, 32
  %v777 = vpop.permute.xlu0 %776
  %v779 = vadd.f32 %v769, %v777
  %v780 = vtanh.pop %v779
  %782 = vrot.lane.b32.xlu0 %v780, 64
  %v783 = vpop.permute.xlu0 %782
  %v785 = vmul.f32 %v762, %v783
  %v787 = vrot.slane %v785, 6
  %788 = vrot.lane.b32.xlu0 %v787, 32
  %v789 = vpop.permute.xlu0 %788
  %v791 = vsel %vm55, %v789, %v605
  %v793 = vrot.slane %v779, 6
  %794 = vrot.lane.b32.xlu0 %v793, 96
  %v795 = vpop.permute.xlu0 %794
  %v797 = vsel %vm55, %v795, %v611
  %v798 = vsel %vm55, %v789, 0.0
  %799 = vst.msk [vmem:[#allocation2 + $0x6] sm:$0x3] %vm233, %v798
  %v800 = vpack.c.bf16 %v696, %v696
  %v802 = vsel %vm158, %v800, 0
  %804 = vmatprep.subr.bf16.mxu0 0
  %805 = vmatpush1.bf16.msra.mxu0 %v243
  %806 = vmatprep.subr.bf16.mxu0 0
  %807 = vmatpush1.bf16.msra.mxu0 %v244
  %808 = vmatprep.subr.bf16.mxu0 0
  %809 = vmatpush1.bf16.msra.mxu0 0
  %810 = vmatprep.subr.bf16.mxu0 0
  %811 = vmatpush1.bf16.msra.mxu0 0
  %812 = vmatprep.subr.bf16.mxu0 0
  %813 = vmatpush1.bf16.msra.mxu0 0
  %814 = vmatprep.subr.bf16.mxu0 0
  %815 = vmatpush1.bf16.msra.mxu0 0
  %816 = vmatprep.subr.bf16.mxu0 0
  %817 = vmatpush1.bf16.msra.mxu0 0
  %818 = vmatprep.subr.bf16.mxu0 0
  %819 = vmatpush1.bf16.msra.mxu0 0
  %820 = vmatprep.subr.bf16.mxu0 0
  %821 = vmatpush1.bf16.msra.mxu0 0
  %822 = vmatprep.subr.bf16.mxu0 0
  %823 = vmatpush1.bf16.msra.mxu0 0
  %824 = vmatprep.subr.bf16.mxu0 0
  %825 = vmatpush1.bf16.msra.mxu0 0
  %826 = vmatprep.subr.bf16.mxu0 0
  %827 = vmatpush1.bf16.msra.mxu0 0
  %828 = vmatprep.subr.bf16.mxu0 0
  %829 = vmatpush1.bf16.msra.mxu0 0
  %830 = vmatprep.subr.bf16.mxu0 0
  %831 = vmatpush1.bf16.msra.mxu0 0
  %832 = vmatprep.subr.bf16.mxu0 0
  %833 = vmatpush1.bf16.msra.mxu0 0
  %834 = vmatprep.subr.bf16.mxu0 0
  %835 = vmatpush1.bf16.msra.mxu0 0
  %836 = vmatprep.mubr.bf16.mxu0 0
  %837 = vmatmul.mubr.bf16.gmra.mrb[0].mxu0 %v802
  %v838 = vpop.f32.mrb[0].mxu0
  %v839 = vadd.f32 0.0, %v838
  %v840 = vpop.f32.mrb[0].mxu0
  %v841 = vpop.f32.mrb[0].mxu0
  %v842 = vpop.f32.mrb[0].mxu0
  %843 = vdwg.mxu0
  %v844 = vadd.f32 %v136, %v839
  %v845 = vxor.u32 %v844, 2147483648
  %v846 = vmul.f32 %v845, 1.442695
  %v847 = vpow.pop %v846
  %v848 = vadd.f32 %v847, 1.0
  %v849 = vrcp.pop %v848
  %v850 = vmul.f32 1.0, %v849
  %v851 = vtanh.pop %v844
  %853 = vrot.lane.b32.xlu0 %v702, 32
  %v854 = vpop.permute.xlu0 %853
  %v856 = vmul.f32 %v850, %v854
  %858 = vrot.lane.b32.xlu0 %v851, 64
  %v859 = vpop.permute.xlu0 %858
  %v861 = vmul.f32 %v850, %v859
  %863 = vrot.lane.b32.xlu0 %v861, 32
  %v864 = vpop.permute.xlu0 %863
  %v866 = vadd.f32 %v856, %v864
  %v867 = vtanh.pop %v866
  %869 = vrot.lane.b32.xlu0 %v867, 64
  %v870 = vpop.permute.xlu0 %869
  %v872 = vmul.f32 %v850, %v870
  %874 = vrot.lane.b32.xlu0 %v696, 96
  %v875 = vpop.permute.xlu0 %874
  %v877 = vsel %vm56, %v872, %v875
  %v878 = vsel %vm56, %v866, %v854
  %v879 = vsel %vm56, %v872, 0.0
  %881 = vrot.lane.b32.xlu0 %v879, 64
  %v882 = vpop.permute.xlu0 %881
  %884 = vst.msk [vmem:[#allocation2 + $0x8] sm:$0x3] %vm331, %v882
  %v885 = vpack.c.bf16 %v791, %v791
  %v887 = vsel %vm158, %v885, 0
  %889 = vmatprep.subr.bf16.mxu0 0
  %890 = vmatpush1.bf16.msra.mxu0 %v154
  %891 = vmatprep.subr.bf16.mxu0 0
  %892 = vmatpush1.bf16.msra.mxu0 %v155
  %893 = vmatprep.subr.bf16.mxu0 0
  %894 = vmatpush1.bf16.msra.mxu0 0
  %895 = vmatprep.subr.bf16.mxu0 0
  %896 = vmatpush1.bf16.msra.mxu0 0
  %897 = vmatprep.subr.bf16.mxu0 0
  %898 = vmatpush1.bf16.msra.mxu0 0
  %899 = vmatprep.subr.bf16.mxu0 0
  %900 = vmatpush1.bf16.msra.mxu0 0
  %901 = vmatprep.subr.bf16.mxu0 0
  %902 = vmatpush1.bf16.msra.mxu0 0
  %903 = vmatprep.subr.bf16.mxu0 0
  %904 = vmatpush1.bf16.msra.mxu0 0
  %905 = vmatprep.subr.bf16.mxu0 0
  %906 = vmatpush1.bf16.msra.mxu0 0
  %907 = vmatprep.subr.bf16.mxu0 0
  %908 = vmatpush1.bf16.msra.mxu0 0
  %909 = vmatprep.subr.bf16.mxu0 0
  %910 = vmatpush1.bf16.msra.mxu0 0
  %911 = vmatprep.subr.bf16.mxu0 0
  %912 = vmatpush1.bf16.msra.mxu0 0
  %913 = vmatprep.subr.bf16.mxu0 0
  %914 = vmatpush1.bf16.msra.mxu0 0
  %915 = vmatprep.subr.bf16.mxu0 0
  %916 = vmatpush1.bf16.msra.mxu0 0
  %917 = vmatprep.subr.bf16.mxu0 0
  %918 = vmatpush1.bf16.msra.mxu0 0
  %919 = vmatprep.subr.bf16.mxu0 0
  %920 = vmatpush1.bf16.msra.mxu0 0
  %921 = vmatprep.mubr.bf16.mxu0 0
  %922 = vmatmul.mubr.bf16.gmra.mrb[0].mxu0 %v887
  %v923 = vpop.f32.mrb[0].mxu0
  %v924 = vadd.f32 0.0, %v923
  %v925 = vpop.f32.mrb[0].mxu0
  %v926 = vpop.f32.mrb[0].mxu0
  %v927 = vpop.f32.mrb[0].mxu0
  %928 = vdwg.mxu0
  %v929 = vadd.f32 %v134, %v924
  %v930 = vxor.u32 %v929, 2147483648
  %v931 = vmul.f32 %v930, 1.442695
  %v932 = vpow.pop %v931
  %v933 = vadd.f32 %v932, 1.0
  %v934 = vrcp.pop %v933
  %v935 = vmul.f32 1.0, %v934
  %v936 = vtanh.pop %v929
  %938 = vrot.lane.b32.xlu0 %v797, 32
  %v939 = vpop.permute.xlu0 %938
  %v941 = vmul.f32 %v935, %v939
  %943 = vrot.lane.b32.xlu0 %v936, 64
  %v944 = vpop.permute.xlu0 %943
  %v946 = vmul.f32 %v935, %v944
  %948 = vrot.lane.b32.xlu0 %v946, 32
  %v949 = vpop.permute.xlu0 %948
  %v951 = vadd.f32 %v941, %v949
  %v952 = vtanh.pop %v951
  %954 = vrot.lane.b32.xlu0 %v952, 64
  %v955 = vpop.permute.xlu0 %954
  %v957 = vmul.f32 %v935, %v955
  %959 = vrot.lane.b32.xlu0 %v791, 96
  %v960 = vpop.permute.xlu0 %959
  %v962 = vsel %vm56, %v957, %v960
  %v963 = vsel %vm56, %v951, %v939
  %v964 = vsel %vm56, %v957, 0.0
  %966 = vrot.lane.b32.xlu0 %v964, 32
  %v967 = vpop.permute.xlu0 %966
  %969 = vst.msk [vmem:[#allocation2 + $0x8] sm:$0x3] %vm233, %v967
  %v970 = vpack.c.bf16 %v877, %v877
  %972 = vrot.lane.b32.xlu0 %v970, 32
  %v973 = vpop.permute.xlu0 %972
  %v975 = vsel %vm158, %v973, 0
  %977 = vmatprep.subr.bf16.mxu0 0
  %978 = vmatpush1.bf16.msra.mxu0 %v243
  %979 = vmatprep.subr.bf16.mxu0 0
  %980 = vmatpush1.bf16.msra.mxu0 %v244
  %981 = vmatprep.subr.bf16.mxu0 0
  %982 = vmatpush1.bf16.msra.mxu0 0
  %983 = vmatprep.subr.bf16.mxu0 0
  %984 = vmatpush1.bf16.msra.mxu0 0
  %985 = vmatprep.subr.bf16.mxu0 0
  %986 = vmatpush1.bf16.msra.mxu0 0
  %987 = vmatprep.subr.bf16.mxu0 0
  %988 = vmatpush1.bf16.msra.mxu0 0
  %989 = vmatprep.subr.bf16.mxu0 0
  %990 = vmatpush1.bf16.msra.mxu0 0
  %991 = vmatprep.subr.bf16.mxu0 0
  %992 = vmatpush1.bf16.msra.mxu0 0
  %993 = vmatprep.subr.bf16.mxu0 0
  %994 = vmatpush1.bf16.msra.mxu0 0
  %995 = vmatprep.subr.bf16.mxu0 0
  %996 = vmatpush1.bf16.msra.mxu0 0
  %997 = vmatprep.subr.bf16.mxu0 0
  %998 = vmatpush1.bf16.msra.mxu0 0
  %999 = vmatprep.subr.bf16.mxu0 0
  %1000 = vmatpush1.bf16.msra.mxu0 0
  %1001 = vmatprep.subr.bf16.mxu0 0
  %1002 = vmatpush1.bf16.msra.mxu0 0
  %1003 = vmatprep.subr.bf16.mxu0 0
  %1004 = vmatpush1.bf16.msra.mxu0 0
  %1005 = vmatprep.subr.bf16.mxu0 0
  %1006 = vmatpush1.bf16.msra.mxu0 0
  %1007 = vmatprep.subr.bf16.mxu0 0
  %1008 = vmatpush1.bf16.msra.mxu0 0
  %1009 = vmatprep.mubr.bf16.mxu0 0
  %1010 = vmatmul.mubr.bf16.gmra.mrb[0].mxu0 %v975
  %v1011 = vpop.f32.mrb[0].mxu0
  %v1012 = vadd.f32 0.0, %v1011
  %v1013 = vpop.f32.mrb[0].mxu0
  %v1014 = vpop.f32.mrb[0].mxu0
  %v1015 = vpop.f32.mrb[0].mxu0
  %1016 = vdwg.mxu0
  %v1018 = vrot.slane %v1012, 2
  %v1020 = vadd.f32 %v132, %v1018
  %v1021 = vxor.u32 %v1020, 2147483648
  %v1022 = vmul.f32 %v1021, 1.442695
  %v1023 = vpow.pop %v1022
  %v1024 = vadd.f32 %v1023, 1.0
  %v1025 = vrcp.pop %v1024
  %v1026 = vmul.f32 1.0, %v1025
  %v1027 = vtanh.pop %v1020
  %v1029 = vrot.slane %v878, 2
  %v1031 = vmul.f32 %v1026, %v1029
  %1033 = vrot.lane.b32.xlu0 %v1027, 64
  %v1034 = vpop.permute.xlu0 %1033
  %v1036 = vmul.f32 %v1026, %v1034
  %1038 = vrot.lane.b32.xlu0 %v1036, 32
  %v1039 = vpop.permute.xlu0 %1038
  %v1041 = vadd.f32 %v1031, %v1039
  %v1042 = vtanh.pop %v1041
  %1044 = vrot.lane.b32.xlu0 %v1042, 64
  %v1045 = vpop.permute.xlu0 %1044
  %v1047 = vmul.f32 %v1026, %v1045
  %v1049 = vrot.slane %v1047, 6
  %1050 = vrot.lane.b32.xlu0 %v1049, 32
  %v1051 = vpop.permute.xlu0 %1050
  %1054 = vrot.lane.b32.xlu0 %v877, 32
  %v1055 = vpop.permute.xlu0 %1054
  %v1057 = vsel %vm55, %v1051, %v1055
  %v1059 = vrot.slane %v1041, 6
  %1060 = vrot.lane.b32.xlu0 %v1059, 96
  %v1061 = vpop.permute.xlu0 %1060
  %1063 = vrot.lane.b32.xlu0 %v878, 96
  %v1064 = vpop.permute.xlu0 %1063
  %v1066 = vsel %vm55, %v1061, %v1064
  %v1067 = vsel %vm55, %v1051, 0.0
  %1069 = vrot.lane.b32.xlu0 %v1067, 32
  %v1070 = vpop.permute.xlu0 %1069
  %1072 = vst.msk [vmem:[#allocation2 + $0x6] sm:$0x3] %vm331, %v1070
  %v1073 = vpack.c.bf16 %v962, %v962
  %1075 = vrot.lane.b32.xlu0 %v1073, 32
  %v1076 = vpop.permute.xlu0 %1075
  %v1078 = vsel %vm158, %v1076, 0
  %1080 = vmatprep.subr.bf16.mxu0 0
  %1081 = vmatpush1.bf16.msra.mxu0 %v154
  %1082 = vmatprep.subr.bf16.mxu0 0
  %1083 = vmatpush1.bf16.msra.mxu0 %v155
  %1084 = vmatprep.subr.bf16.mxu0 0
  %1085 = vmatpush1.bf16.msra.mxu0 0
  %1086 = vmatprep.subr.bf16.mxu0 0
  %1087 = vmatpush1.bf16.msra.mxu0 0
  %1088 = vmatprep.subr.bf16.mxu0 0
  %1089 = vmatpush1.bf16.msra.mxu0 0
  %1090 = vmatprep.subr.bf16.mxu0 0
  %1091 = vmatpush1.bf16.msra.mxu0 0
  %1092 = vmatprep.subr.bf16.mxu0 0
  %1093 = vmatpush1.bf16.msra.mxu0 0
  %1094 = vmatprep.subr.bf16.mxu0 0
  %1095 = vmatpush1.bf16.msra.mxu0 0
  %1096 = vmatprep.subr.bf16.mxu0 0
  %1097 = vmatpush1.bf16.msra.mxu0 0
  %1098 = vmatprep.subr.bf16.mxu0 0
  %1099 = vmatpush1.bf16.msra.mxu0 0
  %1100 = vmatprep.subr.bf16.mxu0 0
  %1101 = vmatpush1.bf16.msra.mxu0 0
  %1102 = vmatprep.subr.bf16.mxu0 0
  %1103 = vmatpush1.bf16.msra.mxu0 0
  %1104 = vmatprep.subr.bf16.mxu0 0
  %1105 = vmatpush1.bf16.msra.mxu0 0
  %1106 = vmatprep.subr.bf16.mxu0 0
  %1107 = vmatpush1.bf16.msra.mxu0 0
  %1108 = vmatprep.subr.bf16.mxu0 0
  %1109 = vmatpush1.bf16.msra.mxu0 0
  %1110 = vmatprep.subr.bf16.mxu0 0
  %1111 = vmatpush1.bf16.msra.mxu0 0
  %1112 = vmatprep.mubr.bf16.mxu0 0
  %1113 = vmatmul.mubr.bf16.gmra.mrb[0].mxu0 %v1078
  %v1114 = vpop.f32.mrb[0].mxu0
  %v1115 = vadd.f32 0.0, %v1114
  %v1116 = vpop.f32.mrb[0].mxu0
  %v1117 = vpop.f32.mrb[0].mxu0
  %v1118 = vpop.f32.mrb[0].mxu0
  %1119 = vdwg.mxu0
  %v1121 = vrot.slane %v1115, 6
  %v1123 = vadd.f32 %v134, %v1121
  %v1124 = vxor.u32 %v1123, 2147483648
  %v1125 = vmul.f32 %v1124, 1.442695
  %v1126 = vpow.pop %v1125
  %v1127 = vadd.f32 %v1126, 1.0
  %v1128 = vrcp.pop %v1127
  %v1129 = vmul.f32 1.0, %v1128
  %v1130 = vtanh.pop %v1123
  %v1132 = vrot.slane %v963, 6
  %v1134 = vmul.f32 %v1129, %v1132
  %1136 = vrot.lane.b32.xlu0 %v1130, 64
  %v1137 = vpop.permute.xlu0 %1136
  %v1139 = vmul.f32 %v1129, %v1137
  %1141 = vrot.lane.b32.xlu0 %v1139, 32
  %v1142 = vpop.permute.xlu0 %1141
  %v1144 = vadd.f32 %v1134, %v1142
  %v1145 = vtanh.pop %v1144
  %1147 = vrot.lane.b32.xlu0 %v1145, 64
  %v1148 = vpop.permute.xlu0 %1147
  %v1150 = vmul.f32 %v1129, %v1148
  %v1152 = vrot.slane %v1150, 2
  %1153 = vrot.lane.b32.xlu0 %v1152, 32
  %v1154 = vpop.permute.xlu0 %1153
  %1157 = vrot.lane.b32.xlu0 %v962, 32
  %v1158 = vpop.permute.xlu0 %1157
  %v1160 = vsel %vm57, %v1154, %v1158
  %v1162 = vrot.slane %v1144, 2
  %1163 = vrot.lane.b32.xlu0 %v1162, 96
  %v1164 = vpop.permute.xlu0 %1163
  %1166 = vrot.lane.b32.xlu0 %v963, 96
  %v1167 = vpop.permute.xlu0 %1166
  %v1169 = vsel %vm57, %v1164, %v1167
  %v1170 = vsel %vm57, %v1154, 0.0
  %1171 = vst.msk [vmem:[#allocation2 + $0xa] sm:$0x3] %vm233, %v1170
  %v1172 = vpack.c.bf16 %v1057, %v1057
  %v1174 = vsel %vm158, %v1172, 0
  %1176 = vmatprep.subr.bf16.mxu0 0
  %1177 = vmatpush1.bf16.msra.mxu0 %v243
  %1178 = vmatprep.subr.bf16.mxu0 0
  %1179 = vmatpush1.bf16.msra.mxu0 %v244
  %1180 = vmatprep.subr.bf16.mxu0 0
  %1181 = vmatpush1.bf16.msra.mxu0 0
  %1182 = vmatprep.subr.bf16.mxu0 0
  %1183 = vmatpush1.bf16.msra.mxu0 0
  %1184 = vmatprep.subr.bf16.mxu0 0
  %1185 = vmatpush1.bf16.msra.mxu0 0
  %1186 = vmatprep.subr.bf16.mxu0 0
  %1187 = vmatpush1.bf16.msra.mxu0 0
  %1188 = vmatprep.subr.bf16.mxu0 0
  %1189 = vmatpush1.bf16.msra.mxu0 0
  %1190 = vmatprep.subr.bf16.mxu0 0
  %1191 = vmatpush1.bf16.msra.mxu0 0
  %1192 = vmatprep.subr.bf16.mxu0 0
  %1193 = vmatpush1.bf16.msra.mxu0 0
  %1194 = vmatprep.subr.bf16.mxu0 0
  %1195 = vmatpush1.bf16.msra.mxu0 0
  %1196 = vmatprep.subr.bf16.mxu0 0
  %1197 = vmatpush1.bf16.msra.mxu0 0
  %1198 = vmatprep.subr.bf16.mxu0 0
  %1199 = vmatpush1.bf16.msra.mxu0 0
  %1200 = vmatprep.subr.bf16.mxu0 0
  %1201 = vmatpush1.bf16.msra.mxu0 0
  %1202 = vmatprep.subr.bf16.mxu0 0
  %1203 = vmatpush1.bf16.msra.mxu0 0
  %1204 = vmatprep.subr.bf16.mxu0 0
  %1205 = vmatpush1.bf16.msra.mxu0 0
  %1206 = vmatprep.subr.bf16.mxu0 0
  %1207 = vmatpush1.bf16.msra.mxu0 0
  %1208 = vmatprep.mubr.bf16.mxu0 0
  %1209 = vmatmul.mubr.bf16.gmra.mrb[0].mxu0 %v1174
  %v1210 = vpop.f32.mrb[0].mxu0
  %v1211 = vadd.f32 0.0, %v1210
  %v1212 = vpop.f32.mrb[0].mxu0
  %v1213 = vpop.f32.mrb[0].mxu0
  %v1214 = vpop.f32.mrb[0].mxu0
  %1215 = vdwg.mxu0
  %v1217 = vrot.slane %v1211, 4
  %v1219 = vadd.f32 %v132, %v1217
  %v1220 = vxor.u32 %v1219, 2147483648
  %v1221 = vmul.f32 %v1220, 1.442695
  %v1222 = vpow.pop %v1221
  %v1223 = vadd.f32 %v1222, 1.0
  %v1224 = vrcp.pop %v1223
  %v1225 = vmul.f32 1.0, %v1224
  %v1226 = vtanh.pop %v1219
  %v1228 = vrot.slane %v1066, 4
  %1229 = vrot.lane.b32.xlu0 %v1228, 32
  %v1230 = vpop.permute.xlu0 %1229
  %v1232 = vmul.f32 %v1225, %v1230
  %1234 = vrot.lane.b32.xlu0 %v1226, 64
  %v1235 = vpop.permute.xlu0 %1234
  %v1237 = vmul.f32 %v1225, %v1235
  %1239 = vrot.lane.b32.xlu0 %v1237, 32
  %v1240 = vpop.permute.xlu0 %1239
  %v1242 = vadd.f32 %v1232, %v1240
  %v1243 = vtanh.pop %v1242
  %1245 = vrot.lane.b32.xlu0 %v1243, 64
  %v1246 = vpop.permute.xlu0 %1245
  %v1248 = vmul.f32 %v1225, %v1246
  %v1250 = vrot.slane %v1248, 4
  %1251 = vrot.lane.b32.xlu0 %v1250, 32
  %v1252 = vpop.permute.xlu0 %1251
  %v1254 = vsel %vm54, %v1252, %v1057
  %v1256 = vrot.slane %v1242, 4
  %1257 = vrot.lane.b32.xlu0 %v1256, 96
  %v1258 = vpop.permute.xlu0 %1257
  %v1260 = vsel %vm54, %v1258, %v1066
  %v1261 = vsel %vm54, %v1252, 0.0
  %1263 = vrot.lane.b32.xlu0 %v1261, 32
  %v1264 = vpop.permute.xlu0 %1263
  %1266 = vst.msk [vmem:[#allocation2 + $0x4] sm:$0x3] %vm331, %v1264
  %v1267 = vpack.c.bf16 %v1160, %v1160
  %v1269 = vsel %vm158, %v1267, 0
  %1271 = vmatprep.subr.bf16.mxu0 0
  %1272 = vmatpush1.bf16.msra.mxu0 %v154
  %1273 = vmatprep.subr.bf16.mxu0 0
  %1274 = vmatpush1.bf16.msra.mxu0 %v155
  %1275 = vmatprep.subr.bf16.mxu0 0
  %1276 = vmatpush1.bf16.msra.mxu0 0
  %1277 = vmatprep.subr.bf16.mxu0 0
  %1278 = vmatpush1.bf16.msra.mxu0 0
  %1279 = vmatprep.subr.bf16.mxu0 0
  %1280 = vmatpush1.bf16.msra.mxu0 0
  %1281 = vmatprep.subr.bf16.mxu0 0
  %1282 = vmatpush1.bf16.msra.mxu0 0
  %1283 = vmatprep.subr.bf16.mxu0 0
  %1284 = vmatpush1.bf16.msra.mxu0 0
  %1285 = vmatprep.subr.bf16.mxu0 0
  %1286 = vmatpush1.bf16.msra.mxu0 0
  %1287 = vmatprep.subr.bf16.mxu0 0
  %1288 = vmatpush1.bf16.msra.mxu0 0
  %1289 = vmatprep.subr.bf16.mxu0 0
  %1290 = vmatpush1.bf16.msra.mxu0 0
  %1291 = vmatprep.subr.bf16.mxu0 0
  %1292 = vmatpush1.bf16.msra.mxu0 0
  %1293 = vmatprep.subr.bf16.mxu0 0
  %1294 = vmatpush1.bf16.msra.mxu0 0
  %1295 = vmatprep.subr.bf16.mxu0 0
  %1296 = vmatpush1.bf16.msra.mxu0 0
  %1297 = vmatprep.subr.bf16.mxu0 0
  %1298 = vmatpush1.bf16.msra.mxu0 0
  %1299 = vmatprep.subr.bf16.mxu0 0
  %1300 = vmatpush1.bf16.msra.mxu0 0
  %1301 = vmatprep.subr.bf16.mxu0 0
  %1302 = vmatpush1.bf16.msra.mxu0 0
  %1303 = vmatprep.mubr.bf16.mxu0 0
  %1304 = vmatmul.mubr.bf16.gmra.mrb[0].mxu0 %v1269
  %v1305 = vpop.f32.mrb[0].mxu0
  %v1306 = vadd.f32 0.0, %v1305
  %v1307 = vpop.f32.mrb[0].mxu0
  %v1308 = vpop.f32.mrb[0].mxu0
  %v1309 = vpop.f32.mrb[0].mxu0
  %1310 = vdwg.mxu0
  %v1312 = vrot.slane %v1306, 4
  %v1314 = vadd.f32 %v134, %v1312
  %v1315 = vxor.u32 %v1314, 2147483648
  %v1316 = vmul.f32 %v1315, 1.442695
  %v1317 = vpow.pop %v1316
  %v1318 = vadd.f32 %v1317, 1.0
  %v1319 = vrcp.pop %v1318
  %v1320 = vmul.f32 1.0, %v1319
  %v1321 = vtanh.pop %v1314
  %v1323 = vrot.slane %v1169, 4
  %1324 = vrot.lane.b32.xlu0 %v1323, 32
  %v1325 = vpop.permute.xlu0 %1324
  %v1327 = vmul.f32 %v1320, %v1325
  %1329 = vrot.lane.b32.xlu0 %v1321, 64
  %v1330 = vpop.permute.xlu0 %1329
  %v1332 = vmul.f32 %v1320, %v1330
  %1334 = vrot.lane.b32.xlu0 %v1332, 32
  %v1335 = vpop.permute.xlu0 %1334
  %v1337 = vadd.f32 %v1327, %v1335
  %v1338 = vtanh.pop %v1337
  %1340 = vrot.lane.b32.xlu0 %v1338, 64
  %v1341 = vpop.permute.xlu0 %1340
  %v1343 = vmul.f32 %v1320, %v1341
  %v1345 = vrot.slane %v1343, 4
  %1346 = vrot.lane.b32.xlu0 %v1345, 32
  %v1347 = vpop.permute.xlu0 %1346
  %v1349 = vsel %vm58, %v1347, %v1160
  %v1351 = vrot.slane %v1337, 4
  %1352 = vrot.lane.b32.xlu0 %v1351, 96
  %v1353 = vpop.permute.xlu0 %1352
  %v1355 = vsel %vm58, %v1353, %v1169
  %v1356 = vsel %vm58, %v1347, 0.0
  %1357 = vst.msk [vmem:[#allocation2 + $0xc] sm:$0x3] %vm233, %v1356
  %v1358 = vpack.c.bf16 %v1254, %v1254
  %v1360 = vsel %vm158, %v1358, 0
  %1362 = vmatprep.subr.bf16.mxu0 0
  %1363 = vmatpush1.bf16.msra.mxu0 %v243
  %1364 = vmatprep.subr.bf16.mxu0 0
  %1365 = vmatpush1.bf16.msra.mxu0 %v244
  %1366 = vmatprep.subr.bf16.mxu0 0
  %1367 = vmatpush1.bf16.msra.mxu0 0
  %1368 = vmatprep.subr.bf16.mxu0 0
  %1369 = vmatpush1.bf16.msra.mxu0 0
  %1370 = vmatprep.subr.bf16.mxu0 0
  %1371 = vmatpush1.bf16.msra.mxu0 0
  %1372 = vmatprep.subr.bf16.mxu0 0
  %1373 = vmatpush1.bf16.msra.mxu0 0
  %1374 = vmatprep.subr.bf16.mxu0 0
  %1375 = vmatpush1.bf16.msra.mxu0 0
  %1376 = vmatprep.subr.bf16.mxu0 0
  %1377 = vmatpush1.bf16.msra.mxu0 0
  %1378 = vmatprep.subr.bf16.mxu0 0
  %1379 = vmatpush1.bf16.msra.mxu0 0
  %1380 = vmatprep.subr.bf16.mxu0 0
  %1381 = vmatpush1.bf16.msra.mxu0 0
  %1382 = vmatprep.subr.bf16.mxu0 0
  %1383 = vmatpush1.bf16.msra.mxu0 0
  %1384 = vmatprep.subr.bf16.mxu0 0
  %1385 = vmatpush1.bf16.msra.mxu0 0
  %1386 = vmatprep.subr.bf16.mxu0 0
  %1387 = vmatpush1.bf16.msra.mxu0 0
  %1388 = vmatprep.subr.bf16.mxu0 0
  %1389 = vmatpush1.bf16.msra.mxu0 0
  %1390 = vmatprep.subr.bf16.mxu0 0
  %1391 = vmatpush1.bf16.msra.mxu0 0
  %1392 = vmatprep.subr.bf16.mxu0 0
  %1393 = vmatpush1.bf16.msra.mxu0 0
  %1394 = vmatprep.mubr.bf16.mxu0 0
  %1395 = vmatmul.mubr.bf16.gmra.mrb[0].mxu0 %v1360
  %v1396 = vpop.f32.mrb[0].mxu0
  %v1397 = vadd.f32 0.0, %v1396
  %v1398 = vpop.f32.mrb[0].mxu0
  %v1399 = vpop.f32.mrb[0].mxu0
  %v1400 = vpop.f32.mrb[0].mxu0
  %1401 = vdwg.mxu0
  %v1403 = vrot.slane %v1397, 6
  %v1405 = vadd.f32 %v132, %v1403
  %v1406 = vxor.u32 %v1405, 2147483648
  %v1407 = vmul.f32 %v1406, 1.442695
  %v1408 = vpow.pop %v1407
  %v1409 = vadd.f32 %v1408, 1.0
  %v1410 = vrcp.pop %v1409
  %v1411 = vmul.f32 1.0, %v1410
  %v1412 = vtanh.pop %v1405
  %v1414 = vrot.slane %v1260, 6
  %1415 = vrot.lane.b32.xlu0 %v1414, 32
  %v1416 = vpop.permute.xlu0 %1415
  %v1418 = vmul.f32 %v1411, %v1416
  %1420 = vrot.lane.b32.xlu0 %v1412, 64
  %v1421 = vpop.permute.xlu0 %1420
  %v1423 = vmul.f32 %v1411, %v1421
  %1425 = vrot.lane.b32.xlu0 %v1423, 32
  %v1426 = vpop.permute.xlu0 %1425
  %v1428 = vadd.f32 %v1418, %v1426
  %v1429 = vtanh.pop %v1428
  %1431 = vrot.lane.b32.xlu0 %v1429, 64
  %v1432 = vpop.permute.xlu0 %1431
  %v1434 = vmul.f32 %v1411, %v1432
  %v1436 = vrot.slane %v1434, 2
  %1437 = vrot.lane.b32.xlu0 %v1436, 32
  %v1438 = vpop.permute.xlu0 %1437
  %v1440 = vsel %vm53, %v1438, %v1254
  %v1442 = vrot.slane %v1428, 2
  %1443 = vrot.lane.b32.xlu0 %v1442, 96
  %v1444 = vpop.permute.xlu0 %1443
  %v1446 = vsel %vm53, %v1444, %v1260
  %v1447 = vsel %vm53, %v1438, 0.0
  %1449 = vrot.lane.b32.xlu0 %v1447, 32
  %v1450 = vpop.permute.xlu0 %1449
  %1452 = vst.msk [vmem:[#allocation2 + $0x2] sm:$0x3] %vm331, %v1450
  %v1453 = vpack.c.bf16 %v1349, %v1349
  %v1455 = vsel %vm158, %v1453, 0
  %1457 = vmatprep.subr.bf16.mxu0 0
  %1458 = vmatpush1.bf16.msra.mxu0 %v154
  %1459 = vmatprep.subr.bf16.mxu0 0
  %1460 = vmatpush1.bf16.msra.mxu0 %v155
  %1461 = vmatprep.subr.bf16.mxu0 0
  %1462 = vmatpush1.bf16.msra.mxu0 0
  %1463 = vmatprep.subr.bf16.mxu0 0
  %1464 = vmatpush1.bf16.msra.mxu0 0
  %1465 = vmatprep.subr.bf16.mxu0 0
  %1466 = vmatpush1.bf16.msra.mxu0 0
  %1467 = vmatprep.subr.bf16.mxu0 0
  %1468 = vmatpush1.bf16.msra.mxu0 0
  %1469 = vmatprep.subr.bf16.mxu0 0
  %1470 = vmatpush1.bf16.msra.mxu0 0
  %1471 = vmatprep.subr.bf16.mxu0 0
  %1472 = vmatpush1.bf16.msra.mxu0 0
  %1473 = vmatprep.subr.bf16.mxu0 0
  %1474 = vmatpush1.bf16.msra.mxu0 0
  %1475 = vmatprep.subr.bf16.mxu0 0
  %1476 = vmatpush1.bf16.msra.mxu0 0
  %1477 = vmatprep.subr.bf16.mxu0 0
  %1478 = vmatpush1.bf16.msra.mxu0 0
  %1479 = vmatprep.subr.bf16.mxu0 0
  %1480 = vmatpush1.bf16.msra.mxu0 0
  %1481 = vmatprep.subr.bf16.mxu0 0
  %1482 = vmatpush1.bf16.msra.mxu0 0
  %1483 = vmatprep.subr.bf16.mxu0 0
  %1484 = vmatpush1.bf16.msra.mxu0 0
  %1485 = vmatprep.subr.bf16.mxu0 0
  %1486 = vmatpush1.bf16.msra.mxu0 0
  %1487 = vmatprep.subr.bf16.mxu0 0
  %1488 = vmatpush1.bf16.msra.mxu0 0
  %1489 = vmatprep.mubr.bf16.mxu0 0
  %1490 = vmatmul.mubr.bf16.gmra.mrb[0].mxu0 %v1455
  %v1491 = vpop.f32.mrb[0].mxu0
  %v1492 = vadd.f32 0.0, %v1491
  %v1493 = vpop.f32.mrb[0].mxu0
  %v1494 = vpop.f32.mrb[0].mxu0
  %v1495 = vpop.f32.mrb[0].mxu0
  %1496 = vdwg.mxu0
  %v1498 = vrot.slane %v1492, 2
  %v1500 = vadd.f32 %v134, %v1498
  %v1501 = vxor.u32 %v1500, 2147483648
  %v1502 = vmul.f32 %v1501, 1.442695
  %v1503 = vpow.pop %v1502
  %v1504 = vadd.f32 %v1503, 1.0
  %v1505 = vrcp.pop %v1504
  %v1506 = vmul.f32 1.0, %v1505
  %v1507 = vtanh.pop %v1500
  %v1509 = vrot.slane %v1355, 2
  %1510 = vrot.lane.b32.xlu0 %v1509, 32
  %v1511 = vpop.permute.xlu0 %1510
  %v1513 = vmul.f32 %v1506, %v1511
  %1515 = vrot.lane.b32.xlu0 %v1507, 64
  %v1516 = vpop.permute.xlu0 %1515
  %v1518 = vmul.f32 %v1506, %v1516
  %1520 = vrot.lane.b32.xlu0 %v1518, 32
  %v1521 = vpop.permute.xlu0 %1520
  %v1523 = vadd.f32 %v1513, %v1521
  %v1524 = vtanh.pop %v1523
  %1526 = vrot.lane.b32.xlu0 %v1524, 64
  %v1527 = vpop.permute.xlu0 %1526
  %v1529 = vmul.f32 %v1506, %v1527
  %v1531 = vrot.slane %v1529, 6
  %1532 = vrot.lane.b32.xlu0 %v1531, 32
  %v1533 = vpop.permute.xlu0 %1532
  %v1535 = vsel %vm59, %v1533, 0.0
  %1536 = vst.msk [vmem:[#allocation2 + $0xe] sm:$0x3] %vm233, %v1535
  %v1537 = vpack.c.bf16 %v1440, %v1440
  %v1539 = vsel %vm158, %v1537, 0
  %1541 = vmatprep.subr.bf16.mxu0 0
  %1542 = vmatpush1.bf16.msra.mxu0 %v243
  %1543 = vmatprep.subr.bf16.mxu0 0
  %1544 = vmatpush1.bf16.msra.mxu0 %v244
  %1545 = vmatprep.subr.bf16.mxu0 0
  %1546 = vmatpush1.bf16.msra.mxu0 0
  %1547 = vmatprep.subr.bf16.mxu0 0
  %1548 = vmatpush1.bf16.msra.mxu0 0
  %1549 = vmatprep.subr.bf16.mxu0 0
  %1550 = vmatpush1.bf16.msra.mxu0 0
  %1551 = vmatprep.subr.bf16.mxu0 0
  %1552 = vmatpush1.bf16.msra.mxu0 0
  %1553 = vmatprep.subr.bf16.mxu0 0
  %1554 = vmatpush1.bf16.msra.mxu0 0
  %1555 = vmatprep.subr.bf16.mxu0 0
  %1556 = vmatpush1.bf16.msra.mxu0 0
  %1557 = vmatprep.subr.bf16.mxu0 0
  %1558 = vmatpush1.bf16.msra.mxu0 0
  %1559 = vmatprep.subr.bf16.mxu0 0
  %1560 = vmatpush1.bf16.msra.mxu0 0
  %1561 = vmatprep.subr.bf16.mxu0 0
  %1562 = vmatpush1.bf16.msra.mxu0 0
  %1563 = vmatprep.subr.bf16.mxu0 0
  %1564 = vmatpush1.bf16.msra.mxu0 0
  %1565 = vmatprep.subr.bf16.mxu0 0
  %1566 = vmatpush1.bf16.msra.mxu0 0
  %1567 = vmatprep.subr.bf16.mxu0 0
  %1568 = vmatpush1.bf16.msra.mxu0 0
  %1569 = vmatprep.subr.bf16.mxu0 0
  %1570 = vmatpush1.bf16.msra.mxu0 0
  %1571 = vmatprep.subr.bf16.mxu0 0
  %1572 = vmatpush1.bf16.msra.mxu0 0
  %1573 = vmatprep.mubr.bf16.mxu0 0
  %1574 = vmatmul.mubr.bf16.gmra.mrb[0].mxu0 %v1539
  %v1575 = vpop.f32.mrb[0].mxu0
  %v1576 = vadd.f32 0.0, %v1575
  %v1577 = vpop.f32.mrb[0].mxu0
  %v1578 = vpop.f32.mrb[0].mxu0
  %v1579 = vpop.f32.mrb[0].mxu0
  %1580 = vdwg.mxu0
  %v1581 = vadd.f32 %v132, %v1576
  %v1582 = vxor.u32 %v1581, 2147483648
  %v1583 = vmul.f32 %v1582, 1.442695
  %v1584 = vpow.pop %v1583
  %v1585 = vadd.f32 %v1584, 1.0
  %v1586 = vrcp.pop %v1585
  %v1587 = vmul.f32 1.0, %v1586
  %v1588 = vtanh.pop %v1581
  %1590 = vrot.lane.b32.xlu0 %v1446, 32
  %v1591 = vpop.permute.xlu0 %1590
  %v1593 = vmul.f32 %v1587, %v1591
  %1595 = vrot.lane.b32.xlu0 %v1588, 64
  %v1596 = vpop.permute.xlu0 %1595
  %v1598 = vmul.f32 %v1587, %v1596
  %1600 = vrot.lane.b32.xlu0 %v1598, 32
  %v1601 = vpop.permute.xlu0 %1600
  %v1603 = vadd.f32 %v1593, %v1601
  %v1604 = vtanh.pop %v1603
  %1606 = vrot.lane.b32.xlu0 %v1604, 64
  %v1607 = vpop.permute.xlu0 %1606
  %v1609 = vmul.f32 %v1587, %v1607
  %v1610 = vsel %vm52, %v1609, 0.0
  %1612 = vrot.lane.b32.xlu0 %v1610, 64
  %v1613 = vpop.permute.xlu0 %1612
  %1615 = vst.msk [vmem:[#allocation2] sm:$0x3] %vm331, %v1613
  %v1616 = vld [vmem:[#allocation2] sm:$0xff]
  %v1617 = vld [vmem:[#allocation2 + $0x8] sm:$0xff]
  %v1618 = vpack.c.bf16 %v1617, %v1616
  %v1619 = vld [vmem:[%s6] sm:$0xff]
  %v1620 = vld [vmem:[%s6 + $0x8] sm:$0xff]
  %v1621 = vld [vmem:[%s6 + $0x10] sm:$0xff]
  %v1622 = vld [vmem:[%s6 + $0x18] sm:$0xff]
  %v1623 = vld [vmem:[%s6 + $0x20] sm:$0xff]
  %v1624 = vld [vmem:[%s6 + $0x28] sm:$0xff]
  %v1625 = vld [vmem:[%s6 + $0x30] sm:$0xff]
  %v1626 = vld [vmem:[%s6 + $0x38] sm:$0xff]
  %v1627 = vld [vmem:[%s9] sm:$0x3]
  %v1629 = vlaneseq
  %v1630 = vshrl.u32 %v1629, 7
  %v1631 = vsub.s32 0, %v1630
  %v1632 = vrot.slane %v1627, %v1631
  %v1633 = vlaneseq
  %v1634 = vshrl.u32 %v1633, 7
  %v1635 = vsub.s32 1, %v1634
  %v1636 = vrot.slane %v1627, %v1635
  %v1647 = vunpack.c.l.b16 %v1619
  %v1648 = vunpack.c.h.b16 %v1619
  %v1649 = vunpack.c.l.b16 %v1620
  %v1650 = vunpack.c.h.b16 %v1620
  %v1651 = vunpack.c.l.b16 %v1621
  %v1652 = vunpack.c.h.b16 %v1621
  %v1653 = vunpack.c.l.b16 %v1622
  %v1654 = vunpack.c.h.b16 %v1622
  %v1655 = vunpack.c.l.b16 %v1623
  %v1656 = vunpack.c.h.b16 %v1623
  %v1657 = vunpack.c.l.b16 %v1624
  %v1658 = vunpack.c.h.b16 %v1624
  %v1659 = vunpack.c.l.b16 %v1625
  %v1660 = vunpack.c.h.b16 %v1625
  %v1661 = vunpack.c.l.b16 %v1626
  %v1662 = vunpack.c.h.b16 %v1626
  %v1663 = vpack.c.b16 %v1649, %v1647
  %v1664 = vpack.c.b16 %v1650, %v1648
  %v1665 = vpack.c.b16 %v1653, %v1651
  %v1666 = vpack.c.b16 %v1654, %v1652
  %v1667 = vpack.c.b16 %v1657, %v1655
  %v1668 = vpack.c.b16 %v1658, %v1656
  %v1669 = vpack.c.b16 %v1661, %v1659
  %v1670 = vpack.c.b16 %v1662, %v1660
  %vm1679 = vcmask 523264
  %v1681 = vsel %vm1679, %v1618, 0
  %1683 = vmatprep.subr.bf16.mxu0 %v1664
  %1684 = vmatpush1.bf16.msra.mxu0 %v1663
  %1685 = vmatprep.subr.bf16.mxu0 %v1666
  %1686 = vmatpush1.bf16.msra.mxu0 %v1665
  %1687 = vmatprep.subr.bf16.mxu0 %v1668
  %1688 = vmatpush1.bf16.msra.mxu0 %v1667
  %1689 = vmatprep.subr.bf16.mxu0 %v1670
  %1690 = vmatpush1.bf16.msra.mxu0 %v1669
  %1691 = vmatprep.subr.bf16.mxu0 0
  %1692 = vmatpush1.bf16.msra.mxu0 0
  %1693 = vmatprep.subr.bf16.mxu0 0
  %1694 = vmatpush1.bf16.msra.mxu0 0
  %1695 = vmatprep.subr.bf16.mxu0 0
  %1696 = vmatpush1.bf16.msra.mxu0 0
  %1697 = vmatprep.subr.bf16.mxu0 0
  %1698 = vmatpush1.bf16.msra.mxu0 0
  %1699 = vmatprep.subr.bf16.mxu0 0
  %1700 = vmatpush1.bf16.msra.mxu0 0
  %1701 = vmatprep.subr.bf16.mxu0 0
  %1702 = vmatpush1.bf16.msra.mxu0 0
  %1703 = vmatprep.subr.bf16.mxu0 0
  %1704 = vmatpush1.bf16.msra.mxu0 0
  %1705 = vmatprep.subr.bf16.mxu0 0
  %1706 = vmatpush1.bf16.msra.mxu0 0
  %1707 = vmatprep.subr.bf16.mxu0 0
  %1708 = vmatpush1.bf16.msra.mxu0 0
  %1709 = vmatprep.subr.bf16.mxu0 0
  %1710 = vmatpush1.bf16.msra.mxu0 0
  %1711 = vmatprep.subr.bf16.mxu0 0
  %1712 = vmatpush1.bf16.msra.mxu0 0
  %1713 = vmatprep.subr.bf16.mxu0 0
  %1714 = vmatpush1.bf16.msra.mxu0 0
  %1715 = vmatprep.mubr.bf16.mxu0 0
  %1716 = vmatmul.mubr.bf16.gmra.mrb[0].mxu0 %v1681
  %v1717 = vpop.f32.mrb[0].mxu0
  %v1718 = vadd.f32 %v1632, %v1717
  %v1719 = vpop.f32.mrb[0].mxu0
  %v1720 = vadd.f32 %v1636, %v1719
  %v1721 = vpop.f32.mrb[0].mxu0
  %v1722 = vadd.f32 %v1632, %v1721
  %v1723 = vpop.f32.mrb[0].mxu0
  %v1724 = vadd.f32 %v1636, %v1723
  %1725 = vdwg.mxu0
  %v1726 = vld [vmem:[%s7] sm:$0xf]
  %v1727 = vld [vmem:[%s7 + $0x4] sm:$0xf]
  %v1728 = vld [vmem:[%s7 + $0x8] sm:$0xf]
  %v1729 = vld [vmem:[%s7 + $0xc] sm:$0xf]
  %v1730 = vld [vmem:[%s8] sm:$0xf]
  %v1731 = vld [vmem:[%s8 + $0x4] sm:$0xf]
  %v1732 = vld [vmem:[%s8 + $0x8] sm:$0xf]
  %v1733 = vld [vmem:[%s8 + $0xc] sm:$0xf]
  %v1738 = vunpack.c.l.b16 %v1726
  %v1739 = vunpack.c.l.b16 %v1727
  %v1740 = vunpack.c.l.b16 %v1728
  %v1741 = vunpack.c.l.b16 %v1729
  %v1742 = vpack.c.b16 %v1739, %v1738
  %v1743 = vpack.c.b16 %v1741, %v1740
  %1746 = vmatprep.subr.bf16.mxu0 0
  %1747 = vmatpush1.bf16.msra.mxu0 %v1742
  %1748 = vmatprep.subr.bf16.mxu0 0
  %1749 = vmatpush1.bf16.msra.mxu0 %v1743
  %1750 = vmatprep.subr.bf16.mxu0 0
  %1751 = vmatpush1.bf16.msra.mxu0 0
  %1752 = vmatprep.subr.bf16.mxu0 0
  %1753 = vmatpush1.bf16.msra.mxu0 0
  %1754 = vmatprep.subr.bf16.mxu0 0
  %1755 = vmatpush1.bf16.msra.mxu0 0
  %1756 = vmatprep.subr.bf16.mxu0 0
  %1757 = vmatpush1.bf16.msra.mxu0 0
  %1758 = vmatprep.subr.bf16.mxu0 0
  %1759 = vmatpush1.bf16.msra.mxu0 0
  %1760 = vmatprep.subr.bf16.mxu0 0
  %1761 = vmatpush1.bf16.msra.mxu0 0
  %1762 = vmatprep.subr.bf16.mxu0 0
  %1763 = vmatpush1.bf16.msra.mxu0 0
  %1764 = vmatprep.subr.bf16.mxu0 0
  %1765 = vmatpush1.bf16.msra.mxu0 0
  %1766 = vmatprep.subr.bf16.mxu0 0
  %1767 = vmatpush1.bf16.msra.mxu0 0
  %1768 = vmatprep.subr.bf16.mxu0 0
  %1769 = vmatpush1.bf16.msra.mxu0 0
  %1770 = vmatprep.subr.bf16.mxu0 0
  %1771 = vmatpush1.bf16.msra.mxu0 0
  %1772 = vmatprep.subr.bf16.mxu0 0
  %1773 = vmatpush1.bf16.msra.mxu0 0
  %1774 = vmatprep.subr.bf16.mxu0 0
  %1775 = vmatpush1.bf16.msra.mxu0 0
  %1776 = vmatprep.subr.bf16.mxu0 0
  %1777 = vmatpush1.bf16.msra.mxu0 0
  %1778 = vmatprep.mubr.bf16.mxu0 0
  %1779 = vmatmul.mubr.bf16.gmra.mrb[0].mxu0 %v160
  %v1780 = vpop.f32.mrb[0].mxu0
  %v1781 = vadd.f32 0.0, %v1780
  %v1782 = vpop.f32.mrb[0].mxu0
  %v1783 = vpop.f32.mrb[0].mxu0
  %v1784 = vpop.f32.mrb[0].mxu0
  %1785 = vdwg.mxu0
  %v1786 = vadd.f32 %v1718, %v1781
  %v1787 = vxor.u32 %v1786, 2147483648
  %v1788 = vmul.f32 %v1787, 1.442695
  %v1789 = vpow.pop %v1788
  %v1790 = vadd.f32 %v1789, 1.0
  %v1791 = vrcp.pop %v1790
  %v1792 = vmul.f32 1.0, %v1791
  %v1793 = vtanh.pop %v1786
  %v1794 = vmul.f32 %v1792, 0.0
  %1796 = vrot.lane.b32.xlu0 %v1793, 64
  %v1797 = vpop.permute.xlu0 %1796
  %v1799 = vmul.f32 %v1792, %v1797
  %1801 = vrot.lane.b32.xlu0 %v1799, 32
  %v1802 = vpop.permute.xlu0 %1801
  %v1804 = vadd.f32 %v1794, %v1802
  %v1805 = vtanh.pop %v1804
  %1807 = vrot.lane.b32.xlu0 %v1805, 64
  %v1808 = vpop.permute.xlu0 %1807
  %v1810 = vmul.f32 %v1792, %v1808
  %v1811 = vsel %vm52, %v1810, 0.0
  %v1812 = vsel %vm52, %v1804, 0.0
  %1814 = vrot.lane.b32.xlu0 %v1811, 32
  %v1815 = vpop.permute.xlu0 %1814
  %1817 = vst.msk [vmem:[#allocation2] sm:$0x3] %vm233, %v1815
  %v1822 = vunpack.c.l.b16 %v1730
  %v1823 = vunpack.c.l.b16 %v1731
  %v1824 = vunpack.c.l.b16 %v1732
  %v1825 = vunpack.c.l.b16 %v1733
  %v1826 = vpack.c.b16 %v1823, %v1822
  %v1827 = vpack.c.b16 %v1825, %v1824
  %1830 = vmatprep.subr.bf16.mxu0 0
  %1831 = vmatpush1.bf16.msra.mxu0 %v1826
  %1832 = vmatprep.subr.bf16.mxu0 0
  %1833 = vmatpush1.bf16.msra.mxu0 %v1827
  %1834 = vmatprep.subr.bf16.mxu0 0
  %1835 = vmatpush1.bf16.msra.mxu0 0
  %1836 = vmatprep.subr.bf16.mxu0 0
  %1837 = vmatpush1.bf16.msra.mxu0 0
  %1838 = vmatprep.subr.bf16.mxu0 0
  %1839 = vmatpush1.bf16.msra.mxu0 0
  %1840 = vmatprep.subr.bf16.mxu0 0
  %1841 = vmatpush1.bf16.msra.mxu0 0
  %1842 = vmatprep.subr.bf16.mxu0 0
  %1843 = vmatpush1.bf16.msra.mxu0 0
  %1844 = vmatprep.subr.bf16.mxu0 0
  %1845 = vmatpush1.bf16.msra.mxu0 0
  %1846 = vmatprep.subr.bf16.mxu0 0
  %1847 = vmatpush1.bf16.msra.mxu0 0
  %1848 = vmatprep.subr.bf16.mxu0 0
  %1849 = vmatpush1.bf16.msra.mxu0 0
  %1850 = vmatprep.subr.bf16.mxu0 0
  %1851 = vmatpush1.bf16.msra.mxu0 0
  %1852 = vmatprep.subr.bf16.mxu0 0
  %1853 = vmatpush1.bf16.msra.mxu0 0
  %1854 = vmatprep.subr.bf16.mxu0 0
  %1855 = vmatpush1.bf16.msra.mxu0 0
  %1856 = vmatprep.subr.bf16.mxu0 0
  %1857 = vmatpush1.bf16.msra.mxu0 0
  %1858 = vmatprep.subr.bf16.mxu0 0
  %1859 = vmatpush1.bf16.msra.mxu0 0
  %1860 = vmatprep.subr.bf16.mxu0 0
  %1861 = vmatpush1.bf16.msra.mxu0 0
  %1862 = vmatprep.mubr.bf16.mxu0 0
  %1863 = vmatmul.mubr.bf16.gmra.mrb[0].mxu0 %v160
  %v1864 = vpop.f32.mrb[0].mxu0
  %v1865 = vadd.f32 0.0, %v1864
  %v1866 = vpop.f32.mrb[0].mxu0
  %v1867 = vpop.f32.mrb[0].mxu0
  %v1868 = vpop.f32.mrb[0].mxu0
  %1869 = vdwg.mxu0
  %v1871 = vrot.slane %v1865, 2
  %v1873 = vadd.f32 %v1724, %v1871
  %v1874 = vxor.u32 %v1873, 2147483648
  %v1875 = vmul.f32 %v1874, 1.442695
  %v1876 = vpow.pop %v1875
  %v1877 = vadd.f32 %v1876, 1.0
  %v1878 = vrcp.pop %v1877
  %v1879 = vmul.f32 1.0, %v1878
  %v1880 = vtanh.pop %v1873
  %v1881 = vmul.f32 %v1879, 0.0
  %1883 = vrot.lane.b32.xlu0 %v1880, 64
  %v1884 = vpop.permute.xlu0 %1883
  %v1886 = vmul.f32 %v1879, %v1884
  %1888 = vrot.lane.b32.xlu0 %v1886, 32
  %v1889 = vpop.permute.xlu0 %1888
  %v1891 = vadd.f32 %v1881, %v1889
  %v1892 = vtanh.pop %v1891
  %1894 = vrot.lane.b32.xlu0 %v1892, 64
  %v1895 = vpop.permute.xlu0 %1894
  %v1897 = vmul.f32 %v1879, %v1895
  %v1899 = vrot.slane %v1897, 6
  %1900 = vrot.lane.b32.xlu0 %v1899, 32
  %v1901 = vpop.permute.xlu0 %1900
  %v1903 = vsel %vm59, %v1901, 0.0
  %v1905 = vrot.slane %v1891, 6
  %1906 = vrot.lane.b32.xlu0 %v1905, 96
  %v1907 = vpop.permute.xlu0 %1906
  %v1909 = vsel %vm59, %v1907, 0.0
  %1911 = vrot.lane.b32.xlu0 %v1903, 32
  %v1912 = vpop.permute.xlu0 %1911
  %1914 = vst.msk [vmem:[#allocation2 + $0xe] sm:$0x3] %vm331, %v1912
  %v1915 = vpack.c.bf16 %v1811, %v1811
  %1917 = vrot.lane.b32.xlu0 %v1915, 32
  %v1918 = vpop.permute.xlu0 %1917
  %v1920 = vsel %vm158, %v1918, 0
  %1922 = vmatprep.subr.bf16.mxu0 0
  %1923 = vmatpush1.bf16.msra.mxu0 %v1742
  %1924 = vmatprep.subr.bf16.mxu0 0
  %1925 = vmatpush1.bf16.msra.mxu0 %v1743
  %1926 = vmatprep.subr.bf16.mxu0 0
  %1927 = vmatpush1.bf16.msra.mxu0 0
  %1928 = vmatprep.subr.bf16.mxu0 0
  %1929 = vmatpush1.bf16.msra.mxu0 0
  %1930 = vmatprep.subr.bf16.mxu0 0
  %1931 = vmatpush1.bf16.msra.mxu0 0
  %1932 = vmatprep.subr.bf16.mxu0 0
  %1933 = vmatpush1.bf16.msra.mxu0 0
  %1934 = vmatprep.subr.bf16.mxu0 0
  %1935 = vmatpush1.bf16.msra.mxu0 0
  %1936 = vmatprep.subr.bf16.mxu0 0
  %1937 = vmatpush1.bf16.msra.mxu0 0
  %1938 = vmatprep.subr.bf16.mxu0 0
  %1939 = vmatpush1.bf16.msra.mxu0 0
  %1940 = vmatprep.subr.bf16.mxu0 0
  %1941 = vmatpush1.bf16.msra.mxu0 0
  %1942 = vmatprep.subr.bf16.mxu0 0
  %1943 = vmatpush1.bf16.msra.mxu0 0
  %1944 = vmatprep.subr.bf16.mxu0 0
  %1945 = vmatpush1.bf16.msra.mxu0 0
  %1946 = vmatprep.subr.bf16.mxu0 0
  %1947 = vmatpush1.bf16.msra.mxu0 0
  %1948 = vmatprep.subr.bf16.mxu0 0
  %1949 = vmatpush1.bf16.msra.mxu0 0
  %1950 = vmatprep.subr.bf16.mxu0 0
  %1951 = vmatpush1.bf16.msra.mxu0 0
  %1952 = vmatprep.subr.bf16.mxu0 0
  %1953 = vmatpush1.bf16.msra.mxu0 0
  %1954 = vmatprep.mubr.bf16.mxu0 0
  %1955 = vmatmul.mubr.bf16.gmra.mrb[0].mxu0 %v1920
  %v1956 = vpop.f32.mrb[0].mxu0
  %v1957 = vadd.f32 0.0, %v1956
  %v1958 = vpop.f32.mrb[0].mxu0
  %v1959 = vpop.f32.mrb[0].mxu0
  %v1960 = vpop.f32.mrb[0].mxu0
  %1961 = vdwg.mxu0
  %v1963 = vrot.slane %v1957, 6
  %v1965 = vadd.f32 %v1718, %v1963
  %v1966 = vxor.u32 %v1965, 2147483648
  %v1967 = vmul.f32 %v1966, 1.442695
  %v1968 = vpow.pop %v1967
  %v1969 = vadd.f32 %v1968, 1.0
  %v1970 = vrcp.pop %v1969
  %v1971 = vmul.f32 1.0, %v1970
  %v1972 = vtanh.pop %v1965
  %v1974 = vrot.slane %v1812, 6
  %v1976 = vmul.f32 %v1971, %v1974
  %1978 = vrot.lane.b32.xlu0 %v1972, 64
  %v1979 = vpop.permute.xlu0 %1978
  %v1981 = vmul.f32 %v1971, %v1979
  %1983 = vrot.lane.b32.xlu0 %v1981, 32
  %v1984 = vpop.permute.xlu0 %1983
  %v1986 = vadd.f32 %v1976, %v1984
  %v1987 = vtanh.pop %v1986
  %1989 = vrot.lane.b32.xlu0 %v1987, 64
  %v1990 = vpop.permute.xlu0 %1989
  %v1992 = vmul.f32 %v1971, %v1990
  %v1994 = vrot.slane %v1992, 2
  %1995 = vrot.lane.b32.xlu0 %v1994, 32
  %v1996 = vpop.permute.xlu0 %1995
  %v1998 = vsel %vm53, %v1996, %v1815
  %v2000 = vrot.slane %v1986, 2
  %2001 = vrot.lane.b32.xlu0 %v2000, 96
  %v2002 = vpop.permute.xlu0 %2001
  %2004 = vrot.lane.b32.xlu0 %v1812, 96
  %v2005 = vpop.permute.xlu0 %2004
  %v2007 = vsel %vm53, %v2002, %v2005
  %v2008 = vsel %vm53, %v1996, 0.0
  %2009 = vst.msk [vmem:[#allocation2 + $0x2] sm:$0x3] %vm233, %v2008
  %v2010 = vpack.c.bf16 %v1903, %v1903
  %v2012 = vsel %vm158, %v2010, 0
  %2014 = vmatprep.subr.bf16.mxu0 0
  %2015 = vmatpush1.bf16.msra.mxu0 %v1826
  %2016 = vmatprep.subr.bf16.mxu0 0
  %2017 = vmatpush1.bf16.msra.mxu0 %v1827
  %2018 = vmatprep.subr.bf16.mxu0 0
  %2019 = vmatpush1.bf16.msra.mxu0 0
  %2020 = vmatprep.subr.bf16.mxu0 0
  %2021 = vmatpush1.bf16.msra.mxu0 0
  %2022 = vmatprep.subr.bf16.mxu0 0
  %2023 = vmatpush1.bf16.msra.mxu0 0
  %2024 = vmatprep.subr.bf16.mxu0 0
  %2025 = vmatpush1.bf16.msra.mxu0 0
  %2026 = vmatprep.subr.bf16.mxu0 0
  %2027 = vmatpush1.bf16.msra.mxu0 0
  %2028 = vmatprep.subr.bf16.mxu0 0
  %2029 = vmatpush1.bf16.msra.mxu0 0
  %2030 = vmatprep.subr.bf16.mxu0 0
  %2031 = vmatpush1.bf16.msra.mxu0 0
  %2032 = vmatprep.subr.bf16.mxu0 0
  %2033 = vmatpush1.bf16.msra.mxu0 0
  %2034 = vmatprep.subr.bf16.mxu0 0
  %2035 = vmatpush1.bf16.msra.mxu0 0
  %2036 = vmatprep.subr.bf16.mxu0 0
  %2037 = vmatpush1.bf16.msra.mxu0 0
  %2038 = vmatprep.subr.bf16.mxu0 0
  %2039 = vmatpush1.bf16.msra.mxu0 0
  %2040 = vmatprep.subr.bf16.mxu0 0
  %2041 = vmatpush1.bf16.msra.mxu0 0
  %2042 = vmatprep.subr.bf16.mxu0 0
  %2043 = vmatpush1.bf16.msra.mxu0 0
  %2044 = vmatprep.subr.bf16.mxu0 0
  %2045 = vmatpush1.bf16.msra.mxu0 0
  %2046 = vmatprep.mubr.bf16.mxu0 0
  %2047 = vmatmul.mubr.bf16.gmra.mrb[0].mxu0 %v2012
  %v2048 = vpop.f32.mrb[0].mxu0
  %v2049 = vadd.f32 0.0, %v2048
  %v2050 = vpop.f32.mrb[0].mxu0
  %v2051 = vpop.f32.mrb[0].mxu0
  %v2052 = vpop.f32.mrb[0].mxu0
  %2053 = vdwg.mxu0
  %v2055 = vrot.slane %v2049, 4
  %v2057 = vadd.f32 %v1724, %v2055
  %v2058 = vxor.u32 %v2057, 2147483648
  %v2059 = vmul.f32 %v2058, 1.442695
  %v2060 = vpow.pop %v2059
  %v2061 = vadd.f32 %v2060, 1.0
  %v2062 = vrcp.pop %v2061
  %v2063 = vmul.f32 1.0, %v2062
  %v2064 = vtanh.pop %v2057
  %v2066 = vrot.slane %v1909, 4
  %2067 = vrot.lane.b32.xlu0 %v2066, 32
  %v2068 = vpop.permute.xlu0 %2067
  %v2070 = vmul.f32 %v2063, %v2068
  %2072 = vrot.lane.b32.xlu0 %v2064, 64
  %v2073 = vpop.permute.xlu0 %2072
  %v2075 = vmul.f32 %v2063, %v2073
  %2077 = vrot.lane.b32.xlu0 %v2075, 32
  %v2078 = vpop.permute.xlu0 %2077
  %v2080 = vadd.f32 %v2070, %v2078
  %v2081 = vtanh.pop %v2080
  %2083 = vrot.lane.b32.xlu0 %v2081, 64
  %v2084 = vpop.permute.xlu0 %2083
  %v2086 = vmul.f32 %v2063, %v2084
  %v2088 = vrot.slane %v2086, 4
  %2089 = vrot.lane.b32.xlu0 %v2088, 32
  %v2090 = vpop.permute.xlu0 %2089
  %v2092 = vsel %vm58, %v2090, %v1903
  %v2094 = vrot.slane %v2080, 4
  %2095 = vrot.lane.b32.xlu0 %v2094, 96
  %v2096 = vpop.permute.xlu0 %2095
  %v2098 = vsel %vm58, %v2096, %v1909
  %v2099 = vsel %vm58, %v2090, 0.0
  %2101 = vrot.lane.b32.xlu0 %v2099, 32
  %v2102 = vpop.permute.xlu0 %2101
  %2104 = vst.msk [vmem:[#allocation2 + $0xc] sm:$0x3] %vm331, %v2102
  %v2105 = vpack.c.bf16 %v1998, %v1998
  %v2107 = vsel %vm158, %v2105, 0
  %2109 = vmatprep.subr.bf16.mxu0 0
  %2110 = vmatpush1.bf16.msra.mxu0 %v1742
  %2111 = vmatprep.subr.bf16.mxu0 0
  %2112 = vmatpush1.bf16.msra.mxu0 %v1743
  %2113 = vmatprep.subr.bf16.mxu0 0
  %2114 = vmatpush1.bf16.msra.mxu0 0
  %2115 = vmatprep.subr.bf16.mxu0 0
  %2116 = vmatpush1.bf16.msra.mxu0 0
  %2117 = vmatprep.subr.bf16.mxu0 0
  %2118 = vmatpush1.bf16.msra.mxu0 0
  %2119 = vmatprep.subr.bf16.mxu0 0
  %2120 = vmatpush1.bf16.msra.mxu0 0
  %2121 = vmatprep.subr.bf16.mxu0 0
  %2122 = vmatpush1.bf16.msra.mxu0 0
  %2123 = vmatprep.subr.bf16.mxu0 0
  %2124 = vmatpush1.bf16.msra.mxu0 0
  %2125 = vmatprep.subr.bf16.mxu0 0
  %2126 = vmatpush1.bf16.msra.mxu0 0
  %2127 = vmatprep.subr.bf16.mxu0 0
  %2128 = vmatpush1.bf16.msra.mxu0 0
  %2129 = vmatprep.subr.bf16.mxu0 0
  %2130 = vmatpush1.bf16.msra.mxu0 0
  %2131 = vmatprep.subr.bf16.mxu0 0
  %2132 = vmatpush1.bf16.msra.mxu0 0
  %2133 = vmatprep.subr.bf16.mxu0 0
  %2134 = vmatpush1.bf16.msra.mxu0 0
  %2135 = vmatprep.subr.bf16.mxu0 0
  %2136 = vmatpush1.bf16.msra.mxu0 0
  %2137 = vmatprep.subr.bf16.mxu0 0
  %2138 = vmatpush1.bf16.msra.mxu0 0
  %2139 = vmatprep.subr.bf16.mxu0 0
  %2140 = vmatpush1.bf16.msra.mxu0 0
  %2141 = vmatprep.mubr.bf16.mxu0 0
  %2142 = vmatmul.mubr.bf16.gmra.mrb[0].mxu0 %v2107
  %v2143 = vpop.f32.mrb[0].mxu0
  %v2144 = vadd.f32 0.0, %v2143
  %v2145 = vpop.f32.mrb[0].mxu0
  %v2146 = vpop.f32.mrb[0].mxu0
  %v2147 = vpop.f32.mrb[0].mxu0
  %2148 = vdwg.mxu0
  %v2150 = vrot.slane %v2144, 4
  %v2152 = vadd.f32 %v1718, %v2150
  %v2153 = vxor.u32 %v2152, 2147483648
  %v2154 = vmul.f32 %v2153, 1.442695
  %v2155 = vpow.pop %v2154
  %v2156 = vadd.f32 %v2155, 1.0
  %v2157 = vrcp.pop %v2156
  %v2158 = vmul.f32 1.0, %v2157
  %v2159 = vtanh.pop %v2152
  %v2161 = vrot.slane %v2007, 4
  %2162 = vrot.lane.b32.xlu0 %v2161, 32
  %v2163 = vpop.permute.xlu0 %2162
  %v2165 = vmul.f32 %v2158, %v2163
  %2167 = vrot.lane.b32.xlu0 %v2159, 64
  %v2168 = vpop.permute.xlu0 %2167
  %v2170 = vmul.f32 %v2158, %v2168
  %2172 = vrot.lane.b32.xlu0 %v2170, 32
  %v2173 = vpop.permute.xlu0 %2172
  %v2175 = vadd.f32 %v2165, %v2173
  %v2176 = vtanh.pop %v2175
  %2178 = vrot.lane.b32.xlu0 %v2176, 64
  %v2179 = vpop.permute.xlu0 %2178
  %v2181 = vmul.f32 %v2158, %v2179
  %v2183 = vrot.slane %v2181, 4
  %2184 = vrot.lane.b32.xlu0 %v2183, 32
  %v2185 = vpop.permute.xlu0 %2184
  %v2187 = vsel %vm54, %v2185, %v1998
  %v2189 = vrot.slane %v2175, 4
  %2190 = vrot.lane.b32.xlu0 %v2189, 96
  %v2191 = vpop.permute.xlu0 %2190
  %v2193 = vsel %vm54, %v2191, %v2007
  %v2194 = vsel %vm54, %v2185, 0.0
  %2195 = vst.msk [vmem:[#allocation2 + $0x4] sm:$0x3] %vm233, %v2194
  %v2196 = vpack.c.bf16 %v2092, %v2092
  %v2198 = vsel %vm158, %v2196, 0
  %2200 = vmatprep.subr.bf16.mxu0 0
  %2201 = vmatpush1.bf16.msra.mxu0 %v1826
  %2202 = vmatprep.subr.bf16.mxu0 0
  %2203 = vmatpush1.bf16.msra.mxu0 %v1827
  %2204 = vmatprep.subr.bf16.mxu0 0
  %2205 = vmatpush1.bf16.msra.mxu0 0
  %2206 = vmatprep.subr.bf16.mxu0 0
  %2207 = vmatpush1.bf16.msra.mxu0 0
  %2208 = vmatprep.subr.bf16.mxu0 0
  %2209 = vmatpush1.bf16.msra.mxu0 0
  %2210 = vmatprep.subr.bf16.mxu0 0
  %2211 = vmatpush1.bf16.msra.mxu0 0
  %2212 = vmatprep.subr.bf16.mxu0 0
  %2213 = vmatpush1.bf16.msra.mxu0 0
  %2214 = vmatprep.subr.bf16.mxu0 0
  %2215 = vmatpush1.bf16.msra.mxu0 0
  %2216 = vmatprep.subr.bf16.mxu0 0
  %2217 = vmatpush1.bf16.msra.mxu0 0
  %2218 = vmatprep.subr.bf16.mxu0 0
  %2219 = vmatpush1.bf16.msra.mxu0 0
  %2220 = vmatprep.subr.bf16.mxu0 0
  %2221 = vmatpush1.bf16.msra.mxu0 0
  %2222 = vmatprep.subr.bf16.mxu0 0
  %2223 = vmatpush1.bf16.msra.mxu0 0
  %2224 = vmatprep.subr.bf16.mxu0 0
  %2225 = vmatpush1.bf16.msra.mxu0 0
  %2226 = vmatprep.subr.bf16.mxu0 0
  %2227 = vmatpush1.bf16.msra.mxu0 0
  %2228 = vmatprep.subr.bf16.mxu0 0
  %2229 = vmatpush1.bf16.msra.mxu0 0
  %2230 = vmatprep.subr.bf16.mxu0 0
  %2231 = vmatpush1.bf16.msra.mxu0 0
  %2232 = vmatprep.mubr.bf16.mxu0 0
  %2233 = vmatmul.mubr.bf16.gmra.mrb[0].mxu0 %v2198
  %v2234 = vpop.f32.mrb[0].mxu0
  %v2235 = vadd.f32 0.0, %v2234
  %v2236 = vpop.f32.mrb[0].mxu0
  %v2237 = vpop.f32.mrb[0].mxu0
  %v2238 = vpop.f32.mrb[0].mxu0
  %2239 = vdwg.mxu0
  %v2241 = vrot.slane %v2235, 6
  %v2243 = vadd.f32 %v1724, %v2241
  %v2244 = vxor.u32 %v2243, 2147483648
  %v2245 = vmul.f32 %v2244, 1.442695
  %v2246 = vpow.pop %v2245
  %v2247 = vadd.f32 %v2246, 1.0
  %v2248 = vrcp.pop %v2247
  %v2249 = vmul.f32 1.0, %v2248
  %v2250 = vtanh.pop %v2243
  %v2252 = vrot.slane %v2098, 6
  %2253 = vrot.lane.b32.xlu0 %v2252, 32
  %v2254 = vpop.permute.xlu0 %2253
  %v2256 = vmul.f32 %v2249, %v2254
  %2258 = vrot.lane.b32.xlu0 %v2250, 64
  %v2259 = vpop.permute.xlu0 %2258
  %v2261 = vmul.f32 %v2249, %v2259
  %2263 = vrot.lane.b32.xlu0 %v2261, 32
  %v2264 = vpop.permute.xlu0 %2263
  %v2266 = vadd.f32 %v2256, %v2264
  %v2267 = vtanh.pop %v2266
  %2269 = vrot.lane.b32.xlu0 %v2267, 64
  %v2270 = vpop.permute.xlu0 %2269
  %v2272 = vmul.f32 %v2249, %v2270
  %v2274 = vrot.slane %v2272, 2
  %2275 = vrot.lane.b32.xlu0 %v2274, 32
  %v2276 = vpop.permute.xlu0 %2275
  %v2278 = vsel %vm57, %v2276, %v2092
  %v2280 = vrot.slane %v2266, 2
  %2281 = vrot.lane.b32.xlu0 %v2280, 96
  %v2282 = vpop.permute.xlu0 %2281
  %v2284 = vsel %vm57, %v2282, %v2098
  %v2285 = vsel %vm57, %v2276, 0.0
  %2287 = vrot.lane.b32.xlu0 %v2285, 32
  %v2288 = vpop.permute.xlu0 %2287
  %2290 = vst.msk [vmem:[#allocation2 + $0xa] sm:$0x3] %vm331, %v2288
  %v2291 = vpack.c.bf16 %v2187, %v2187
  %v2293 = vsel %vm158, %v2291, 0
  %2295 = vmatprep.subr.bf16.mxu0 0
  %2296 = vmatpush1.bf16.msra.mxu0 %v1742
  %2297 = vmatprep.subr.bf16.mxu0 0
  %2298 = vmatpush1.bf16.msra.mxu0 %v1743
  %2299 = vmatprep.subr.bf16.mxu0 0
  %2300 = vmatpush1.bf16.msra.mxu0 0
  %2301 = vmatprep.subr.bf16.mxu0 0
  %2302 = vmatpush1.bf16.msra.mxu0 0
  %2303 = vmatprep.subr.bf16.mxu0 0
  %2304 = vmatpush1.bf16.msra.mxu0 0
  %2305 = vmatprep.subr.bf16.mxu0 0
  %2306 = vmatpush1.bf16.msra.mxu0 0
  %2307 = vmatprep.subr.bf16.mxu0 0
  %2308 = vmatpush1.bf16.msra.mxu0 0
  %2309 = vmatprep.subr.bf16.mxu0 0
  %2310 = vmatpush1.bf16.msra.mxu0 0
  %2311 = vmatprep.subr.bf16.mxu0 0
  %2312 = vmatpush1.bf16.msra.mxu0 0
  %2313 = vmatprep.subr.bf16.mxu0 0
  %2314 = vmatpush1.bf16.msra.mxu0 0
  %2315 = vmatprep.subr.bf16.mxu0 0
  %2316 = vmatpush1.bf16.msra.mxu0 0
  %2317 = vmatprep.subr.bf16.mxu0 0
  %2318 = vmatpush1.bf16.msra.mxu0 0
  %2319 = vmatprep.subr.bf16.mxu0 0
  %2320 = vmatpush1.bf16.msra.mxu0 0
  %2321 = vmatprep.subr.bf16.mxu0 0
  %2322 = vmatpush1.bf16.msra.mxu0 0
  %2323 = vmatprep.subr.bf16.mxu0 0
  %2324 = vmatpush1.bf16.msra.mxu0 0
  %2325 = vmatprep.subr.bf16.mxu0 0
  %2326 = vmatpush1.bf16.msra.mxu0 0
  %2327 = vmatprep.mubr.bf16.mxu0 0
  %2328 = vmatmul.mubr.bf16.gmra.mrb[0].mxu0 %v2293
  %v2329 = vpop.f32.mrb[0].mxu0
  %v2330 = vadd.f32 0.0, %v2329
  %v2331 = vpop.f32.mrb[0].mxu0
  %v2332 = vpop.f32.mrb[0].mxu0
  %v2333 = vpop.f32.mrb[0].mxu0
  %2334 = vdwg.mxu0
  %v2336 = vrot.slane %v2330, 2
  %v2338 = vadd.f32 %v1718, %v2336
  %v2339 = vxor.u32 %v2338, 2147483648
  %v2340 = vmul.f32 %v2339, 1.442695
  %v2341 = vpow.pop %v2340
  %v2342 = vadd.f32 %v2341, 1.0
  %v2343 = vrcp.pop %v2342
  %v2344 = vmul.f32 1.0, %v2343
  %v2345 = vtanh.pop %v2338
  %v2347 = vrot.slane %v2193, 2
  %2348 = vrot.lane.b32.xlu0 %v2347, 32
  %v2349 = vpop.permute.xlu0 %2348
  %v2351 = vmul.f32 %v2344, %v2349
  %2353 = vrot.lane.b32.xlu0 %v2345, 64
  %v2354 = vpop.permute.xlu0 %2353
  %v2356 = vmul.f32 %v2344, %v2354
  %2358 = vrot.lane.b32.xlu0 %v2356, 32
  %v2359 = vpop.permute.xlu0 %2358
  %v2361 = vadd.f32 %v2351, %v2359
  %v2362 = vtanh.pop %v2361
  %2364 = vrot.lane.b32.xlu0 %v2362, 64
  %v2365 = vpop.permute.xlu0 %2364
  %v2367 = vmul.f32 %v2344, %v2365
  %v2369 = vrot.slane %v2367, 6
  %2370 = vrot.lane.b32.xlu0 %v2369, 32
  %v2371 = vpop.permute.xlu0 %2370
  %v2373 = vsel %vm55, %v2371, %v2187
  %v2375 = vrot.slane %v2361, 6
  %2376 = vrot.lane.b32.xlu0 %v2375, 96
  %v2377 = vpop.permute.xlu0 %2376
  %v2379 = vsel %vm55, %v2377, %v2193
  %v2380 = vsel %vm55, %v2371, 0.0
  %2381 = vst.msk [vmem:[#allocation2 + $0x6] sm:$0x3] %vm233, %v2380
  %v2382 = vpack.c.bf16 %v2278, %v2278
  %v2384 = vsel %vm158, %v2382, 0
  %2386 = vmatprep.subr.bf16.mxu0 0
  %2387 = vmatpush1.bf16.msra.mxu0 %v1826
  %2388 = vmatprep.subr.bf16.mxu0 0
  %2389 = vmatpush1.bf16.msra.mxu0 %v1827
  %2390 = vmatprep.subr.bf16.mxu0 0
  %2391 = vmatpush1.bf16.msra.mxu0 0
  %2392 = vmatprep.subr.bf16.mxu0 0
  %2393 = vmatpush1.bf16.msra.mxu0 0
  %2394 = vmatprep.subr.bf16.mxu0 0
  %2395 = vmatpush1.bf16.msra.mxu0 0
  %2396 = vmatprep.subr.bf16.mxu0 0
  %2397 = vmatpush1.bf16.msra.mxu0 0
  %2398 = vmatprep.subr.bf16.mxu0 0
  %2399 = vmatpush1.bf16.msra.mxu0 0
  %2400 = vmatprep.subr.bf16.mxu0 0
  %2401 = vmatpush1.bf16.msra.mxu0 0
  %2402 = vmatprep.subr.bf16.mxu0 0
  %2403 = vmatpush1.bf16.msra.mxu0 0
  %2404 = vmatprep.subr.bf16.mxu0 0
  %2405 = vmatpush1.bf16.msra.mxu0 0
  %2406 = vmatprep.subr.bf16.mxu0 0
  %2407 = vmatpush1.bf16.msra.mxu0 0
  %2408 = vmatprep.subr.bf16.mxu0 0
  %2409 = vmatpush1.bf16.msra.mxu0 0
  %2410 = vmatprep.subr.bf16.mxu0 0
  %2411 = vmatpush1.bf16.msra.mxu0 0
  %2412 = vmatprep.subr.bf16.mxu0 0
  %2413 = vmatpush1.bf16.msra.mxu0 0
  %2414 = vmatprep.subr.bf16.mxu0 0
  %2415 = vmatpush1.bf16.msra.mxu0 0
  %2416 = vmatprep.subr.bf16.mxu0 0
  %2417 = vmatpush1.bf16.msra.mxu0 0
  %2418 = vmatprep.mubr.bf16.mxu0 0
  %2419 = vmatmul.mubr.bf16.gmra.mrb[0].mxu0 %v2384
  %v2420 = vpop.f32.mrb[0].mxu0
  %v2421 = vadd.f32 0.0, %v2420
  %v2422 = vpop.f32.mrb[0].mxu0
  %v2423 = vpop.f32.mrb[0].mxu0
  %v2424 = vpop.f32.mrb[0].mxu0
  %2425 = vdwg.mxu0
  %v2426 = vadd.f32 %v1724, %v2421
  %v2427 = vxor.u32 %v2426, 2147483648
  %v2428 = vmul.f32 %v2427, 1.442695
  %v2429 = vpow.pop %v2428
  %v2430 = vadd.f32 %v2429, 1.0
  %v2431 = vrcp.pop %v2430
  %v2432 = vmul.f32 1.0, %v2431
  %v2433 = vtanh.pop %v2426
  %2435 = vrot.lane.b32.xlu0 %v2284, 32
  %v2436 = vpop.permute.xlu0 %2435
  %v2438 = vmul.f32 %v2432, %v2436
  %2440 = vrot.lane.b32.xlu0 %v2433, 64
  %v2441 = vpop.permute.xlu0 %2440
  %v2443 = vmul.f32 %v2432, %v2441
  %2445 = vrot.lane.b32.xlu0 %v2443, 32
  %v2446 = vpop.permute.xlu0 %2445
  %v2448 = vadd.f32 %v2438, %v2446
  %v2449 = vtanh.pop %v2448
  %2451 = vrot.lane.b32.xlu0 %v2449, 64
  %v2452 = vpop.permute.xlu0 %2451
  %v2454 = vmul.f32 %v2432, %v2452
  %2456 = vrot.lane.b32.xlu0 %v2278, 96
  %v2457 = vpop.permute.xlu0 %2456
  %v2459 = vsel %vm56, %v2454, %v2457
  %v2460 = vsel %vm56, %v2448, %v2436
  %v2461 = vsel %vm56, %v2454, 0.0
  %2463 = vrot.lane.b32.xlu0 %v2461, 64
  %v2464 = vpop.permute.xlu0 %2463
  %2466 = vst.msk [vmem:[#allocation2 + $0x8] sm:$0x3] %vm331, %v2464
  %v2467 = vpack.c.bf16 %v2373, %v2373
  %v2469 = vsel %vm158, %v2467, 0
  %2471 = vmatprep.subr.bf16.mxu0 0
  %2472 = vmatpush1.bf16.msra.mxu0 %v1742
  %2473 = vmatprep.subr.bf16.mxu0 0
  %2474 = vmatpush1.bf16.msra.mxu0 %v1743
  %2475 = vmatprep.subr.bf16.mxu0 0
  %2476 = vmatpush1.bf16.msra.mxu0 0
  %2477 = vmatprep.subr.bf16.mxu0 0
  %2478 = vmatpush1.bf16.msra.mxu0 0
  %2479 = vmatprep.subr.bf16.mxu0 0
  %2480 = vmatpush1.bf16.msra.mxu0 0
  %2481 = vmatprep.subr.bf16.mxu0 0
  %2482 = vmatpush1.bf16.msra.mxu0 0
  %2483 = vmatprep.subr.bf16.mxu0 0
  %2484 = vmatpush1.bf16.msra.mxu0 0
  %2485 = vmatprep.subr.bf16.mxu0 0
  %2486 = vmatpush1.bf16.msra.mxu0 0
  %2487 = vmatprep.subr.bf16.mxu0 0
  %2488 = vmatpush1.bf16.msra.mxu0 0
  %2489 = vmatprep.subr.bf16.mxu0 0
  %2490 = vmatpush1.bf16.msra.mxu0 0
  %2491 = vmatprep.subr.bf16.mxu0 0
  %2492 = vmatpush1.bf16.msra.mxu0 0
  %2493 = vmatprep.subr.bf16.mxu0 0
  %2494 = vmatpush1.bf16.msra.mxu0 0
  %2495 = vmatprep.subr.bf16.mxu0 0
  %2496 = vmatpush1.bf16.msra.mxu0 0
  %2497 = vmatprep.subr.bf16.mxu0 0
  %2498 = vmatpush1.bf16.msra.mxu0 0
  %2499 = vmatprep.subr.bf16.mxu0 0
  %2500 = vmatpush1.bf16.msra.mxu0 0
  %2501 = vmatprep.subr.bf16.mxu0 0
  %2502 = vmatpush1.bf16.msra.mxu0 0
  %2503 = vmatprep.mubr.bf16.mxu0 0
  %2504 = vmatmul.mubr.bf16.gmra.mrb[0].mxu0 %v2469
  %v2505 = vpop.f32.mrb[0].mxu0
  %v2506 = vadd.f32 0.0, %v2505
  %v2507 = vpop.f32.mrb[0].mxu0
  %v2508 = vpop.f32.mrb[0].mxu0
  %v2509 = vpop.f32.mrb[0].mxu0
  %2510 = vdwg.mxu0
  %v2511 = vadd.f32 %v1722, %v2506
  %v2512 = vxor.u32 %v2511, 2147483648
  %v2513 = vmul.f32 %v2512, 1.442695
  %v2514 = vpow.pop %v2513
  %v2515 = vadd.f32 %v2514, 1.0
  %v2516 = vrcp.pop %v2515
  %v2517 = vmul.f32 1.0, %v2516
  %v2518 = vtanh.pop %v2511
  %2520 = vrot.lane.b32.xlu0 %v2379, 32
  %v2521 = vpop.permute.xlu0 %2520
  %v2523 = vmul.f32 %v2517, %v2521
  %2525 = vrot.lane.b32.xlu0 %v2518, 64
  %v2526 = vpop.permute.xlu0 %2525
  %v2528 = vmul.f32 %v2517, %v2526
  %2530 = vrot.lane.b32.xlu0 %v2528, 32
  %v2531 = vpop.permute.xlu0 %2530
  %v2533 = vadd.f32 %v2523, %v2531
  %v2534 = vtanh.pop %v2533
  %2536 = vrot.lane.b32.xlu0 %v2534, 64
  %v2537 = vpop.permute.xlu0 %2536
  %v2539 = vmul.f32 %v2517, %v2537
  %2541 = vrot.lane.b32.xlu0 %v2373, 96
  %v2542 = vpop.permute.xlu0 %2541
  %v2544 = vsel %vm56, %v2539, %v2542
  %v2545 = vsel %vm56, %v2533, %v2521
  %v2546 = vsel %vm56, %v2539, 0.0
  %2548 = vrot.lane.b32.xlu0 %v2546, 32
  %v2549 = vpop.permute.xlu0 %2548
  %2551 = vst.msk [vmem:[#allocation2 + $0x8] sm:$0x3] %vm233, %v2549
  %v2552 = vpack.c.bf16 %v2459, %v2459
  %2554 = vrot.lane.b32.xlu0 %v2552, 32
  %v2555 = vpop.permute.xlu0 %2554
  %v2557 = vsel %vm158, %v2555, 0
  %2559 = vmatprep.subr.bf16.mxu0 0
  %2560 = vmatpush1.bf16.msra.mxu0 %v1826
  %2561 = vmatprep.subr.bf16.mxu0 0
  %2562 = vmatpush1.bf16.msra.mxu0 %v1827
  %2563 = vmatprep.subr.bf16.mxu0 0
  %2564 = vmatpush1.bf16.msra.mxu0 0
  %2565 = vmatprep.subr.bf16.mxu0 0
  %2566 = vmatpush1.bf16.msra.mxu0 0
  %2567 = vmatprep.subr.bf16.mxu0 0
  %2568 = vmatpush1.bf16.msra.mxu0 0
  %2569 = vmatprep.subr.bf16.mxu0 0
  %2570 = vmatpush1.bf16.msra.mxu0 0
  %2571 = vmatprep.subr.bf16.mxu0 0
  %2572 = vmatpush1.bf16.msra.mxu0 0
  %2573 = vmatprep.subr.bf16.mxu0 0
  %2574 = vmatpush1.bf16.msra.mxu0 0
  %2575 = vmatprep.subr.bf16.mxu0 0
  %2576 = vmatpush1.bf16.msra.mxu0 0
  %2577 = vmatprep.subr.bf16.mxu0 0
  %2578 = vmatpush1.bf16.msra.mxu0 0
  %2579 = vmatprep.subr.bf16.mxu0 0
  %2580 = vmatpush1.bf16.msra.mxu0 0
  %2581 = vmatprep.subr.bf16.mxu0 0
  %2582 = vmatpush1.bf16.msra.mxu0 0
  %2583 = vmatprep.subr.bf16.mxu0 0
  %2584 = vmatpush1.bf16.msra.mxu0 0
  %2585 = vmatprep.subr.bf16.mxu0 0
  %2586 = vmatpush1.bf16.msra.mxu0 0
  %2587 = vmatprep.subr.bf16.mxu0 0
  %2588 = vmatpush1.bf16.msra.mxu0 0
  %2589 = vmatprep.subr.bf16.mxu0 0
  %2590 = vmatpush1.bf16.msra.mxu0 0
  %2591 = vmatprep.mubr.bf16.mxu0 0
  %2592 = vmatmul.mubr.bf16.gmra.mrb[0].mxu0 %v2557
  %v2593 = vpop.f32.mrb[0].mxu0
  %v2594 = vadd.f32 0.0, %v2593
  %v2595 = vpop.f32.mrb[0].mxu0
  %v2596 = vpop.f32.mrb[0].mxu0
  %v2597 = vpop.f32.mrb[0].mxu0
  %2598 = vdwg.mxu0
  %v2600 = vrot.slane %v2594, 2
  %v2602 = vadd.f32 %v1720, %v2600
  %v2603 = vxor.u32 %v2602, 2147483648
  %v2604 = vmul.f32 %v2603, 1.442695
  %v2605 = vpow.pop %v2604
  %v2606 = vadd.f32 %v2605, 1.0
  %v2607 = vrcp.pop %v2606
  %v2608 = vmul.f32 1.0, %v2607
  %v2609 = vtanh.pop %v2602
  %v2611 = vrot.slane %v2460, 2
  %v2613 = vmul.f32 %v2608, %v2611
  %2615 = vrot.lane.b32.xlu0 %v2609, 64
  %v2616 = vpop.permute.xlu0 %2615
  %v2618 = vmul.f32 %v2608, %v2616
  %2620 = vrot.lane.b32.xlu0 %v2618, 32
  %v2621 = vpop.permute.xlu0 %2620
  %v2623 = vadd.f32 %v2613, %v2621
  %v2624 = vtanh.pop %v2623
  %2626 = vrot.lane.b32.xlu0 %v2624, 64
  %v2627 = vpop.permute.xlu0 %2626
  %v2629 = vmul.f32 %v2608, %v2627
  %v2631 = vrot.slane %v2629, 6
  %2632 = vrot.lane.b32.xlu0 %v2631, 32
  %v2633 = vpop.permute.xlu0 %2632
  %2636 = vrot.lane.b32.xlu0 %v2459, 32
  %v2637 = vpop.permute.xlu0 %2636
  %v2639 = vsel %vm55, %v2633, %v2637
  %v2641 = vrot.slane %v2623, 6
  %2642 = vrot.lane.b32.xlu0 %v2641, 96
  %v2643 = vpop.permute.xlu0 %2642
  %2645 = vrot.lane.b32.xlu0 %v2460, 96
  %v2646 = vpop.permute.xlu0 %2645
  %v2648 = vsel %vm55, %v2643, %v2646
  %v2649 = vsel %vm55, %v2633, 0.0
  %2651 = vrot.lane.b32.xlu0 %v2649, 32
  %v2652 = vpop.permute.xlu0 %2651
  %2654 = vst.msk [vmem:[#allocation2 + $0x6] sm:$0x3] %vm331, %v2652
  %v2655 = vpack.c.bf16 %v2544, %v2544
  %2657 = vrot.lane.b32.xlu0 %v2655, 32
  %v2658 = vpop.permute.xlu0 %2657
  %v2660 = vsel %vm158, %v2658, 0
  %2662 = vmatprep.subr.bf16.mxu0 0
  %2663 = vmatpush1.bf16.msra.mxu0 %v1742
  %2664 = vmatprep.subr.bf16.mxu0 0
  %2665 = vmatpush1.bf16.msra.mxu0 %v1743
  %2666 = vmatprep.subr.bf16.mxu0 0
  %2667 = vmatpush1.bf16.msra.mxu0 0
  %2668 = vmatprep.subr.bf16.mxu0 0
  %2669 = vmatpush1.bf16.msra.mxu0 0
  %2670 = vmatprep.subr.bf16.mxu0 0
  %2671 = vmatpush1.bf16.msra.mxu0 0
  %2672 = vmatprep.subr.bf16.mxu0 0
  %2673 = vmatpush1.bf16.msra.mxu0 0
  %2674 = vmatprep.subr.bf16.mxu0 0
  %2675 = vmatpush1.bf16.msra.mxu0 0
  %2676 = vmatprep.subr.bf16.mxu0 0
  %2677 = vmatpush1.bf16.msra.mxu0 0
  %2678 = vmatprep.subr.bf16.mxu0 0
  %2679 = vmatpush1.bf16.msra.mxu0 0
  %2680 = vmatprep.subr.bf16.mxu0 0
  %2681 = vmatpush1.bf16.msra.mxu0 0
  %2682 = vmatprep.subr.bf16.mxu0 0
  %2683 = vmatpush1.bf16.msra.mxu0 0
  %2684 = vmatprep.subr.bf16.mxu0 0
  %2685 = vmatpush1.bf16.msra.mxu0 0
  %2686 = vmatprep.subr.bf16.mxu0 0
  %2687 = vmatpush1.bf16.msra.mxu0 0
  %2688 = vmatprep.subr.bf16.mxu0 0
  %2689 = vmatpush1.bf16.msra.mxu0 0
  %2690 = vmatprep.subr.bf16.mxu0 0
  %2691 = vmatpush1.bf16.msra.mxu0 0
  %2692 = vmatprep.subr.bf16.mxu0 0
  %2693 = vmatpush1.bf16.msra.mxu0 0
  %2694 = vmatprep.mubr.bf16.mxu0 0
  %2695 = vmatmul.mubr.bf16.gmra.mrb[0].mxu0 %v2660
  %v2696 = vpop.f32.mrb[0].mxu0
  %v2697 = vadd.f32 0.0, %v2696
  %v2698 = vpop.f32.mrb[0].mxu0
  %v2699 = vpop.f32.mrb[0].mxu0
  %v2700 = vpop.f32.mrb[0].mxu0
  %2701 = vdwg.mxu0
  %v2703 = vrot.slane %v2697, 6
  %v2705 = vadd.f32 %v1722, %v2703
  %v2706 = vxor.u32 %v2705, 2147483648
  %v2707 = vmul.f32 %v2706, 1.442695
  %v2708 = vpow.pop %v2707
  %v2709 = vadd.f32 %v2708, 1.0
  %v2710 = vrcp.pop %v2709
  %v2711 = vmul.f32 1.0, %v2710
  %v2712 = vtanh.pop %v2705
  %v2714 = vrot.slane %v2545, 6
  %v2716 = vmul.f32 %v2711, %v2714
  %2718 = vrot.lane.b32.xlu0 %v2712, 64
  %v2719 = vpop.permute.xlu0 %2718
  %v2721 = vmul.f32 %v2711, %v2719
  %2723 = vrot.lane.b32.xlu0 %v2721, 32
  %v2724 = vpop.permute.xlu0 %2723
  %v2726 = vadd.f32 %v2716, %v2724
  %v2727 = vtanh.pop %v2726
  %2729 = vrot.lane.b32.xlu0 %v2727, 64
  %v2730 = vpop.permute.xlu0 %2729
  %v2732 = vmul.f32 %v2711, %v2730
  %v2734 = vrot.slane %v2732, 2
  %2735 = vrot.lane.b32.xlu0 %v2734, 32
  %v2736 = vpop.permute.xlu0 %2735
  %2739 = vrot.lane.b32.xlu0 %v2544, 32
  %v2740 = vpop.permute.xlu0 %2739
  %v2742 = vsel %vm57, %v2736, %v2740
  %v2744 = vrot.slane %v2726, 2
  %2745 = vrot.lane.b32.xlu0 %v2744, 96
  %v2746 = vpop.permute.xlu0 %2745
  %2748 = vrot.lane.b32.xlu0 %v2545, 96
  %v2749 = vpop.permute.xlu0 %2748
  %v2751 = vsel %vm57, %v2746, %v2749
  %v2752 = vsel %vm57, %v2736, 0.0
  %2753 = vst.msk [vmem:[#allocation2 + $0xa] sm:$0x3] %vm233, %v2752
  %v2754 = vpack.c.bf16 %v2639, %v2639
  %v2756 = vsel %vm158, %v2754, 0
  %2758 = vmatprep.subr.bf16.mxu0 0
  %2759 = vmatpush1.bf16.msra.mxu0 %v1826
  %2760 = vmatprep.subr.bf16.mxu0 0
  %2761 = vmatpush1.bf16.msra.mxu0 %v1827
  %2762 = vmatprep.subr.bf16.mxu0 0
  %2763 = vmatpush1.bf16.msra.mxu0 0
  %2764 = vmatprep.subr.bf16.mxu0 0
  %2765 = vmatpush1.bf16.msra.mxu0 0
  %2766 = vmatprep.subr.bf16.mxu0 0
  %2767 = vmatpush1.bf16.msra.mxu0 0
  %2768 = vmatprep.subr.bf16.mxu0 0
  %2769 = vmatpush1.bf16.msra.mxu0 0
  %2770 = vmatprep.subr.bf16.mxu0 0
  %2771 = vmatpush1.bf16.msra.mxu0 0
  %2772 = vmatprep.subr.bf16.mxu0 0
  %2773 = vmatpush1.bf16.msra.mxu0 0
  %2774 = vmatprep.subr.bf16.mxu0 0
  %2775 = vmatpush1.bf16.msra.mxu0 0
  %2776 = vmatprep.subr.bf16.mxu0 0
  %2777 = vmatpush1.bf16.msra.mxu0 0
  %2778 = vmatprep.subr.bf16.mxu0 0
  %2779 = vmatpush1.bf16.msra.mxu0 0
  %2780 = vmatprep.subr.bf16.mxu0 0
  %2781 = vmatpush1.bf16.msra.mxu0 0
  %2782 = vmatprep.subr.bf16.mxu0 0
  %2783 = vmatpush1.bf16.msra.mxu0 0
  %2784 = vmatprep.subr.bf16.mxu0 0
  %2785 = vmatpush1.bf16.msra.mxu0 0
  %2786 = vmatprep.subr.bf16.mxu0 0
  %2787 = vmatpush1.bf16.msra.mxu0 0
  %2788 = vmatprep.subr.bf16.mxu0 0
  %2789 = vmatpush1.bf16.msra.mxu0 0
  %2790 = vmatprep.mubr.bf16.mxu0 0
  %2791 = vmatmul.mubr.bf16.gmra.mrb[0].mxu0 %v2756
  %v2792 = vpop.f32.mrb[0].mxu0
  %v2793 = vadd.f32 0.0, %v2792
  %v2794 = vpop.f32.mrb[0].mxu0
  %v2795 = vpop.f32.mrb[0].mxu0
  %v2796 = vpop.f32.mrb[0].mxu0
  %2797 = vdwg.mxu0
  %v2799 = vrot.slane %v2793, 4
  %v2801 = vadd.f32 %v1720, %v2799
  %v2802 = vxor.u32 %v2801, 2147483648
  %v2803 = vmul.f32 %v2802, 1.442695
  %v2804 = vpow.pop %v2803
  %v2805 = vadd.f32 %v2804, 1.0
  %v2806 = vrcp.pop %v2805
  %v2807 = vmul.f32 1.0, %v2806
  %v2808 = vtanh.pop %v2801
  %v2810 = vrot.slane %v2648, 4
  %2811 = vrot.lane.b32.xlu0 %v2810, 32
  %v2812 = vpop.permute.xlu0 %2811
  %v2814 = vmul.f32 %v2807, %v2812
  %2816 = vrot.lane.b32.xlu0 %v2808, 64
  %v2817 = vpop.permute.xlu0 %2816
  %v2819 = vmul.f32 %v2807, %v2817
  %2821 = vrot.lane.b32.xlu0 %v2819, 32
  %v2822 = vpop.permute.xlu0 %2821
  %v2824 = vadd.f32 %v2814, %v2822
  %v2825 = vtanh.pop %v2824
  %2827 = vrot.lane.b32.xlu0 %v2825, 64
  %v2828 = vpop.permute.xlu0 %2827
  %v2830 = vmul.f32 %v2807, %v2828
  %v2832 = vrot.slane %v2830, 4
  %2833 = vrot.lane.b32.xlu0 %v2832, 32
  %v2834 = vpop.permute.xlu0 %2833
  %v2836 = vsel %vm54, %v2834, %v2639
  %v2838 = vrot.slane %v2824, 4
  %2839 = vrot.lane.b32.xlu0 %v2838, 96
  %v2840 = vpop.permute.xlu0 %2839
  %v2842 = vsel %vm54, %v2840, %v2648
  %v2843 = vsel %vm54, %v2834, 0.0
  %2845 = vrot.lane.b32.xlu0 %v2843, 32
  %v2846 = vpop.permute.xlu0 %2845
  %2848 = vst.msk [vmem:[#allocation2 + $0x4] sm:$0x3] %vm331, %v2846
  %v2849 = vpack.c.bf16 %v2742, %v2742
  %v2851 = vsel %vm158, %v2849, 0
  %2853 = vmatprep.subr.bf16.mxu0 0
  %2854 = vmatpush1.bf16.msra.mxu0 %v1742
  %2855 = vmatprep.subr.bf16.mxu0 0
  %2856 = vmatpush1.bf16.msra.mxu0 %v1743
  %2857 = vmatprep.subr.bf16.mxu0 0
  %2858 = vmatpush1.bf16.msra.mxu0 0
  %2859 = vmatprep.subr.bf16.mxu0 0
  %2860 = vmatpush1.bf16.msra.mxu0 0
  %2861 = vmatprep.subr.bf16.mxu0 0
  %2862 = vmatpush1.bf16.msra.mxu0 0
  %2863 = vmatprep.subr.bf16.mxu0 0
  %2864 = vmatpush1.bf16.msra.mxu0 0
  %2865 = vmatprep.subr.bf16.mxu0 0
  %2866 = vmatpush1.bf16.msra.mxu0 0
  %2867 = vmatprep.subr.bf16.mxu0 0
  %2868 = vmatpush1.bf16.msra.mxu0 0
  %2869 = vmatprep.subr.bf16.mxu0 0
  %2870 = vmatpush1.bf16.msra.mxu0 0
  %2871 = vmatprep.subr.bf16.mxu0 0
  %2872 = vmatpush1.bf16.msra.mxu0 0
  %2873 = vmatprep.subr.bf16.mxu0 0
  %2874 = vmatpush1.bf16.msra.mxu0 0
  %2875 = vmatprep.subr.bf16.mxu0 0
  %2876 = vmatpush1.bf16.msra.mxu0 0
  %2877 = vmatprep.subr.bf16.mxu0 0
  %2878 = vmatpush1.bf16.msra.mxu0 0
  %2879 = vmatprep.subr.bf16.mxu0 0
  %2880 = vmatpush1.bf16.msra.mxu0 0
  %2881 = vmatprep.subr.bf16.mxu0 0
  %2882 = vmatpush1.bf16.msra.mxu0 0
  %2883 = vmatprep.subr.bf16.mxu0 0
  %2884 = vmatpush1.bf16.msra.mxu0 0
  %2885 = vmatprep.mubr.bf16.mxu0 0
  %2886 = vmatmul.mubr.bf16.gmra.mrb[0].mxu0 %v2851
  %v2887 = vpop.f32.mrb[0].mxu0
  %v2888 = vadd.f32 0.0, %v2887
  %v2889 = vpop.f32.mrb[0].mxu0
  %v2890 = vpop.f32.mrb[0].mxu0
  %v2891 = vpop.f32.mrb[0].mxu0
  %2892 = vdwg.mxu0
  %v2894 = vrot.slane %v2888, 4
  %v2896 = vadd.f32 %v1722, %v2894
  %v2897 = vxor.u32 %v2896, 2147483648
  %v2898 = vmul.f32 %v2897, 1.442695
  %v2899 = vpow.pop %v2898
  %v2900 = vadd.f32 %v2899, 1.0
  %v2901 = vrcp.pop %v2900
  %v2902 = vmul.f32 1.0, %v2901
  %v2903 = vtanh.pop %v2896
  %v2905 = vrot.slane %v2751, 4
  %2906 = vrot.lane.b32.xlu0 %v2905, 32
  %v2907 = vpop.permute.xlu0 %2906
  %v2909 = vmul.f32 %v2902, %v2907
  %2911 = vrot.lane.b32.xlu0 %v2903, 64
  %v2912 = vpop.permute.xlu0 %2911
  %v2914 = vmul.f32 %v2902, %v2912
  %2916 = vrot.lane.b32.xlu0 %v2914, 32
  %v2917 = vpop.permute.xlu0 %2916
  %v2919 = vadd.f32 %v2909, %v2917
  %v2920 = vtanh.pop %v2919
  %2922 = vrot.lane.b32.xlu0 %v2920, 64
  %v2923 = vpop.permute.xlu0 %2922
  %v2925 = vmul.f32 %v2902, %v2923
  %v2927 = vrot.slane %v2925, 4
  %2928 = vrot.lane.b32.xlu0 %v2927, 32
  %v2929 = vpop.permute.xlu0 %2928
  %v2931 = vsel %vm58, %v2929, %v2742
  %v2933 = vrot.slane %v2919, 4
  %2934 = vrot.lane.b32.xlu0 %v2933, 96
  %v2935 = vpop.permute.xlu0 %2934
  %v2937 = vsel %vm58, %v2935, %v2751
  %v2938 = vsel %vm58, %v2929, 0.0
  %2939 = vst.msk [vmem:[#allocation2 + $0xc] sm:$0x3] %vm233, %v2938
  %v2940 = vpack.c.bf16 %v2836, %v2836
  %v2942 = vsel %vm158, %v2940, 0
  %2944 = vmatprep.subr.bf16.mxu0 0
  %2945 = vmatpush1.bf16.msra.mxu0 %v1826
  %2946 = vmatprep.subr.bf16.mxu0 0
  %2947 = vmatpush1.bf16.msra.mxu0 %v1827
  %2948 = vmatprep.subr.bf16.mxu0 0
  %2949 = vmatpush1.bf16.msra.mxu0 0
  %2950 = vmatprep.subr.bf16.mxu0 0
  %2951 = vmatpush1.bf16.msra.mxu0 0
  %2952 = vmatprep.subr.bf16.mxu0 0
  %2953 = vmatpush1.bf16.msra.mxu0 0
  %2954 = vmatprep.subr.bf16.mxu0 0
  %2955 = vmatpush1.bf16.msra.mxu0 0
  %2956 = vmatprep.subr.bf16.mxu0 0
  %2957 = vmatpush1.bf16.msra.mxu0 0
  %2958 = vmatprep.subr.bf16.mxu0 0
  %2959 = vmatpush1.bf16.msra.mxu0 0
  %2960 = vmatprep.subr.bf16.mxu0 0
  %2961 = vmatpush1.bf16.msra.mxu0 0
  %2962 = vmatprep.subr.bf16.mxu0 0
  %2963 = vmatpush1.bf16.msra.mxu0 0
  %2964 = vmatprep.subr.bf16.mxu0 0
  %2965 = vmatpush1.bf16.msra.mxu0 0
  %2966 = vmatprep.subr.bf16.mxu0 0
  %2967 = vmatpush1.bf16.msra.mxu0 0
  %2968 = vmatprep.subr.bf16.mxu0 0
  %2969 = vmatpush1.bf16.msra.mxu0 0
  %2970 = vmatprep.subr.bf16.mxu0 0
  %2971 = vmatpush1.bf16.msra.mxu0 0
  %2972 = vmatprep.subr.bf16.mxu0 0
  %2973 = vmatpush1.bf16.msra.mxu0 0
  %2974 = vmatprep.subr.bf16.mxu0 0
  %2975 = vmatpush1.bf16.msra.mxu0 0
  %2976 = vmatprep.mubr.bf16.mxu0 0
  %2977 = vmatmul.mubr.bf16.gmra.mrb[0].mxu0 %v2942
  %v2978 = vpop.f32.mrb[0].mxu0
  %v2979 = vadd.f32 0.0, %v2978
  %v2980 = vpop.f32.mrb[0].mxu0
  %v2981 = vpop.f32.mrb[0].mxu0
  %v2982 = vpop.f32.mrb[0].mxu0
  %2983 = vdwg.mxu0
  %v2985 = vrot.slane %v2979, 6
  %v2987 = vadd.f32 %v1720, %v2985
  %v2988 = vxor.u32 %v2987, 2147483648
  %v2989 = vmul.f32 %v2988, 1.442695
  %v2990 = vpow.pop %v2989
  %v2991 = vadd.f32 %v2990, 1.0
  %v2992 = vrcp.pop %v2991
  %v2993 = vmul.f32 1.0, %v2992
  %v2994 = vtanh.pop %v2987
  %v2996 = vrot.slane %v2842, 6
  %2997 = vrot.lane.b32.xlu0 %v2996, 32
  %v2998 = vpop.permute.xlu0 %2997
  %v3000 = vmul.f32 %v2993, %v2998
  %3002 = vrot.lane.b32.xlu0 %v2994, 64
  %v3003 = vpop.permute.xlu0 %3002
  %v3005 = vmul.f32 %v2993, %v3003
  %3007 = vrot.lane.b32.xlu0 %v3005, 32
  %v3008 = vpop.permute.xlu0 %3007
  %v3010 = vadd.f32 %v3000, %v3008
  %v3011 = vtanh.pop %v3010
  %3013 = vrot.lane.b32.xlu0 %v3011, 64
  %v3014 = vpop.permute.xlu0 %3013
  %v3016 = vmul.f32 %v2993, %v3014
  %v3018 = vrot.slane %v3016, 2
  %3019 = vrot.lane.b32.xlu0 %v3018, 32
  %v3020 = vpop.permute.xlu0 %3019
  %v3022 = vsel %vm53, %v3020, %v2836
  %v3024 = vrot.slane %v3010, 2
  %3025 = vrot.lane.b32.xlu0 %v3024, 96
  %v3026 = vpop.permute.xlu0 %3025
  %v3028 = vsel %vm53, %v3026, %v2842
  %v3029 = vsel %vm53, %v3020, 0.0
  %3031 = vrot.lane.b32.xlu0 %v3029, 32
  %v3032 = vpop.permute.xlu0 %3031
  %3034 = vst.msk [vmem:[#allocation2 + $0x2] sm:$0x3] %vm331, %v3032
  %v3035 = vpack.c.bf16 %v2931, %v2931
  %v3037 = vsel %vm158, %v3035, 0
  %3039 = vmatprep.subr.bf16.mxu0 0
  %3040 = vmatpush1.bf16.msra.mxu0 %v1742
  %3041 = vmatprep.subr.bf16.mxu0 0
  %3042 = vmatpush1.bf16.msra.mxu0 %v1743
  %3043 = vmatprep.subr.bf16.mxu0 0
  %3044 = vmatpush1.bf16.msra.mxu0 0
  %3045 = vmatprep.subr.bf16.mxu0 0
  %3046 = vmatpush1.bf16.msra.mxu0 0
  %3047 = vmatprep.subr.bf16.mxu0 0
  %3048 = vmatpush1.bf16.msra.mxu0 0
  %3049 = vmatprep.subr.bf16.mxu0 0
  %3050 = vmatpush1.bf16.msra.mxu0 0
  %3051 = vmatprep.subr.bf16.mxu0 0
  %3052 = vmatpush1.bf16.msra.mxu0 0
  %3053 = vmatprep.subr.bf16.mxu0 0
  %3054 = vmatpush1.bf16.msra.mxu0 0
  %3055 = vmatprep.subr.bf16.mxu0 0
  %3056 = vmatpush1.bf16.msra.mxu0 0
  %3057 = vmatprep.subr.bf16.mxu0 0
  %3058 = vmatpush1.bf16.msra.mxu0 0
  %3059 = vmatprep.subr.bf16.mxu0 0
  %3060 = vmatpush1.bf16.msra.mxu0 0
  %3061 = vmatprep.subr.bf16.mxu0 0
  %3062 = vmatpush1.bf16.msra.mxu0 0
  %3063 = vmatprep.subr.bf16.mxu0 0
  %3064 = vmatpush1.bf16.msra.mxu0 0
  %3065 = vmatprep.subr.bf16.mxu0 0
  %3066 = vmatpush1.bf16.msra.mxu0 0
  %3067 = vmatprep.subr.bf16.mxu0 0
  %3068 = vmatpush1.bf16.msra.mxu0 0
  %3069 = vmatprep.subr.bf16.mxu0 0
  %3070 = vmatpush1.bf16.msra.mxu0 0
  %3071 = vmatprep.mubr.bf16.mxu0 0
  %3072 = vmatmul.mubr.bf16.gmra.mrb[0].mxu0 %v3037
  %v3073 = vpop.f32.mrb[0].mxu0
  %v3074 = vadd.f32 0.0, %v3073
  %v3075 = vpop.f32.mrb[0].mxu0
  %v3076 = vpop.f32.mrb[0].mxu0
  %v3077 = vpop.f32.mrb[0].mxu0
  %3078 = vdwg.mxu0
  %v3080 = vrot.slane %v3074, 2
  %v3082 = vadd.f32 %v1722, %v3080
  %v3083 = vxor.u32 %v3082, 2147483648
  %v3084 = vmul.f32 %v3083, 1.442695
  %v3085 = vpow.pop %v3084
  %v3086 = vadd.f32 %v3085, 1.0
  %v3087 = vrcp.pop %v3086
  %v3088 = vmul.f32 1.0, %v3087
  %v3089 = vtanh.pop %v3082
  %v3091 = vrot.slane %v2937, 2
  %3092 = vrot.lane.b32.xlu0 %v3091, 32
  %v3093 = vpop.permute.xlu0 %3092
  %v3095 = vmul.f32 %v3088, %v3093
  %3097 = vrot.lane.b32.xlu0 %v3089, 64
  %v3098 = vpop.permute.xlu0 %3097
  %v3100 = vmul.f32 %v3088, %v3098
  %3102 = vrot.lane.b32.xlu0 %v3100, 32
  %v3103 = vpop.permute.xlu0 %3102
  %v3105 = vadd.f32 %v3095, %v3103
  %v3106 = vtanh.pop %v3105
  %3108 = vrot.lane.b32.xlu0 %v3106, 64
  %v3109 = vpop.permute.xlu0 %3108
  %v3111 = vmul.f32 %v3088, %v3109
  %v3113 = vrot.slane %v3111, 6
  %3114 = vrot.lane.b32.xlu0 %v3113, 32
  %v3115 = vpop.permute.xlu0 %3114
  %v3117 = vsel %vm59, %v3115, 0.0
  %3118 = vst.msk [vmem:[#allocation2 + $0xe] sm:$0x3] %vm233, %v3117
  %v3119 = vpack.c.bf16 %v3022, %v3022
  %v3121 = vsel %vm158, %v3119, 0
  %3123 = vmatprep.subr.bf16.mxu0 0
  %3124 = vmatpush1.bf16.msra.mxu0 %v1826
  %3125 = vmatprep.subr.bf16.mxu0 0
  %3126 = vmatpush1.bf16.msra.mxu0 %v1827
  %3127 = vmatprep.subr.bf16.mxu0 0
  %3128 = vmatpush1.bf16.msra.mxu0 0
  %3129 = vmatprep.subr.bf16.mxu0 0
  %3130 = vmatpush1.bf16.msra.mxu0 0
  %3131 = vmatprep.subr.bf16.mxu0 0
  %3132 = vmatpush1.bf16.msra.mxu0 0
  %3133 = vmatprep.subr.bf16.mxu0 0
  %3134 = vmatpush1.bf16.msra.mxu0 0
  %3135 = vmatprep.subr.bf16.mxu0 0
  %3136 = vmatpush1.bf16.msra.mxu0 0
  %3137 = vmatprep.subr.bf16.mxu0 0
  %3138 = vmatpush1.bf16.msra.mxu0 0
  %3139 = vmatprep.subr.bf16.mxu0 0
  %3140 = vmatpush1.bf16.msra.mxu0 0
  %3141 = vmatprep.subr.bf16.mxu0 0
  %3142 = vmatpush1.bf16.msra.mxu0 0
  %3143 = vmatprep.subr.bf16.mxu0 0
  %3144 = vmatpush1.bf16.msra.mxu0 0
  %3145 = vmatprep.subr.bf16.mxu0 0
  %3146 = vmatpush1.bf16.msra.mxu0 0
  %3147 = vmatprep.subr.bf16.mxu0 0
  %3148 = vmatpush1.bf16.msra.mxu0 0
  %3149 = vmatprep.subr.bf16.mxu0 0
  %3150 = vmatpush1.bf16.msra.mxu0 0
  %3151 = vmatprep.subr.bf16.mxu0 0
  %3152 = vmatpush1.bf16.msra.mxu0 0
  %3153 = vmatprep.subr.bf16.mxu0 0
  %3154 = vmatpush1.bf16.msra.mxu0 0
  %3155 = vmatprep.mubr.bf16.mxu0 0
  %3156 = vmatmul.mubr.bf16.gmra.mrb[0].mxu0 %v3121
  %v3157 = vpop.f32.mrb[0].mxu0
  %v3158 = vadd.f32 0.0, %v3157
  %v3159 = vpop.f32.mrb[0].mxu0
  %v3160 = vpop.f32.mrb[0].mxu0
  %v3161 = vpop.f32.mrb[0].mxu0
  %3162 = vdwg.mxu0
  %v3163 = vadd.f32 %v1720, %v3158
  %v3164 = vxor.u32 %v3163, 2147483648
  %v3165 = vmul.f32 %v3164, 1.442695
  %v3166 = vpow.pop %v3165
  %v3167 = vadd.f32 %v3166, 1.0
  %v3168 = vrcp.pop %v3167
  %v3169 = vmul.f32 1.0, %v3168
  %v3170 = vtanh.pop %v3163
  %3172 = vrot.lane.b32.xlu0 %v3028, 32
  %v3173 = vpop.permute.xlu0 %3172
  %v3175 = vmul.f32 %v3169, %v3173
  %3177 = vrot.lane.b32.xlu0 %v3170, 64
  %v3178 = vpop.permute.xlu0 %3177
  %v3180 = vmul.f32 %v3169, %v3178
  %3182 = vrot.lane.b32.xlu0 %v3180, 32
  %v3183 = vpop.permute.xlu0 %3182
  %v3185 = vadd.f32 %v3175, %v3183
  %v3186 = vtanh.pop %v3185
  %3188 = vrot.lane.b32.xlu0 %v3186, 64
  %v3189 = vpop.permute.xlu0 %3188
  %v3191 = vmul.f32 %v3169, %v3189
  %v3192 = vsel %vm52, %v3191, 0.0
  %3194 = vrot.lane.b32.xlu0 %v3192, 64
  %v3195 = vpop.permute.xlu0 %3194
  %3197 = vst.msk [vmem:[#allocation2] sm:$0x3] %vm331, %v3195
  %v3198 = vld [vmem:[#allocation2] sm:$0xff]
  %v3199 = vld [vmem:[#allocation2 + $0x8] sm:$0xff]
  %v3200 = vld [vmem:[%s10] sm:$0x1]
  %v3202 = vlaneseq
  %v3203 = vshrl.u32 %v3202, 7
  %v3204 = vsub.s32 0, %v3203
  %v3205 = vrot.slane %v3200, %v3204
  %v3207 = vmul.f32 %v3198, %v3205
  %v3208 = vmul.f32 %v3199, %v3205
  %v3209 = vld [vmem:[%s11] sm:$0x1]
  %v3211 = vlaneseq
  %v3212 = vshrl.u32 %v3211, 7
  %v3213 = vsub.s32 0, %v3212
  %v3214 = vrot.slane %v3209, %v3213
  %v3216 = vadd.f32 %v3207, %v3214
  %v3217 = vadd.f32 %v3208, %v3214
  %v3218 = vpack.c.bf16 %v3217, %v3216
  %v3219 = vld [vmem:[%s12] sm:$0xf]
  %v3220 = vld [vmem:[%s12 + $0x4] sm:$0xf]
  %v3221 = vld [vmem:[%s12 + $0x8] sm:$0xf]
  %v3222 = vld [vmem:[%s12 + $0xc] sm:$0xf]
  %v3223 = vld [vmem:[%s12 + $0x10] sm:$0xf]
  %v3224 = vld [vmem:[%s12 + $0x14] sm:$0xf]
  %v3225 = vld [vmem:[%s12 + $0x18] sm:$0xf]
  %v3226 = vld [vmem:[%s12 + $0x1c] sm:$0xf]
  %v3227 = vld [vmem:[%s13] sm:$0x1]
  %v3229 = vlaneseq
  %v3230 = vshrl.u32 %v3229, 7
  %v3231 = vsub.s32 0, %v3230
  %v3232 = vrot.slane %v3227, %v3231
  %v3242 = vunpack.c.l.b16 %v3219
  %v3243 = vunpack.c.l.b16 %v3220
  %v3244 = vunpack.c.l.b16 %v3221
  %v3245 = vunpack.c.l.b16 %v3222
  %v3246 = vunpack.c.l.b16 %v3223
  %v3247 = vunpack.c.l.b16 %v3224
  %v3248 = vunpack.c.l.b16 %v3225
  %v3249 = vunpack.c.l.b16 %v3226
  %v3250 = vpack.c.b16 %v3243, %v3242
  %v3251 = vpack.c.b16 %v3245, %v3244
  %v3252 = vpack.c.b16 %v3247, %v3246
  %v3253 = vpack.c.b16 %v3249, %v3248
  %v3259 = vsel %vm1679, %v3218, 0
  %3261 = vmatprep.subr.bf16.mxu0 0
  %3262 = vmatpush1.bf16.msra.mxu0 %v3250
  %3263 = vmatprep.subr.bf16.mxu0 0
  %3264 = vmatpush1.bf16.msra.mxu0 %v3251
  %3265 = vmatprep.subr.bf16.mxu0 0
  %3266 = vmatpush1.bf16.msra.mxu0 %v3252
  %3267 = vmatprep.subr.bf16.mxu0 0
  %3268 = vmatpush1.bf16.msra.mxu0 %v3253
  %3269 = vmatprep.subr.bf16.mxu0 0
  %3270 = vmatpush1.bf16.msra.mxu0 0
  %3271 = vmatprep.subr.bf16.mxu0 0
  %3272 = vmatpush1.bf16.msra.mxu0 0
  %3273 = vmatprep.subr.bf16.mxu0 0
  %3274 = vmatpush1.bf16.msra.mxu0 0
  %3275 = vmatprep.subr.bf16.mxu0 0
  %3276 = vmatpush1.bf16.msra.mxu0 0
  %3277 = vmatprep.subr.bf16.mxu0 0
  %3278 = vmatpush1.bf16.msra.mxu0 0
  %3279 = vmatprep.subr.bf16.mxu0 0
  %3280 = vmatpush1.bf16.msra.mxu0 0
  %3281 = vmatprep.subr.bf16.mxu0 0
  %3282 = vmatpush1.bf16.msra.mxu0 0
  %3283 = vmatprep.subr.bf16.mxu0 0
  %3284 = vmatpush1.bf16.msra.mxu0 0
  %3285 = vmatprep.subr.bf16.mxu0 0
  %3286 = vmatpush1.bf16.msra.mxu0 0
  %3287 = vmatprep.subr.bf16.mxu0 0
  %3288 = vmatpush1.bf16.msra.mxu0 0
  %3289 = vmatprep.subr.bf16.mxu0 0
  %3290 = vmatpush1.bf16.msra.mxu0 0
  %3291 = vmatprep.subr.bf16.mxu0 0
  %3292 = vmatpush1.bf16.msra.mxu0 0
  %3293 = vmatprep.mubr.bf16.mxu0 0
  %3294 = vmatmul.mubr.bf16.gmra.mrb[0].mxu0 %v3259
  %v3295 = vpop.f32.mrb[0].mxu0
  %v3296 = vadd.f32 %v3232, %v3295
  %v3297 = vpop.f32.mrb[0].mxu0
  %v3298 = vpop.f32.mrb[0].mxu0
  %v3299 = vadd.f32 %v3232, %v3298
  %v3300 = vpop.f32.mrb[0].mxu0
  %3301 = vdwg.mxu0
  %3302 = vst [vmem:[%s14] sm:$0xff] %v3296
  %3303 = vst [vmem:[%s14 + $0x8] sm:$0xff] %v3299
  // Predicated region
  $region58: #{bilstm_forward.1} parent=0 // pred_check
    _
  $region59: #{bilstm_forward.1} parent=0 // pred_check_branch
    %3305 = sbr.rel (0) target = $region61
  $region60: #{bilstm_forward.1} parent=0 // pred_region
    _
  $region61: #{bilstm_forward.1} parent=0 // pred_fallthru
    _
  // Predicated region
  $region62: #{bilstm_forward.1} parent=0 // pred_check
    _
  $region63: #{bilstm_forward.1} parent=0 // pred_check_branch
    %3307 = sbr.rel (0) target = $region65
  $region64: #{bilstm_forward.1} parent=0 // pred_region
    _
  $region65: #{bilstm_forward.1} parent=0 // pred_fallthru
    _

</llo_original>
